<compile_context>
chip_gen: v7x
topology: tpu7x:2x2x1
jax: 0.10.0
libtpu: 0.0.40
codegen_flags: <defaults>
</compile_context>

<pallas_src>
import jax
import jax.numpy as jnp
import numpy as np
from jax.experimental import pallas as pl
from jax.experimental.pallas import tpu as pltpu

# ----------------------------------------------------------------------------
# Static network geometry (IEEE 57-bus input: (N, 1, 57, 4))
# ----------------------------------------------------------------------------
H_IN, W_IN = 57, 4            # raw input spatial
H1, W1 = 30, 3                # conv1 output spatial (k3, s2, p2)
H2, W2 = 16, 3                # conv2 output spatial (k3, s2, p2)
C1, C2 = 16, 16               # conv output channels
IN_F = H_IN * W_IN            # 228
CONV1_F = H1 * W1 * C1        # 1440  (position-major, channel-minor)
FLAT_F = C2 * H2 * W2         # 768   (channel-major == NCHW flatten)
HID = 256
OUT_F = 57

IN_F_PAD = 256                # 228  -> 256  (lane-dense K for layer 1)
CONV1_F_PAD = 1536            # 1440 -> 1536
OUT_F_PAD = 128               # 57   -> 128  (lane-dense final store)


def _round_up(x, m):
    return ((x + m - 1) // m) * m


# ----------------------------------------------------------------------------
# Fused kernel: 5 chained matmuls + bias (+ ReLU), everything stays in VMEM.
# ----------------------------------------------------------------------------
def _fused_cnn_kernel(x_ref, w1_ref, b1_ref, w2_ref, b2_ref, w3_ref, b3_ref,
                      w4_ref, b4_ref, w5_ref, b5_ref, o_ref):
    f32 = jnp.float32
    # conv1 (lowered to a dense matmul) + ReLU
    h = jnp.dot(x_ref[...], w1_ref[...], preferred_element_type=f32) + b1_ref[...]
    h = jnp.maximum(h, 0.0)
    # conv2 (lowered); its column ordering already equals NCHW flatten, no ReLU here
    h = jnp.dot(h, w2_ref[...], preferred_element_type=f32) + b2_ref[...]
    # predictor MLP
    h = jnp.maximum(jnp.dot(h, w3_ref[...], preferred_element_type=f32) + b3_ref[...], 0.0)
    h = jnp.maximum(jnp.dot(h, w4_ref[...], preferred_element_type=f32) + b4_ref[...], 0.0)
    o_ref[...] = (jnp.dot(h, w5_ref[...], preferred_element_type=f32)
                  + b5_ref[...]).astype(o_ref.dtype)


# ----------------------------------------------------------------------------
# Weight preparation: lower the two convolutions to dense matrices (done once).
# ----------------------------------------------------------------------------
def prepare_fused_params(p):
    """Convert PyTorch-layout params into padded, lowered matrices for the kernel."""
    # --- conv1: x_flat (228) -> h1 (90 positions x 16 ch, position-major) -----
    S1 = np.zeros((IN_F, H1 * W1, 9), np.float32)
    for oh in range(H1):
        for ow in range(W1):
            for i in range(3):
                for j in range(3):
                    h = oh * 2 + i - 2
                    w = ow * 2 + j - 2
                    if 0 <= h < H_IN and 0 <= w < W_IN:
                        S1[h * W_IN + w, oh * W1 + ow, i * 3 + j] = 1.0
    w1k = p["c1_w"].reshape(C1, 9).T                                   # (9, 16)
    w1_low = jnp.einsum("qpk,ko->qpo", jnp.asarray(S1), w1k).reshape(IN_F, CONV1_F)
    b1 = jnp.tile(p["c1_b"], H1 * W1)                                  # (1440,)

    # --- conv2: h1 (1440) -> h2 (768), output CHANNEL-major == NCHW flatten ---
    S2 = np.zeros((H1 * W1, 9, H2 * W2), np.float32)
    for oh in range(H2):
        for ow in range(W2):
            for i in range(3):
                for j in range(3):
                    h = oh * 2 + i - 2
                    w = ow * 2 + j - 2
                    if 0 <= h < H1 and 0 <= w < W1:
                        S2[h * W1 + w, i * 3 + j, oh * W2 + ow] = 1.0
    w2k = p["c2_w"].reshape(C2, C1, 9)                                 # (o, c, k)
    w2_low = jnp.einsum("pkq,ock->pcoq", jnp.asarray(S2), w2k).reshape(CONV1_F, FLAT_F)
    b2 = jnp.repeat(p["c2_b"], H2 * W2)                                # (768,)

    # --- pad everything to lane-dense (multiples of 128) sizes ----------------
    w1p = jnp.pad(w1_low, ((0, IN_F_PAD - IN_F), (0, CONV1_F_PAD - CONV1_F)))
    b1p = jnp.pad(b1, (0, CONV1_F_PAD - CONV1_F))
    w2p = jnp.pad(w2_low, ((0, CONV1_F_PAD - CONV1_F), (0, 0)))
    w5p = jnp.pad(p["fc3_w"], ((0, 0), (0, OUT_F_PAD - OUT_F)))
    b5p = jnp.pad(p["fc3_b"], (0, OUT_F_PAD - OUT_F))

    # NOTE: w1/w2 could be stored bf16 on v6e/v7x to halve weight VMEM; kept f32
    # to match the f32 reference tolerance (network is overhead-bound anyway).
    return {
        "w1": w1p, "b1": b1p.reshape(1, -1),
        "w2": w2p, "b2": b2.reshape(1, -1),
        "w3": p["fc1_w"], "b3": p["fc1_b"].reshape(1, -1),
        "w4": p["fc2_w"], "b4": p["fc2_b"].reshape(1, -1),
        "w5": w5p, "b5": b5p.reshape(1, -1),
    }


# ----------------------------------------------------------------------------
# Forward pass: a single pallas_call (plus one pad + one slice in the wrapper)
# ----------------------------------------------------------------------------
def cnn_forward(fused, ef):
    n = ef.shape[0]
    x = ef.reshape(n, -1)                           # NCHW flatten, C=1 -> (n, 228)
    assert x.shape[1] == IN_F, x.shape

    tm = 128 if n >= 128 else _round_up(n, 8)       # sublane-aligned batch tile
    m_pad = _round_up(n, tm)
    xp = jnp.pad(x.astype(jnp.float32), ((0, m_pad - n), (0, IN_F_PAD - IN_F)))

    grid_m = m_pad // tm
    flops = 2 * m_pad * (IN_F_PAD * CONV1_F_PAD + CONV1_F_PAD * FLAT_F
                         + FLAT_F * HID + HID * HID + HID * OUT_F_PAD)
    bytes_accessed = 4 * (m_pad * (IN_F_PAD + OUT_F_PAD)
                          + IN_F_PAD * CONV1_F_PAD + CONV1_F_PAD * FLAT_F
                          + FLAT_F * HID + HID * HID + HID * OUT_F_PAD
                          + CONV1_F_PAD + FLAT_F + 2 * HID + OUT_F_PAD)

    def row_spec(shape):
        # batch-tiled operands: block index advances with the grid step
        return pl.BlockSpec(shape, lambda m: (m, 0))

    def fix_spec(shape):
        # weights/biases: constant block index -> fetched once, VMEM-resident
        return pl.BlockSpec(shape, lambda m: (0, 0))

    out = pl.pallas_call(
        _fused_cnn_kernel,
        out_shape=jax.ShapeDtypeStruct((m_pad, OUT_F_PAD), jnp.float32),
        grid=(grid_m,),
        in_specs=[
            row_spec((tm, IN_F_PAD)),
            fix_spec((IN_F_PAD, CONV1_F_PAD)), fix_spec((1, CONV1_F_PAD)),
            fix_spec((CONV1_F_PAD, FLAT_F)),   fix_spec((1, FLAT_F)),
            fix_spec((FLAT_F, HID)),           fix_spec((1, HID)),
            fix_spec((HID, HID)),              fix_spec((1, HID)),
            fix_spec((HID, OUT_F_PAD)),        fix_spec((1, OUT_F_PAD)),
        ],
        out_specs=row_spec((tm, OUT_F_PAD)),
        compiler_params=pltpu.CompilerParams(
            dimension_semantics=("parallel",),          # batch tiles -> both v7x TCs
            vmem_limit_bytes=32 * 1024 * 1024),         # resident weights + headroom
        cost_estimate=pl.CostEstimate(flops=flops, transcendentals=0,
                                      bytes_accessed=bytes_accessed),
    )(xp, fused["w1"], fused["b1"], fused["w2"], fused["b2"],
      fused["w3"], fused["b3"], fused["w4"], fused["b4"],
      fused["w5"], fused["b5"])
    return out[:n, :OUT_F]


# ----------------------------------------------------------------------------
# Parameter initialization (deterministic, PyTorch-style uniform bounds)
# ----------------------------------------------------------------------------
def _uniform(key, shape, fan_in):
    bound = 1.0 / jnp.sqrt(jnp.float32(fan_in))
    return jax.random.uniform(key, shape, jnp.float32, -bound, bound)


def init_params(key):
    ks = jax.random.split(key, 10)
    p = {}
    p["c1_w"] = _uniform(ks[0], (16, 1, 3, 3), 1 * 3 * 3)
    p["c1_b"] = _uniform(ks[1], (16,), 1 * 3 * 3)
    p["c2_w"] = _uniform(ks[2], (16, 16, 3, 3), 16 * 3 * 3)
    p["c2_b"] = _uniform(ks[3], (16,), 16 * 3 * 3)
    # Linear weights stored as (in, out) so the kernel computes x @ W directly.
    p["fc1_w"] = _uniform(ks[4], (768, 256), 768)
    p["fc1_b"] = _uniform(ks[5], (256,), 768)
    p["fc2_w"] = _uniform(ks[6], (256, 256), 256)
    p["fc2_b"] = _uniform(ks[7], (256,), 256)
    p["fc3_w"] = _uniform(ks[8], (256, 57), 256)
    p["fc3_b"] = _uniform(ks[9], (57,), 256)
    return p


# ----------------------------------------------------------------------------
# Pure-JAX reference (for a correctness sanity check)
# ----------------------------------------------------------------------------
def cnn_reference(params, ef):
    def conv(x, w, b):
        y = jax.lax.conv_general_dilated(
            x, w, window_strides=(2, 2), padding=[(2, 2), (2, 2)],
            dimension_numbers=("NCHW", "OIHW", "NCHW"))
        return y + b.reshape(1, -1, 1, 1)

    h = jnp.maximum(conv(ef, params["c1_w"], params["c1_b"]), 0.0)
    h = conv(h, params["c2_w"], params["c2_b"])
    flat = h.reshape(h.shape[0], -1)
    x = jnp.maximum(flat @ params["fc1_w"] + params["fc1_b"], 0.0)
    x = jnp.maximum(x @ params["fc2_w"] + params["fc2_b"], 0.0)
    return x @ params["fc3_w"] + params["fc3_b"]


if __name__ == "__main__":
    params = init_params(jax.random.PRNGKey(42))
    # IEEE 57-bus input: (batch, 1, 57, 4) -> flatten after convs is exactly 768 features
    x = jax.random.normal(jax.random.PRNGKey(0), (2, 1, 57, 4), jnp.float32)

    fused = prepare_fused_params(params)          # one-time weight lowering/packing
    fwd = jax.jit(cnn_forward)
    out = jax.block_until_ready(fwd(fused, x))
    assert out.shape == (2, 57), out.shape

    ref = cnn_reference(params, x)
    assert jnp.allclose(out, ref, rtol=1e-4, atol=1e-4), float(jnp.max(jnp.abs(out - ref)))

    print("KERNEL_OK")
</pallas_src>

<mosaic_0001>
module attributes {stable_mosaic.version = 11 : i64} {
  func.func @_fused_cnn_kernel(%arg0: i32, %arg1: memref<8x256xf32, #tpu.memory_space<vmem>>, %arg2: memref<256x1536xf32, #tpu.memory_space<vmem>>, %arg3: memref<1x1536xf32, #tpu.memory_space<vmem>>, %arg4: memref<1536x768xf32, #tpu.memory_space<vmem>>, %arg5: memref<1x768xf32, #tpu.memory_space<vmem>>, %arg6: memref<768x256xf32, #tpu.memory_space<vmem>>, %arg7: memref<1x256xf32, #tpu.memory_space<vmem>>, %arg8: memref<256x256xf32, #tpu.memory_space<vmem>>, %arg9: memref<1x256xf32, #tpu.memory_space<vmem>>, %arg10: memref<256x128xf32, #tpu.memory_space<vmem>>, %arg11: memref<1x128xf32, #tpu.memory_space<vmem>>, %arg12: memref<8x128xf32, #tpu.memory_space<vmem>>) attributes {dimension_semantics = [#tpu.dimension_semantics<parallel>], iteration_bounds = array<i64: 1>, scalar_prefetch = 0 : i64, scratch_operands = 0 : i64, tpu.core_type = #tpu.core_type<tc>, window_params = [{transform_indices = @transform_0, window_bounds = array<i64: 8, 256>}, {pipeline_mode = #tpu.pipeline_mode<synchronous>, transform_indices = @transform_1, window_bounds = array<i64: 256, 1536>}, {pipeline_mode = #tpu.pipeline_mode<synchronous>, transform_indices = @transform_2, window_bounds = array<i64: 1, 1536>}, {pipeline_mode = #tpu.pipeline_mode<synchronous>, transform_indices = @transform_3, window_bounds = array<i64: 1536, 768>}, {pipeline_mode = #tpu.pipeline_mode<synchronous>, transform_indices = @transform_4, window_bounds = array<i64: 1, 768>}, {pipeline_mode = #tpu.pipeline_mode<synchronous>, transform_indices = @transform_5, window_bounds = array<i64: 768, 256>}, {pipeline_mode = #tpu.pipeline_mode<synchronous>, transform_indices = @transform_6, window_bounds = array<i64: 1, 256>}, {pipeline_mode = #tpu.pipeline_mode<synchronous>, transform_indices = @transform_7, window_bounds = array<i64: 256, 256>}, {pipeline_mode = #tpu.pipeline_mode<synchronous>, transform_indices = @transform_8, window_bounds = array<i64: 1, 256>}, {pipeline_mode = #tpu.pipeline_mode<synchronous>, transform_indices = @transform_9, window_bounds = array<i64: 256, 128>}, {pipeline_mode = #tpu.pipeline_mode<synchronous>, transform_indices = @transform_10, window_bounds = array<i64: 1, 128>}, {transform_indices = @transform_11, window_bounds = array<i64: 8, 128>}]} {
    %c0 = arith.constant 0 : index
    %c0_0 = arith.constant 0 : index
    %0 = vector.load %arg1[%c0, %c0_0] : memref<8x256xf32, #tpu.memory_space<vmem>>, vector<8x256xf32>
    %c0_1 = arith.constant 0 : index
    %c0_2 = arith.constant 0 : index
    %1 = vector.load %arg2[%c0_1, %c0_2] : memref<256x1536xf32, #tpu.memory_space<vmem>>, vector<256x1536xf32>
    %cst = arith.constant dense<0.000000e+00> : vector<8x1536xf32>
    %2 = tpu.matmul %0, %1, %cst {dimension_numbers = #tpu.dot_dimension_numbers<[1], [0], [0], [1], [0, 0, 1, 1], [], []>} : vector<8x256xf32>, vector<256x1536xf32>, vector<8x1536xf32> -> vector<8x1536xf32>
    %c0_3 = arith.constant 0 : index
    %c0_4 = arith.constant 0 : index
    %3 = vector.load %arg3[%c0_3, %c0_4] : memref<1x1536xf32, #tpu.memory_space<vmem>>, vector<1x1536xf32>
    %4 = vector.broadcast %3 : vector<1x1536xf32> to vector<8x1536xf32>
    %5 = arith.addf %2, %4 : vector<8x1536xf32>
    %cst_5 = arith.constant 0.000000e+00 : f32
    %6 = vector.broadcast %cst_5 : f32 to vector<8x1536xf32>
    %7 = arith.maximumf %5, %6 : vector<8x1536xf32>
    %c0_6 = arith.constant 0 : index
    %c0_7 = arith.constant 0 : index
    %8 = vector.load %arg4[%c0_6, %c0_7] : memref<1536x768xf32, #tpu.memory_space<vmem>>, vector<1536x768xf32>
    %cst_8 = arith.constant dense<0.000000e+00> : vector<8x768xf32>
    %9 = tpu.matmul %7, %8, %cst_8 {dimension_numbers = #tpu.dot_dimension_numbers<[1], [0], [0], [1], [0, 0, 1, 1], [], []>} : vector<8x1536xf32>, vector<1536x768xf32>, vector<8x768xf32> -> vector<8x768xf32>
    %c0_9 = arith.constant 0 : index
    %c0_10 = arith.constant 0 : index
    %10 = vector.load %arg5[%c0_9, %c0_10] : memref<1x768xf32, #tpu.memory_space<vmem>>, vector<1x768xf32>
    %11 = vector.broadcast %10 : vector<1x768xf32> to vector<8x768xf32>
    %12 = arith.addf %9, %11 : vector<8x768xf32>
    %c0_11 = arith.constant 0 : index
    %c0_12 = arith.constant 0 : index
    %13 = vector.load %arg6[%c0_11, %c0_12] : memref<768x256xf32, #tpu.memory_space<vmem>>, vector<768x256xf32>
    %cst_13 = arith.constant dense<0.000000e+00> : vector<8x256xf32>
    %14 = tpu.matmul %12, %13, %cst_13 {dimension_numbers = #tpu.dot_dimension_numbers<[1], [0], [0], [1], [0, 0, 1, 1], [], []>} : vector<8x768xf32>, vector<768x256xf32>, vector<8x256xf32> -> vector<8x256xf32>
    %c0_14 = arith.constant 0 : index
    %c0_15 = arith.constant 0 : index
    %15 = vector.load %arg7[%c0_14, %c0_15] : memref<1x256xf32, #tpu.memory_space<vmem>>, vector<1x256xf32>
    %16 = vector.broadcast %15 : vector<1x256xf32> to vector<8x256xf32>
    %17 = arith.addf %14, %16 : vector<8x256xf32>
    %cst_16 = arith.constant 0.000000e+00 : f32
    %18 = vector.broadcast %cst_16 : f32 to vector<8x256xf32>
    %19 = arith.maximumf %17, %18 : vector<8x256xf32>
    %c0_17 = arith.constant 0 : index
    %c0_18 = arith.constant 0 : index
    %20 = vector.load %arg8[%c0_17, %c0_18] : memref<256x256xf32, #tpu.memory_space<vmem>>, vector<256x256xf32>
    %cst_19 = arith.constant dense<0.000000e+00> : vector<8x256xf32>
    %21 = tpu.matmul %19, %20, %cst_19 {dimension_numbers = #tpu.dot_dimension_numbers<[1], [0], [0], [1], [0, 0, 1, 1], [], []>} : vector<8x256xf32>, vector<256x256xf32>, vector<8x256xf32> -> vector<8x256xf32>
    %c0_20 = arith.constant 0 : index
    %c0_21 = arith.constant 0 : index
    %22 = vector.load %arg9[%c0_20, %c0_21] : memref<1x256xf32, #tpu.memory_space<vmem>>, vector<1x256xf32>
    %23 = vector.broadcast %22 : vector<1x256xf32> to vector<8x256xf32>
    %24 = arith.addf %21, %23 : vector<8x256xf32>
    %cst_22 = arith.constant 0.000000e+00 : f32
    %25 = vector.broadcast %cst_22 : f32 to vector<8x256xf32>
    %26 = arith.maximumf %24, %25 : vector<8x256xf32>
    %c0_23 = arith.constant 0 : index
    %c0_24 = arith.constant 0 : index
    %27 = vector.load %arg10[%c0_23, %c0_24] : memref<256x128xf32, #tpu.memory_space<vmem>>, vector<256x128xf32>
    %cst_25 = arith.constant dense<0.000000e+00> : vector<8x128xf32>
    %28 = tpu.matmul %26, %27, %cst_25 {dimension_numbers = #tpu.dot_dimension_numbers<[1], [0], [0], [1], [0, 0, 1, 1], [], []>} : vector<8x256xf32>, vector<256x128xf32>, vector<8x128xf32> -> vector<8x128xf32>
    %c0_26 = arith.constant 0 : index
    %c0_27 = arith.constant 0 : index
    %29 = vector.load %arg11[%c0_26, %c0_27] : memref<1x128xf32, #tpu.memory_space<vmem>>, vector<1x128xf32>
    %30 = vector.broadcast %29 : vector<1x128xf32> to vector<8x128xf32>
    %31 = arith.addf %28, %30 : vector<8x128xf32>
    %c0_28 = arith.constant 0 : index
    %c0_29 = arith.constant 0 : index
    %32 = vector.load %arg12[%c0_28, %c0_29] : memref<8x128xf32, #tpu.memory_space<vmem>>, vector<8x128xf32>
    tpu.vector_store %arg12[%c0_28, %c0_29], %31 {strides = array<i32>} : memref<8x128xf32, #tpu.memory_space<vmem>>, vector<8x128xf32>,
    return
  }
  func.func @transform_0(%arg0: i32) -> (i32, i32) {
    %c0_i32 = arith.constant 0 : i32
    %c0_i32_0 = arith.constant 0 : i32
    return %arg0, %c0_i32 : i32, i32
  }
  func.func @transform_1(%arg0: i32) -> (i32, i32) {
    %c0_i32 = arith.constant 0 : i32
    %c0_i32_0 = arith.constant 0 : i32
    %c0_i32_1 = arith.constant 0 : i32
    return %c0_i32, %c0_i32_0 : i32, i32
  }
  func.func @transform_2(%arg0: i32) -> (i32, i32) {
    %c0_i32 = arith.constant 0 : i32
    %c0_i32_0 = arith.constant 0 : i32
    %c0_i32_1 = arith.constant 0 : i32
    return %c0_i32, %c0_i32_0 : i32, i32
  }
  func.func @transform_3(%arg0: i32) -> (i32, i32) {
    %c0_i32 = arith.constant 0 : i32
    %c0_i32_0 = arith.constant 0 : i32
    %c0_i32_1 = arith.constant 0 : i32
    return %c0_i32, %c0_i32_0 : i32, i32
  }
  func.func @transform_4(%arg0: i32) -> (i32, i32) {
    %c0_i32 = arith.constant 0 : i32
    %c0_i32_0 = arith.constant 0 : i32
    %c0_i32_1 = arith.constant 0 : i32
    return %c0_i32, %c0_i32_0 : i32, i32
  }
  func.func @transform_5(%arg0: i32) -> (i32, i32) {
    %c0_i32 = arith.constant 0 : i32
    %c0_i32_0 = arith.constant 0 : i32
    %c0_i32_1 = arith.constant 0 : i32
    return %c0_i32, %c0_i32_0 : i32, i32
  }
  func.func @transform_6(%arg0: i32) -> (i32, i32) {
    %c0_i32 = arith.constant 0 : i32
    %c0_i32_0 = arith.constant 0 : i32
    %c0_i32_1 = arith.constant 0 : i32
    return %c0_i32, %c0_i32_0 : i32, i32
  }
  func.func @transform_7(%arg0: i32) -> (i32, i32) {
    %c0_i32 = arith.constant 0 : i32
    %c0_i32_0 = arith.constant 0 : i32
    %c0_i32_1 = arith.constant 0 : i32
    return %c0_i32, %c0_i32_0 : i32, i32
  }
  func.func @transform_8(%arg0: i32) -> (i32, i32) {
    %c0_i32 = arith.constant 0 : i32
    %c0_i32_0 = arith.constant 0 : i32
    %c0_i32_1 = arith.constant 0 : i32
    return %c0_i32, %c0_i32_0 : i32, i32
  }
  func.func @transform_9(%arg0: i32) -> (i32, i32) {
    %c0_i32 = arith.constant 0 : i32
    %c0_i32_0 = arith.constant 0 : i32
    %c0_i32_1 = arith.constant 0 : i32
    return %c0_i32, %c0_i32_0 : i32, i32
  }
  func.func @transform_10(%arg0: i32) -> (i32, i32) {
    %c0_i32 = arith.constant 0 : i32
    %c0_i32_0 = arith.constant 0 : i32
    %c0_i32_1 = arith.constant 0 : i32
    return %c0_i32, %c0_i32_0 : i32, i32
  }
  func.func @transform_11(%arg0: i32) -> (i32, i32) {
    %c0_i32 = arith.constant 0 : i32
    %c0_i32_0 = arith.constant 0 : i32
    return %arg0, %c0_i32 : i32, i32
  }
}

</mosaic_0001>

<llo_original>
// kernel: cnn_forward.1
$region0: #{cnn_forward.1}
  #allocation0 [shape = 'u32[]', space=smem, size = 0x4, offset = 0x4, fixed_abs, tag = 'smem constant byte address 0x4 - core index']
  #allocation1 [shape = 'u32[144,128]{1,0:T(1,128)}', space=vmem, size = 0x12000, scoped, tag = 'internal scratch']
  %s0 = inlined_call_operand.vmem [shape: f32[8,256], index: 0, kind: input, shape index: {}]
  %s1 = inlined_call_operand.hbm [shape: f32[256,1536], index: 1, kind: input, shape index: {}]
  %s2 = inlined_call_operand.hbm [shape: f32[1,1536], index: 2, kind: input, shape index: {}]
  %s3 = inlined_call_operand.hbm [shape: f32[1536,768], index: 3, kind: input, shape index: {}]
  %s4 = inlined_call_operand.hbm [shape: f32[1,768], index: 4, kind: input, shape index: {}]
  %s5 = inlined_call_operand.hbm [shape: f32[768,256], index: 5, kind: input, shape index: {}]
  %s6 = inlined_call_operand.hbm [shape: f32[1,256], index: 6, kind: input, shape index: {}]
  %s7 = inlined_call_operand.hbm [shape: f32[256,256], index: 7, kind: input, shape index: {}]
  %s8 = inlined_call_operand.hbm [shape: f32[1,256], index: 8, kind: input, shape index: {}]
  %s9 = inlined_call_operand.hbm [shape: f32[256,128], index: 9, kind: input, shape index: {}]
  %s10 = inlined_call_operand.hbm [shape: f32[1,128], index: 10, kind: input, shape index: {}]
  %s11 = inlined_call_operand.vmem [shape: f32[8,128], index: 11, kind: output, shape index: {}]
  %s12 = sld [smem:[#allocation0]]
  $region94: #{cnn_forward.1} parent=0
    _
  %s14 = ssub.s32 1, %s12
  %s15 = scalar_select 0, %s14, %s12
  $region1: #{cnn_forward.1} parent=0
    #allocation2 [shape = 'u8[1572864]{0}', space=vmem, size = 0x180000, scoped, tag = 'input window, operand 1, single buffered']
    #allocation3 [shape = 's32[1]{0}', space=sflag, size = 0x4, scoped, tag = 'scoped memory for cnn_forward.1']
    #allocation4 [shape = 'u8[6144]{0}', space=vmem, size = 0x1800, scoped, tag = 'input window, operand 2, single buffered']
    #allocation5 [shape = 's32[1]{0}', space=sflag, size = 0x4, scoped, tag = 'scoped memory for cnn_forward.1']
    #allocation6 [shape = 'u8[4718592]{0}', space=vmem, size = 0x480000, scoped, tag = 'input window, operand 3, single buffered']
    #allocation7 [shape = 'u8[3072]{0}', space=vmem, size = 0xc00, scoped, tag = 'input window, operand 4, single buffered']
    #allocation8 [shape = 's32[1]{0}', space=sflag, size = 0x4, scoped, tag = 'scoped memory for cnn_forward.1']
    #allocation9 [shape = 'u8[786432]{0}', space=vmem, size = 0xc0000, scoped, tag = 'input window, operand 5, single buffered']
    #allocation10 [shape = 'u8[1024]{0}', space=vmem, size = 0x400, scoped, tag = 'input window, operand 6, single buffered']
    #allocation11 [shape = 's32[1]{0}', space=sflag, size = 0x4, scoped, tag = 'scoped memory for cnn_forward.1']
    #allocation12 [shape = 'u8[262144]{0}', space=vmem, size = 0x40000, scoped, tag = 'input window, operand 7, single buffered']
    #allocation13 [shape = 'u8[1024]{0}', space=vmem, size = 0x400, scoped, tag = 'input window, operand 8, single buffered']
    #allocation14 [shape = 's32[1]{0}', space=sflag, size = 0x4, scoped, tag = 'scoped memory for cnn_forward.1']
    #allocation15 [shape = 'u8[131072]{0}', space=vmem, size = 0x20000, scoped, tag = 'input window, operand 9, single buffered']
    #allocation16 [shape = 'u8[512]{0}', space=vmem, size = 0x400, scoped, tag = 'input window, operand 10, single buffered']
    #allocation17 [shape = 's32[1]{0}', space=sflag, size = 0x4, scoped, tag = 'scoped memory for cnn_forward.1']
    %16 = vsyncpa [#allocation3], 0
    %17 = vsyncpa [#allocation5], 0
    %18 = vsyncpa [#allocation8], 0
    %19 = vsyncpa [#allocation11], 0
    %20 = vsyncpa [#allocation14], 0
    %21 = vsyncpa [#allocation17], 0
    // Predicated region
    $region2: #{cnn_forward.1} parent=1 // pred_check
      _
    $region3: #{cnn_forward.1} parent=1 // pred_check_branch
      %23 = sbr.rel (0) target = $region5
    $region4: #{cnn_forward.1} parent=1 // pred_region
      _
    $region5: #{cnn_forward.1} parent=1 // pred_fallthru
      _
    // Predicated region
    $region6: #{cnn_forward.1} parent=1 // pred_check
      _
    $region7: #{cnn_forward.1} parent=1 // pred_check_branch
      %25 = sbr.rel (0) target = $region9
    $region8: #{cnn_forward.1} parent=1 // pred_region
      %s27 = ssub.s32 49152, 49152
      %28 = vsyncadd [#allocation3], %s27
      %s29 = sshll.u32 [#allocation2], 4
      %s30 = int_to_ptr.vmem [resolvable:$true] %s29
      %35 = dma.hbm_to_vmem [thread:$0]  %s1, 49152, %s30, [#allocation3], 1536, 1536, 96
    $region9: #{cnn_forward.1} parent=1 // pred_fallthru
      _
    // Predicated region
    $region10: #{cnn_forward.1} parent=1 // pred_check
      _
    $region11: #{cnn_forward.1} parent=1 // pred_check_branch
      %37 = sbr.rel (0) target = $region13
    $region12: #{cnn_forward.1} parent=1 // pred_region
      %s39 = ssub.s32 192, 192
      %40 = vsyncadd [#allocation5], %s39
      %s42 = sshll.u32 [#allocation4], 4
      %s43 = int_to_ptr.vmem [resolvable:$true] %s42
      %45 = dma.hbm_to_vmem [thread:$0]  %s2, 192, %s43, [#allocation5]
    $region13: #{cnn_forward.1} parent=1 // pred_fallthru
      _
    // Predicated region
    $region14: #{cnn_forward.1} parent=1 // pred_check
      _
    $region15: #{cnn_forward.1} parent=1 // pred_check_branch
      %47 = sbr.rel (0) target = $region17
    $region16: #{cnn_forward.1} parent=1 // pred_region
      %s49 = ssub.s32 147456, 147456
      %50 = vsyncadd [#allocation5], %s49
      %s51 = sshll.u32 [#allocation6], 4
      %s52 = int_to_ptr.vmem [resolvable:$true] %s51
      %57 = dma.hbm_to_vmem [thread:$0]  %s3, 147456, %s52, [#allocation5], 768, 768, 48
    $region17: #{cnn_forward.1} parent=1 // pred_fallthru
      _
    // Predicated region
    $region18: #{cnn_forward.1} parent=1 // pred_check
      _
    $region19: #{cnn_forward.1} parent=1 // pred_check_branch
      %59 = sbr.rel (0) target = $region21
    $region20: #{cnn_forward.1} parent=1 // pred_region
      %s61 = ssub.s32 96, 96
      %62 = vsyncadd [#allocation8], %s61
      %s64 = sshll.u32 [#allocation7], 4
      %s65 = int_to_ptr.vmem [resolvable:$true] %s64
      %67 = dma.hbm_to_vmem [thread:$0]  %s4, 96, %s65, [#allocation8]
    $region21: #{cnn_forward.1} parent=1 // pred_fallthru
      _
    // Predicated region
    $region22: #{cnn_forward.1} parent=1 // pred_check
      _
    $region23: #{cnn_forward.1} parent=1 // pred_check_branch
      %69 = sbr.rel (0) target = $region25
    $region24: #{cnn_forward.1} parent=1 // pred_region
      %s71 = ssub.s32 24576, 24576
      %72 = vsyncadd [#allocation8], %s71
      %s73 = sshll.u32 [#allocation9], 4
      %s74 = int_to_ptr.vmem [resolvable:$true] %s73
      %79 = dma.hbm_to_vmem [thread:$0]  %s5, 24576, %s74, [#allocation8], 256, 256, 16
    $region25: #{cnn_forward.1} parent=1 // pred_fallthru
      _
    // Predicated region
    $region26: #{cnn_forward.1} parent=1 // pred_check
      _
    $region27: #{cnn_forward.1} parent=1 // pred_check_branch
      %81 = sbr.rel (0) target = $region29
    $region28: #{cnn_forward.1} parent=1 // pred_region
      %s83 = ssub.s32 32, 32
      %84 = vsyncadd [#allocation11], %s83
      %s86 = sshll.u32 [#allocation10], 4
      %s87 = int_to_ptr.vmem [resolvable:$true] %s86
      %89 = dma.hbm_to_vmem [thread:$0]  %s6, 32, %s87, [#allocation11]
    $region29: #{cnn_forward.1} parent=1 // pred_fallthru
      _
    // Predicated region
    $region30: #{cnn_forward.1} parent=1 // pred_check
      _
    $region31: #{cnn_forward.1} parent=1 // pred_check_branch
      %91 = sbr.rel (0) target = $region33
    $region32: #{cnn_forward.1} parent=1 // pred_region
      %s93 = ssub.s32 8192, 8192
      %94 = vsyncadd [#allocation11], %s93
      %s95 = sshll.u32 [#allocation12], 4
      %s96 = int_to_ptr.vmem [resolvable:$true] %s95
      %101 = dma.hbm_to_vmem [thread:$0]  %s7, 8192, %s96, [#allocation11], 256, 256, 16
    $region33: #{cnn_forward.1} parent=1 // pred_fallthru
      _
    // Predicated region
    $region34: #{cnn_forward.1} parent=1 // pred_check
      _
    $region35: #{cnn_forward.1} parent=1 // pred_check_branch
      %103 = sbr.rel (0) target = $region37
    $region36: #{cnn_forward.1} parent=1 // pred_region
      %s105 = ssub.s32 32, 32
      %106 = vsyncadd [#allocation14], %s105
      %s108 = sshll.u32 [#allocation13], 4
      %s109 = int_to_ptr.vmem [resolvable:$true] %s108
      %111 = dma.hbm_to_vmem [thread:$0]  %s8, 32, %s109, [#allocation14]
    $region37: #{cnn_forward.1} parent=1 // pred_fallthru
      _
    // Predicated region
    $region38: #{cnn_forward.1} parent=1 // pred_check
      _
    $region39: #{cnn_forward.1} parent=1 // pred_check_branch
      %113 = sbr.rel (0) target = $region41
    $region40: #{cnn_forward.1} parent=1 // pred_region
      %s115 = ssub.s32 4096, 4096
      %116 = vsyncadd [#allocation14], %s115
      %s117 = sshll.u32 [#allocation15], 4
      %s118 = int_to_ptr.vmem [resolvable:$true] %s117
      %123 = dma.hbm_to_vmem [thread:$0]  %s9, 4096, %s118, [#allocation14], 128, 128, 8
    $region41: #{cnn_forward.1} parent=1 // pred_fallthru
      _
    // Predicated region
    $region42: #{cnn_forward.1} parent=1 // pred_check
      _
    $region43: #{cnn_forward.1} parent=1 // pred_check_branch
      %125 = sbr.rel (0) target = $region45
    $region44: #{cnn_forward.1} parent=1 // pred_region
      %s127 = ssub.s32 16, 16
      %128 = vsyncadd [#allocation17], %s127
      %s130 = sshll.u32 [#allocation16], 4
      %s131 = int_to_ptr.vmem [resolvable:$true] %s130
      %133 = dma.hbm_to_vmem [thread:$0]  %s10, 16, %s131, [#allocation17]
    $region45: #{cnn_forward.1} parent=1 // pred_fallthru
      _
    // Predicated region
    $region46: #{cnn_forward.1} parent=1 // pred_check
      _
    $region47: #{cnn_forward.1} parent=1 // pred_check_branch
      %135 = sbr.rel (0) target = $region49
    $region48: #{cnn_forward.1} parent=1 // pred_region
      %136 = dma.done [#allocation3], 49152
    $region49: #{cnn_forward.1} parent=1 // pred_fallthru
      _
    // Predicated region
    $region50: #{cnn_forward.1} parent=1 // pred_check
      _
    $region51: #{cnn_forward.1} parent=1 // pred_check_branch
      %138 = sbr.rel (0) target = $region53
    $region52: #{cnn_forward.1} parent=1 // pred_region
      %139 = dma.done [#allocation5], 192
    $region53: #{cnn_forward.1} parent=1 // pred_fallthru
      _
    // Predicated region
    $region54: #{cnn_forward.1} parent=1 // pred_check
      _
    $region55: #{cnn_forward.1} parent=1 // pred_check_branch
      %141 = sbr.rel (0) target = $region57
    $region56: #{cnn_forward.1} parent=1 // pred_region
      %142 = dma.done [#allocation5], 147456
    $region57: #{cnn_forward.1} parent=1 // pred_fallthru
      _
    // Predicated region
    $region58: #{cnn_forward.1} parent=1 // pred_check
      _
    $region59: #{cnn_forward.1} parent=1 // pred_check_branch
      %144 = sbr.rel (0) target = $region61
    $region60: #{cnn_forward.1} parent=1 // pred_region
      %145 = dma.done [#allocation8], 96
    $region61: #{cnn_forward.1} parent=1 // pred_fallthru
      _
    // Predicated region
    $region62: #{cnn_forward.1} parent=1 // pred_check
      _
    $region63: #{cnn_forward.1} parent=1 // pred_check_branch
      %147 = sbr.rel (0) target = $region65
    $region64: #{cnn_forward.1} parent=1 // pred_region
      %148 = dma.done [#allocation8], 24576
    $region65: #{cnn_forward.1} parent=1 // pred_fallthru
      _
    // Predicated region
    $region66: #{cnn_forward.1} parent=1 // pred_check
      _
    $region67: #{cnn_forward.1} parent=1 // pred_check_branch
      %150 = sbr.rel (0) target = $region69
    $region68: #{cnn_forward.1} parent=1 // pred_region
      %151 = dma.done [#allocation11], 32
    $region69: #{cnn_forward.1} parent=1 // pred_fallthru
      _
    // Predicated region
    $region70: #{cnn_forward.1} parent=1 // pred_check
      _
    $region71: #{cnn_forward.1} parent=1 // pred_check_branch
      %153 = sbr.rel (0) target = $region73
    $region72: #{cnn_forward.1} parent=1 // pred_region
      %154 = dma.done [#allocation11], 8192
    $region73: #{cnn_forward.1} parent=1 // pred_fallthru
      _
    // Predicated region
    $region74: #{cnn_forward.1} parent=1 // pred_check
      _
    $region75: #{cnn_forward.1} parent=1 // pred_check_branch
      %156 = sbr.rel (0) target = $region77
    $region76: #{cnn_forward.1} parent=1 // pred_region
      %157 = dma.done [#allocation14], 32
    $region77: #{cnn_forward.1} parent=1 // pred_fallthru
      _
    // Predicated region
    $region78: #{cnn_forward.1} parent=1 // pred_check
      _
    $region79: #{cnn_forward.1} parent=1 // pred_check_branch
      %159 = sbr.rel (0) target = $region81
    $region80: #{cnn_forward.1} parent=1 // pred_region
      %160 = dma.done [#allocation14], 4096
    $region81: #{cnn_forward.1} parent=1 // pred_fallthru
      _
    // Predicated region
    $region82: #{cnn_forward.1} parent=1 // pred_check
      _
    $region83: #{cnn_forward.1} parent=1 // pred_check_branch
      %162 = sbr.rel (0) target = $region85
    $region84: #{cnn_forward.1} parent=1 // pred_region
      %163 = dma.done [#allocation17], 16
    $region85: #{cnn_forward.1} parent=1 // pred_fallthru
      _
    %v164 = vld [vmem:[%s0] sm:$0xff]
    %v165 = vld [vmem:[%s0 + $0x8] sm:$0xff]
    %v166 = vld [vmem:[#allocation2] sm:$0xff]
    %v167 = vld [vmem:[#allocation2 + $0x8] sm:$0xff]
    %v168 = vld [vmem:[#allocation2 + $0x10] sm:$0xff]
    %v169 = vld [vmem:[#allocation2 + $0x18] sm:$0xff]
    %v170 = vld [vmem:[#allocation2 + $0x20] sm:$0xff]
    %v171 = vld [vmem:[#allocation2 + $0x28] sm:$0xff]
    %v172 = vld [vmem:[#allocation2 + $0x30] sm:$0xff]
    %v173 = vld [vmem:[#allocation2 + $0x38] sm:$0xff]
    %v174 = vld [vmem:[#allocation2 + $0x40] sm:$0xff]
    %v175 = vld [vmem:[#allocation2 + $0x48] sm:$0xff]
    %v176 = vld [vmem:[#allocation2 + $0x50] sm:$0xff]
    %v177 = vld [vmem:[#allocation2 + $0x58] sm:$0xff]
    %v178 = vld [vmem:[#allocation2 + $0x60] sm:$0xff]
    %v179 = vld [vmem:[#allocation2 + $0x68] sm:$0xff]
    %v180 = vld [vmem:[#allocation2 + $0x70] sm:$0xff]
    %v181 = vld [vmem:[#allocation2 + $0x78] sm:$0xff]
    %v182 = vld [vmem:[#allocation2 + $0x80] sm:$0xff]
    %v183 = vld [vmem:[#allocation2 + $0x88] sm:$0xff]
    %v184 = vld [vmem:[#allocation2 + $0x90] sm:$0xff]
    %v185 = vld [vmem:[#allocation2 + $0x98] sm:$0xff]
    %v186 = vld [vmem:[#allocation2 + $0xa0] sm:$0xff]
    %v187 = vld [vmem:[#allocation2 + $0xa8] sm:$0xff]
    %v188 = vld [vmem:[#allocation2 + $0xb0] sm:$0xff]
    %v189 = vld [vmem:[#allocation2 + $0xb8] sm:$0xff]
    %v190 = vld [vmem:[#allocation2 + $0xc0] sm:$0xff]
    %v191 = vld [vmem:[#allocation2 + $0xc8] sm:$0xff]
    %v192 = vld [vmem:[#allocation2 + $0xd0] sm:$0xff]
    %v193 = vld [vmem:[#allocation2 + $0xd8] sm:$0xff]
    %v194 = vld [vmem:[#allocation2 + $0xe0] sm:$0xff]
    %v195 = vld [vmem:[#allocation2 + $0xe8] sm:$0xff]
    %v196 = vld [vmem:[#allocation2 + $0xf0] sm:$0xff]
    %v197 = vld [vmem:[#allocation2 + $0xf8] sm:$0xff]
    %v198 = vld [vmem:[#allocation2 + $0x100] sm:$0xff]
    %v199 = vld [vmem:[#allocation2 + $0x108] sm:$0xff]
    %v200 = vld [vmem:[#allocation2 + $0x110] sm:$0xff]
    %v201 = vld [vmem:[#allocation2 + $0x118] sm:$0xff]
    %v202 = vld [vmem:[#allocation2 + $0x120] sm:$0xff]
    %v203 = vld [vmem:[#allocation2 + $0x128] sm:$0xff]
    %v204 = vld [vmem:[#allocation2 + $0x130] sm:$0xff]
    %v205 = vld [vmem:[#allocation2 + $0x138] sm:$0xff]
    %v206 = vld [vmem:[#allocation2 + $0x140] sm:$0xff]
    %v207 = vld [vmem:[#allocation2 + $0x148] sm:$0xff]
    %v208 = vld [vmem:[#allocation2 + $0x150] sm:$0xff]
    %v209 = vld [vmem:[#allocation2 + $0x158] sm:$0xff]
    %v210 = vld [vmem:[#allocation2 + $0x160] sm:$0xff]
    %v211 = vld [vmem:[#allocation2 + $0x168] sm:$0xff]
    %v212 = vld [vmem:[#allocation2 + $0x170] sm:$0xff]
    %v213 = vld [vmem:[#allocation2 + $0x178] sm:$0xff]
    %v214 = vld [vmem:[#allocation2 + $0x180] sm:$0xff]
    %v215 = vld [vmem:[#allocation2 + $0x188] sm:$0xff]
    %v216 = vld [vmem:[#allocation2 + $0x190] sm:$0xff]
    %v217 = vld [vmem:[#allocation2 + $0x198] sm:$0xff]
    %v218 = vld [vmem:[#allocation2 + $0x1a0] sm:$0xff]
    %v219 = vld [vmem:[#allocation2 + $0x1a8] sm:$0xff]
    %v220 = vld [vmem:[#allocation2 + $0x1b0] sm:$0xff]
    %v221 = vld [vmem:[#allocation2 + $0x1b8] sm:$0xff]
    %v222 = vld [vmem:[#allocation2 + $0x1c0] sm:$0xff]
    %v223 = vld [vmem:[#allocation2 + $0x1c8] sm:$0xff]
    %v224 = vld [vmem:[#allocation2 + $0x1d0] sm:$0xff]
    %v225 = vld [vmem:[#allocation2 + $0x1d8] sm:$0xff]
    %v226 = vld [vmem:[#allocation2 + $0x1e0] sm:$0xff]
    %v227 = vld [vmem:[#allocation2 + $0x1e8] sm:$0xff]
    %v228 = vld [vmem:[#allocation2 + $0x1f0] sm:$0xff]
    %v229 = vld [vmem:[#allocation2 + $0x1f8] sm:$0xff]
    %v230 = vld [vmem:[#allocation2 + $0x200] sm:$0xff]
    %v231 = vld [vmem:[#allocation2 + $0x208] sm:$0xff]
    %v232 = vld [vmem:[#allocation2 + $0x210] sm:$0xff]
    %v233 = vld [vmem:[#allocation2 + $0x218] sm:$0xff]
    %v234 = vld [vmem:[#allocation2 + $0x220] sm:$0xff]
    %v235 = vld [vmem:[#allocation2 + $0x228] sm:$0xff]
    %v236 = vld [vmem:[#allocation2 + $0x230] sm:$0xff]
    %v237 = vld [vmem:[#allocation2 + $0x238] sm:$0xff]
    %v238 = vld [vmem:[#allocation2 + $0x240] sm:$0xff]
    %v239 = vld [vmem:[#allocation2 + $0x248] sm:$0xff]
    %v240 = vld [vmem:[#allocation2 + $0x250] sm:$0xff]
    %v241 = vld [vmem:[#allocation2 + $0x258] sm:$0xff]
    %v242 = vld [vmem:[#allocation2 + $0x260] sm:$0xff]
    %v243 = vld [vmem:[#allocation2 + $0x268] sm:$0xff]
    %v244 = vld [vmem:[#allocation2 + $0x270] sm:$0xff]
    %v245 = vld [vmem:[#allocation2 + $0x278] sm:$0xff]
    %v246 = vld [vmem:[#allocation2 + $0x280] sm:$0xff]
    %v247 = vld [vmem:[#allocation2 + $0x288] sm:$0xff]
    %v248 = vld [vmem:[#allocation2 + $0x290] sm:$0xff]
    %v249 = vld [vmem:[#allocation2 + $0x298] sm:$0xff]
    %v250 = vld [vmem:[#allocation2 + $0x2a0] sm:$0xff]
    %v251 = vld [vmem:[#allocation2 + $0x2a8] sm:$0xff]
    %v252 = vld [vmem:[#allocation2 + $0x2b0] sm:$0xff]
    %v253 = vld [vmem:[#allocation2 + $0x2b8] sm:$0xff]
    %v254 = vld [vmem:[#allocation2 + $0x2c0] sm:$0xff]
    %v255 = vld [vmem:[#allocation2 + $0x2c8] sm:$0xff]
    %v256 = vld [vmem:[#allocation2 + $0x2d0] sm:$0xff]
    %v257 = vld [vmem:[#allocation2 + $0x2d8] sm:$0xff]
    %v258 = vld [vmem:[#allocation2 + $0x2e0] sm:$0xff]
    %v259 = vld [vmem:[#allocation2 + $0x2e8] sm:$0xff]
    %v260 = vld [vmem:[#allocation2 + $0x2f0] sm:$0xff]
    %v261 = vld [vmem:[#allocation2 + $0x2f8] sm:$0xff]
    %v262 = vld [vmem:[#allocation2 + $0x300] sm:$0xff]
    %v263 = vld [vmem:[#allocation2 + $0x308] sm:$0xff]
    %v264 = vld [vmem:[#allocation2 + $0x310] sm:$0xff]
    %v265 = vld [vmem:[#allocation2 + $0x318] sm:$0xff]
    %v266 = vld [vmem:[#allocation2 + $0x320] sm:$0xff]
    %v267 = vld [vmem:[#allocation2 + $0x328] sm:$0xff]
    %v268 = vld [vmem:[#allocation2 + $0x330] sm:$0xff]
    %v269 = vld [vmem:[#allocation2 + $0x338] sm:$0xff]
    %v270 = vld [vmem:[#allocation2 + $0x340] sm:$0xff]
    %v271 = vld [vmem:[#allocation2 + $0x348] sm:$0xff]
    %v272 = vld [vmem:[#allocation2 + $0x350] sm:$0xff]
    %v273 = vld [vmem:[#allocation2 + $0x358] sm:$0xff]
    %v274 = vld [vmem:[#allocation2 + $0x360] sm:$0xff]
    %v275 = vld [vmem:[#allocation2 + $0x368] sm:$0xff]
    %v276 = vld [vmem:[#allocation2 + $0x370] sm:$0xff]
    %v277 = vld [vmem:[#allocation2 + $0x378] sm:$0xff]
    %v278 = vld [vmem:[#allocation2 + $0x380] sm:$0xff]
    %v279 = vld [vmem:[#allocation2 + $0x388] sm:$0xff]
    %v280 = vld [vmem:[#allocation2 + $0x390] sm:$0xff]
    %v281 = vld [vmem:[#allocation2 + $0x398] sm:$0xff]
    %v282 = vld [vmem:[#allocation2 + $0x3a0] sm:$0xff]
    %v283 = vld [vmem:[#allocation2 + $0x3a8] sm:$0xff]
    %v284 = vld [vmem:[#allocation2 + $0x3b0] sm:$0xff]
    %v285 = vld [vmem:[#allocation2 + $0x3b8] sm:$0xff]
    %v286 = vld [vmem:[#allocation2 + $0x3c0] sm:$0xff]
    %v287 = vld [vmem:[#allocation2 + $0x3c8] sm:$0xff]
    %v288 = vld [vmem:[#allocation2 + $0x3d0] sm:$0xff]
    %v289 = vld [vmem:[#allocation2 + $0x3d8] sm:$0xff]
    %v290 = vld [vmem:[#allocation2 + $0x3e0] sm:$0xff]
    %v291 = vld [vmem:[#allocation2 + $0x3e8] sm:$0xff]
    %v292 = vld [vmem:[#allocation2 + $0x3f0] sm:$0xff]
    %v293 = vld [vmem:[#allocation2 + $0x3f8] sm:$0xff]
    %v294 = vld [vmem:[#allocation2 + $0x400] sm:$0xff]
    %v295 = vld [vmem:[#allocation2 + $0x408] sm:$0xff]
    %v296 = vld [vmem:[#allocation2 + $0x410] sm:$0xff]
    %v297 = vld [vmem:[#allocation2 + $0x418] sm:$0xff]
    %v298 = vld [vmem:[#allocation2 + $0x420] sm:$0xff]
    %v299 = vld [vmem:[#allocation2 + $0x428] sm:$0xff]
    %v300 = vld [vmem:[#allocation2 + $0x430] sm:$0xff]
    %v301 = vld [vmem:[#allocation2 + $0x438] sm:$0xff]
    %v302 = vld [vmem:[#allocation2 + $0x440] sm:$0xff]
    %v303 = vld [vmem:[#allocation2 + $0x448] sm:$0xff]
    %v304 = vld [vmem:[#allocation2 + $0x450] sm:$0xff]
    %v305 = vld [vmem:[#allocation2 + $0x458] sm:$0xff]
    %v306 = vld [vmem:[#allocation2 + $0x460] sm:$0xff]
    %v307 = vld [vmem:[#allocation2 + $0x468] sm:$0xff]
    %v308 = vld [vmem:[#allocation2 + $0x470] sm:$0xff]
    %v309 = vld [vmem:[#allocation2 + $0x478] sm:$0xff]
    %v310 = vld [vmem:[#allocation2 + $0x480] sm:$0xff]
    %v311 = vld [vmem:[#allocation2 + $0x488] sm:$0xff]
    %v312 = vld [vmem:[#allocation2 + $0x490] sm:$0xff]
    %v313 = vld [vmem:[#allocation2 + $0x498] sm:$0xff]
    %v314 = vld [vmem:[#allocation2 + $0x4a0] sm:$0xff]
    %v315 = vld [vmem:[#allocation2 + $0x4a8] sm:$0xff]
    %v316 = vld [vmem:[#allocation2 + $0x4b0] sm:$0xff]
    %v317 = vld [vmem:[#allocation2 + $0x4b8] sm:$0xff]
    %v318 = vld [vmem:[#allocation2 + $0x4c0] sm:$0xff]
    %v319 = vld [vmem:[#allocation2 + $0x4c8] sm:$0xff]
    %v320 = vld [vmem:[#allocation2 + $0x4d0] sm:$0xff]
    %v321 = vld [vmem:[#allocation2 + $0x4d8] sm:$0xff]
    %v322 = vld [vmem:[#allocation2 + $0x4e0] sm:$0xff]
    %v323 = vld [vmem:[#allocation2 + $0x4e8] sm:$0xff]
    %v324 = vld [vmem:[#allocation2 + $0x4f0] sm:$0xff]
    %v325 = vld [vmem:[#allocation2 + $0x4f8] sm:$0xff]
    %v326 = vld [vmem:[#allocation2 + $0x500] sm:$0xff]
    %v327 = vld [vmem:[#allocation2 + $0x508] sm:$0xff]
    %v328 = vld [vmem:[#allocation2 + $0x510] sm:$0xff]
    %v329 = vld [vmem:[#allocation2 + $0x518] sm:$0xff]
    %v330 = vld [vmem:[#allocation2 + $0x520] sm:$0xff]
    %v331 = vld [vmem:[#allocation2 + $0x528] sm:$0xff]
    %v332 = vld [vmem:[#allocation2 + $0x530] sm:$0xff]
    %v333 = vld [vmem:[#allocation2 + $0x538] sm:$0xff]
    %v334 = vld [vmem:[#allocation2 + $0x540] sm:$0xff]
    %v335 = vld [vmem:[#allocation2 + $0x548] sm:$0xff]
    %v336 = vld [vmem:[#allocation2 + $0x550] sm:$0xff]
    %v337 = vld [vmem:[#allocation2 + $0x558] sm:$0xff]
    %v338 = vld [vmem:[#allocation2 + $0x560] sm:$0xff]
    %v339 = vld [vmem:[#allocation2 + $0x568] sm:$0xff]
    %v340 = vld [vmem:[#allocation2 + $0x570] sm:$0xff]
    %v341 = vld [vmem:[#allocation2 + $0x578] sm:$0xff]
    %v342 = vld [vmem:[#allocation2 + $0x580] sm:$0xff]
    %v343 = vld [vmem:[#allocation2 + $0x588] sm:$0xff]
    %v344 = vld [vmem:[#allocation2 + $0x590] sm:$0xff]
    %v345 = vld [vmem:[#allocation2 + $0x598] sm:$0xff]
    %v346 = vld [vmem:[#allocation2 + $0x5a0] sm:$0xff]
    %v347 = vld [vmem:[#allocation2 + $0x5a8] sm:$0xff]
    %v348 = vld [vmem:[#allocation2 + $0x5b0] sm:$0xff]
    %v349 = vld [vmem:[#allocation2 + $0x5b8] sm:$0xff]
    %v350 = vld [vmem:[#allocation2 + $0x5c0] sm:$0xff]
    %v351 = vld [vmem:[#allocation2 + $0x5c8] sm:$0xff]
    %v352 = vld [vmem:[#allocation2 + $0x5d0] sm:$0xff]
    %v353 = vld [vmem:[#allocation2 + $0x5d8] sm:$0xff]
    %v354 = vld [vmem:[#allocation2 + $0x5e0] sm:$0xff]
    %v355 = vld [vmem:[#allocation2 + $0x5e8] sm:$0xff]
    %v356 = vld [vmem:[#allocation2 + $0x5f0] sm:$0xff]
    %v357 = vld [vmem:[#allocation2 + $0x5f8] sm:$0xff]
    %v358 = vld [vmem:[#allocation2 + $0x600] sm:$0xff]
    %v359 = vld [vmem:[#allocation2 + $0x608] sm:$0xff]
    %v360 = vld [vmem:[#allocation2 + $0x610] sm:$0xff]
    %v361 = vld [vmem:[#allocation2 + $0x618] sm:$0xff]
    %v362 = vld [vmem:[#allocation2 + $0x620] sm:$0xff]
    %v363 = vld [vmem:[#allocation2 + $0x628] sm:$0xff]
    %v364 = vld [vmem:[#allocation2 + $0x630] sm:$0xff]
    %v365 = vld [vmem:[#allocation2 + $0x638] sm:$0xff]
    %v366 = vld [vmem:[#allocation2 + $0x640] sm:$0xff]
    %v367 = vld [vmem:[#allocation2 + $0x648] sm:$0xff]
    %v368 = vld [vmem:[#allocation2 + $0x650] sm:$0xff]
    %v369 = vld [vmem:[#allocation2 + $0x658] sm:$0xff]
    %v370 = vld [vmem:[#allocation2 + $0x660] sm:$0xff]
    %v371 = vld [vmem:[#allocation2 + $0x668] sm:$0xff]
    %v372 = vld [vmem:[#allocation2 + $0x670] sm:$0xff]
    %v373 = vld [vmem:[#allocation2 + $0x678] sm:$0xff]
    %v374 = vld [vmem:[#allocation2 + $0x680] sm:$0xff]
    %v375 = vld [vmem:[#allocation2 + $0x688] sm:$0xff]
    %v376 = vld [vmem:[#allocation2 + $0x690] sm:$0xff]
    %v377 = vld [vmem:[#allocation2 + $0x698] sm:$0xff]
    %v378 = vld [vmem:[#allocation2 + $0x6a0] sm:$0xff]
    %v379 = vld [vmem:[#allocation2 + $0x6a8] sm:$0xff]
    %v380 = vld [vmem:[#allocation2 + $0x6b0] sm:$0xff]
    %v381 = vld [vmem:[#allocation2 + $0x6b8] sm:$0xff]
    %v382 = vld [vmem:[#allocation2 + $0x6c0] sm:$0xff]
    %v383 = vld [vmem:[#allocation2 + $0x6c8] sm:$0xff]
    %v384 = vld [vmem:[#allocation2 + $0x6d0] sm:$0xff]
    %v385 = vld [vmem:[#allocation2 + $0x6d8] sm:$0xff]
    %v386 = vld [vmem:[#allocation2 + $0x6e0] sm:$0xff]
    %v387 = vld [vmem:[#allocation2 + $0x6e8] sm:$0xff]
    %v388 = vld [vmem:[#allocation2 + $0x6f0] sm:$0xff]
    %v389 = vld [vmem:[#allocation2 + $0x6f8] sm:$0xff]
    %v390 = vld [vmem:[#allocation2 + $0x700] sm:$0xff]
    %v391 = vld [vmem:[#allocation2 + $0x708] sm:$0xff]
    %v392 = vld [vmem:[#allocation2 + $0x710] sm:$0xff]
    %v393 = vld [vmem:[#allocation2 + $0x718] sm:$0xff]
    %v394 = vld [vmem:[#allocation2 + $0x720] sm:$0xff]
    %v395 = vld [vmem:[#allocation2 + $0x728] sm:$0xff]
    %v396 = vld [vmem:[#allocation2 + $0x730] sm:$0xff]
    %v397 = vld [vmem:[#allocation2 + $0x738] sm:$0xff]
    %v398 = vld [vmem:[#allocation2 + $0x740] sm:$0xff]
    %v399 = vld [vmem:[#allocation2 + $0x748] sm:$0xff]
    %v400 = vld [vmem:[#allocation2 + $0x750] sm:$0xff]
    %v401 = vld [vmem:[#allocation2 + $0x758] sm:$0xff]
    %v402 = vld [vmem:[#allocation2 + $0x760] sm:$0xff]
    %v403 = vld [vmem:[#allocation2 + $0x768] sm:$0xff]
    %v404 = vld [vmem:[#allocation2 + $0x770] sm:$0xff]
    %v405 = vld [vmem:[#allocation2 + $0x778] sm:$0xff]
    %v406 = vld [vmem:[#allocation2 + $0x780] sm:$0xff]
    %v407 = vld [vmem:[#allocation2 + $0x788] sm:$0xff]
    %v408 = vld [vmem:[#allocation2 + $0x790] sm:$0xff]
    %v409 = vld [vmem:[#allocation2 + $0x798] sm:$0xff]
    %v410 = vld [vmem:[#allocation2 + $0x7a0] sm:$0xff]
    %v411 = vld [vmem:[#allocation2 + $0x7a8] sm:$0xff]
    %v412 = vld [vmem:[#allocation2 + $0x7b0] sm:$0xff]
    %v413 = vld [vmem:[#allocation2 + $0x7b8] sm:$0xff]
    %v414 = vld [vmem:[#allocation2 + $0x7c0] sm:$0xff]
    %v415 = vld [vmem:[#allocation2 + $0x7c8] sm:$0xff]
    %v416 = vld [vmem:[#allocation2 + $0x7d0] sm:$0xff]
    %v417 = vld [vmem:[#allocation2 + $0x7d8] sm:$0xff]
    %v418 = vld [vmem:[#allocation2 + $0x7e0] sm:$0xff]
    %v419 = vld [vmem:[#allocation2 + $0x7e8] sm:$0xff]
    %v420 = vld [vmem:[#allocation2 + $0x7f0] sm:$0xff]
    %v421 = vld [vmem:[#allocation2 + $0x7f8] sm:$0xff]
    %v422 = vld [vmem:[#allocation2 + $0x800] sm:$0xff]
    %v423 = vld [vmem:[#allocation2 + $0x808] sm:$0xff]
    %v424 = vld [vmem:[#allocation2 + $0x810] sm:$0xff]
    %v425 = vld [vmem:[#allocation2 + $0x818] sm:$0xff]
    %v426 = vld [vmem:[#allocation2 + $0x820] sm:$0xff]
    %v427 = vld [vmem:[#allocation2 + $0x828] sm:$0xff]
    %v428 = vld [vmem:[#allocation2 + $0x830] sm:$0xff]
    %v429 = vld [vmem:[#allocation2 + $0x838] sm:$0xff]
    %v430 = vld [vmem:[#allocation2 + $0x840] sm:$0xff]
    %v431 = vld [vmem:[#allocation2 + $0x848] sm:$0xff]
    %v432 = vld [vmem:[#allocation2 + $0x850] sm:$0xff]
    %v433 = vld [vmem:[#allocation2 + $0x858] sm:$0xff]
    %v434 = vld [vmem:[#allocation2 + $0x860] sm:$0xff]
    %v435 = vld [vmem:[#allocation2 + $0x868] sm:$0xff]
    %v436 = vld [vmem:[#allocation2 + $0x870] sm:$0xff]
    %v437 = vld [vmem:[#allocation2 + $0x878] sm:$0xff]
    %v438 = vld [vmem:[#allocation2 + $0x880] sm:$0xff]
    %v439 = vld [vmem:[#allocation2 + $0x888] sm:$0xff]
    %v440 = vld [vmem:[#allocation2 + $0x890] sm:$0xff]
    %v441 = vld [vmem:[#allocation2 + $0x898] sm:$0xff]
    %v442 = vld [vmem:[#allocation2 + $0x8a0] sm:$0xff]
    %v443 = vld [vmem:[#allocation2 + $0x8a8] sm:$0xff]
    %v444 = vld [vmem:[#allocation2 + $0x8b0] sm:$0xff]
    %v445 = vld [vmem:[#allocation2 + $0x8b8] sm:$0xff]
    %v446 = vld [vmem:[#allocation2 + $0x8c0] sm:$0xff]
    %v447 = vld [vmem:[#allocation2 + $0x8c8] sm:$0xff]
    %v448 = vld [vmem:[#allocation2 + $0x8d0] sm:$0xff]
    %v449 = vld [vmem:[#allocation2 + $0x8d8] sm:$0xff]
    %v450 = vld [vmem:[#allocation2 + $0x8e0] sm:$0xff]
    %v451 = vld [vmem:[#allocation2 + $0x8e8] sm:$0xff]
    %v452 = vld [vmem:[#allocation2 + $0x8f0] sm:$0xff]
    %v453 = vld [vmem:[#allocation2 + $0x8f8] sm:$0xff]
    %v454 = vld [vmem:[#allocation2 + $0x900] sm:$0xff]
    %v455 = vld [vmem:[#allocation2 + $0x908] sm:$0xff]
    %v456 = vld [vmem:[#allocation2 + $0x910] sm:$0xff]
    %v457 = vld [vmem:[#allocation2 + $0x918] sm:$0xff]
    %v458 = vld [vmem:[#allocation2 + $0x920] sm:$0xff]
    %v459 = vld [vmem:[#allocation2 + $0x928] sm:$0xff]
    %v460 = vld [vmem:[#allocation2 + $0x930] sm:$0xff]
    %v461 = vld [vmem:[#allocation2 + $0x938] sm:$0xff]
    %v462 = vld [vmem:[#allocation2 + $0x940] sm:$0xff]
    %v463 = vld [vmem:[#allocation2 + $0x948] sm:$0xff]
    %v464 = vld [vmem:[#allocation2 + $0x950] sm:$0xff]
    %v465 = vld [vmem:[#allocation2 + $0x958] sm:$0xff]
    %v466 = vld [vmem:[#allocation2 + $0x960] sm:$0xff]
    %v467 = vld [vmem:[#allocation2 + $0x968] sm:$0xff]
    %v468 = vld [vmem:[#allocation2 + $0x970] sm:$0xff]
    %v469 = vld [vmem:[#allocation2 + $0x978] sm:$0xff]
    %v470 = vld [vmem:[#allocation2 + $0x980] sm:$0xff]
    %v471 = vld [vmem:[#allocation2 + $0x988] sm:$0xff]
    %v472 = vld [vmem:[#allocation2 + $0x990] sm:$0xff]
    %v473 = vld [vmem:[#allocation2 + $0x998] sm:$0xff]
    %v474 = vld [vmem:[#allocation2 + $0x9a0] sm:$0xff]
    %v475 = vld [vmem:[#allocation2 + $0x9a8] sm:$0xff]
    %v476 = vld [vmem:[#allocation2 + $0x9b0] sm:$0xff]
    %v477 = vld [vmem:[#allocation2 + $0x9b8] sm:$0xff]
    %v478 = vld [vmem:[#allocation2 + $0x9c0] sm:$0xff]
    %v479 = vld [vmem:[#allocation2 + $0x9c8] sm:$0xff]
    %v480 = vld [vmem:[#allocation2 + $0x9d0] sm:$0xff]
    %v481 = vld [vmem:[#allocation2 + $0x9d8] sm:$0xff]
    %v482 = vld [vmem:[#allocation2 + $0x9e0] sm:$0xff]
    %v483 = vld [vmem:[#allocation2 + $0x9e8] sm:$0xff]
    %v484 = vld [vmem:[#allocation2 + $0x9f0] sm:$0xff]
    %v485 = vld [vmem:[#allocation2 + $0x9f8] sm:$0xff]
    %v486 = vld [vmem:[#allocation2 + $0xa00] sm:$0xff]
    %v487 = vld [vmem:[#allocation2 + $0xa08] sm:$0xff]
    %v488 = vld [vmem:[#allocation2 + $0xa10] sm:$0xff]
    %v489 = vld [vmem:[#allocation2 + $0xa18] sm:$0xff]
    %v490 = vld [vmem:[#allocation2 + $0xa20] sm:$0xff]
    %v491 = vld [vmem:[#allocation2 + $0xa28] sm:$0xff]
    %v492 = vld [vmem:[#allocation2 + $0xa30] sm:$0xff]
    %v493 = vld [vmem:[#allocation2 + $0xa38] sm:$0xff]
    %v494 = vld [vmem:[#allocation2 + $0xa40] sm:$0xff]
    %v495 = vld [vmem:[#allocation2 + $0xa48] sm:$0xff]
    %v496 = vld [vmem:[#allocation2 + $0xa50] sm:$0xff]
    %v497 = vld [vmem:[#allocation2 + $0xa58] sm:$0xff]
    %v498 = vld [vmem:[#allocation2 + $0xa60] sm:$0xff]
    %v499 = vld [vmem:[#allocation2 + $0xa68] sm:$0xff]
    %v500 = vld [vmem:[#allocation2 + $0xa70] sm:$0xff]
    %v501 = vld [vmem:[#allocation2 + $0xa78] sm:$0xff]
    %v502 = vld [vmem:[#allocation2 + $0xa80] sm:$0xff]
    %v503 = vld [vmem:[#allocation2 + $0xa88] sm:$0xff]
    %v504 = vld [vmem:[#allocation2 + $0xa90] sm:$0xff]
    %v505 = vld [vmem:[#allocation2 + $0xa98] sm:$0xff]
    %v506 = vld [vmem:[#allocation2 + $0xaa0] sm:$0xff]
    %v507 = vld [vmem:[#allocation2 + $0xaa8] sm:$0xff]
    %v508 = vld [vmem:[#allocation2 + $0xab0] sm:$0xff]
    %v509 = vld [vmem:[#allocation2 + $0xab8] sm:$0xff]
    %v510 = vld [vmem:[#allocation2 + $0xac0] sm:$0xff]
    %v511 = vld [vmem:[#allocation2 + $0xac8] sm:$0xff]
    %v512 = vld [vmem:[#allocation2 + $0xad0] sm:$0xff]
    %v513 = vld [vmem:[#allocation2 + $0xad8] sm:$0xff]
    %v514 = vld [vmem:[#allocation2 + $0xae0] sm:$0xff]
    %v515 = vld [vmem:[#allocation2 + $0xae8] sm:$0xff]
    %v516 = vld [vmem:[#allocation2 + $0xaf0] sm:$0xff]
    %v517 = vld [vmem:[#allocation2 + $0xaf8] sm:$0xff]
    %v518 = vld [vmem:[#allocation2 + $0xb00] sm:$0xff]
    %v519 = vld [vmem:[#allocation2 + $0xb08] sm:$0xff]
    %v520 = vld [vmem:[#allocation2 + $0xb10] sm:$0xff]
    %v521 = vld [vmem:[#allocation2 + $0xb18] sm:$0xff]
    %v522 = vld [vmem:[#allocation2 + $0xb20] sm:$0xff]
    %v523 = vld [vmem:[#allocation2 + $0xb28] sm:$0xff]
    %v524 = vld [vmem:[#allocation2 + $0xb30] sm:$0xff]
    %v525 = vld [vmem:[#allocation2 + $0xb38] sm:$0xff]
    %v526 = vld [vmem:[#allocation2 + $0xb40] sm:$0xff]
    %v527 = vld [vmem:[#allocation2 + $0xb48] sm:$0xff]
    %v528 = vld [vmem:[#allocation2 + $0xb50] sm:$0xff]
    %v529 = vld [vmem:[#allocation2 + $0xb58] sm:$0xff]
    %v530 = vld [vmem:[#allocation2 + $0xb60] sm:$0xff]
    %v531 = vld [vmem:[#allocation2 + $0xb68] sm:$0xff]
    %v532 = vld [vmem:[#allocation2 + $0xb70] sm:$0xff]
    %v533 = vld [vmem:[#allocation2 + $0xb78] sm:$0xff]
    %v534 = vld [vmem:[#allocation2 + $0xb80] sm:$0xff]
    %v535 = vld [vmem:[#allocation2 + $0xb88] sm:$0xff]
    %v536 = vld [vmem:[#allocation2 + $0xb90] sm:$0xff]
    %v537 = vld [vmem:[#allocation2 + $0xb98] sm:$0xff]
    %v538 = vld [vmem:[#allocation2 + $0xba0] sm:$0xff]
    %v539 = vld [vmem:[#allocation2 + $0xba8] sm:$0xff]
    %v540 = vld [vmem:[#allocation2 + $0xbb0] sm:$0xff]
    %v541 = vld [vmem:[#allocation2 + $0xbb8] sm:$0xff]
    %v542 = vld [vmem:[#allocation2 + $0xbc0] sm:$0xff]
    %v543 = vld [vmem:[#allocation2 + $0xbc8] sm:$0xff]
    %v544 = vld [vmem:[#allocation2 + $0xbd0] sm:$0xff]
    %v545 = vld [vmem:[#allocation2 + $0xbd8] sm:$0xff]
    %v546 = vld [vmem:[#allocation2 + $0xbe0] sm:$0xff]
    %v547 = vld [vmem:[#allocation2 + $0xbe8] sm:$0xff]
    %v548 = vld [vmem:[#allocation2 + $0xbf0] sm:$0xff]
    %v549 = vld [vmem:[#allocation2 + $0xbf8] sm:$0xff]
    %v550 = vld [vmem:[#allocation4] sm:$0xff]
    %v551 = vld [vmem:[#allocation4 + $0x8] sm:$0xf]
    %v554 = vlaneseq
    %v555 = vshrl.u32 %v554, 7
    %v556 = vsub.s32 0, %v555
    %v557 = vrot.slane %v550, %v556
    %v558 = vlaneseq
    %v559 = vshrl.u32 %v558, 7
    %v560 = vsub.s32 1, %v559
    %v561 = vrot.slane %v550, %v560
    %v562 = vlaneseq
    %v563 = vshrl.u32 %v562, 7
    %v564 = vsub.s32 2, %v563
    %v565 = vrot.slane %v550, %v564
    %v566 = vlaneseq
    %v567 = vshrl.u32 %v566, 7
    %v568 = vsub.s32 3, %v567
    %v569 = vrot.slane %v550, %v568
    %v570 = vlaneseq
    %v571 = vshrl.u32 %v570, 7
    %v572 = vsub.s32 4, %v571
    %v573 = vrot.slane %v550, %v572
    %v574 = vlaneseq
    %v575 = vshrl.u32 %v574, 7
    %v576 = vsub.s32 5, %v575
    %v577 = vrot.slane %v550, %v576
    %v578 = vlaneseq
    %v579 = vshrl.u32 %v578, 7
    %v580 = vsub.s32 6, %v579
    %v581 = vrot.slane %v550, %v580
    %v582 = vlaneseq
    %v583 = vshrl.u32 %v582, 7
    %v584 = vsub.s32 7, %v583
    %v585 = vrot.slane %v550, %v584
    %v586 = vlaneseq
    %v587 = vshrl.u32 %v586, 7
    %v588 = vsub.s32 0, %v587
    %v589 = vrot.slane %v551, %v588
    %v590 = vlaneseq
    %v591 = vshrl.u32 %v590, 7
    %v592 = vsub.s32 1, %v591
    %v593 = vrot.slane %v551, %v592
    %v594 = vlaneseq
    %v595 = vshrl.u32 %v594, 7
    %v596 = vsub.s32 2, %v595
    %v597 = vrot.slane %v551, %v596
    %v598 = vlaneseq
    %v599 = vshrl.u32 %v598, 7
    %v600 = vsub.s32 3, %v599
    %v601 = vrot.slane %v551, %v600
    %614 = vmatprep.subr.mxu0 %v167
    %615 = vmatpush1.msra.mxu0 %v166
    %616 = vmatprep.subr.mxu0 %v179
    %617 = vmatpush1.msra.mxu0 %v178
    %618 = vmatprep.subr.mxu0 %v191
    %619 = vmatpush1.msra.mxu0 %v190
    %620 = vmatprep.subr.mxu0 %v203
    %621 = vmatpush1.msra.mxu0 %v202
    %622 = vmatprep.subr.mxu0 %v215
    %623 = vmatpush1.msra.mxu0 %v214
    %624 = vmatprep.subr.mxu0 %v227
    %625 = vmatpush1.msra.mxu0 %v226
    %626 = vmatprep.subr.mxu0 %v239
    %627 = vmatpush1.msra.mxu0 %v238
    %628 = vmatprep.subr.mxu0 %v251
    %629 = vmatpush1.msra.mxu0 %v250
    %630 = vmatprep.subr.mxu0 %v263
    %631 = vmatpush1.msra.mxu0 %v262
    %632 = vmatprep.subr.mxu0 %v275
    %633 = vmatpush1.msra.mxu0 %v274
    %634 = vmatprep.subr.mxu0 %v287
    %635 = vmatpush1.msra.mxu0 %v286
    %636 = vmatprep.subr.mxu0 %v299
    %637 = vmatpush1.msra.mxu0 %v298
    %638 = vmatprep.subr.mxu0 %v311
    %639 = vmatpush1.msra.mxu0 %v310
    %640 = vmatprep.subr.mxu0 %v323
    %641 = vmatpush1.msra.mxu0 %v322
    %642 = vmatprep.subr.mxu0 %v335
    %643 = vmatpush1.msra.mxu0 %v334
    %644 = vmatprep.subr.mxu0 %v347
    %645 = vmatpush1.msra.mxu0 %v346
    %646 = vmatprep.subr.mxu0 %v359
    %647 = vmatpush1.msra.mxu0 %v358
    %648 = vmatprep.subr.mxu0 %v371
    %649 = vmatpush1.msra.mxu0 %v370
    %650 = vmatprep.subr.mxu0 %v383
    %651 = vmatpush1.msra.mxu0 %v382
    %652 = vmatprep.subr.mxu0 %v395
    %653 = vmatpush1.msra.mxu0 %v394
    %654 = vmatprep.subr.mxu0 %v407
    %655 = vmatpush1.msra.mxu0 %v406
    %656 = vmatprep.subr.mxu0 %v419
    %657 = vmatpush1.msra.mxu0 %v418
    %658 = vmatprep.subr.mxu0 %v431
    %659 = vmatpush1.msra.mxu0 %v430
    %660 = vmatprep.subr.mxu0 %v443
    %661 = vmatpush1.msra.mxu0 %v442
    %662 = vmatprep.subr.mxu0 %v455
    %663 = vmatpush1.msra.mxu0 %v454
    %664 = vmatprep.subr.mxu0 %v467
    %665 = vmatpush1.msra.mxu0 %v466
    %666 = vmatprep.subr.mxu0 %v479
    %667 = vmatpush1.msra.mxu0 %v478
    %668 = vmatprep.subr.mxu0 %v491
    %669 = vmatpush1.msra.mxu0 %v490
    %670 = vmatprep.subr.mxu0 %v503
    %671 = vmatpush1.msra.mxu0 %v502
    %672 = vmatprep.subr.mxu0 %v515
    %673 = vmatpush1.msra.mxu0 %v514
    %674 = vmatprep.subr.mxu0 %v527
    %675 = vmatpush1.msra.mxu0 %v526
    %676 = vmatprep.subr.mxu0 %v539
    %677 = vmatpush1.msra.mxu0 %v538
    %678 = vmatprep.mubr.f32.mxu0 %v165
    %679 = vmatmul.mubr.f32.gmra.mrb[0].mxu0 %v164
    %v680 = vpop.f32.mrb[0].mxu0
    %v681 = vadd.f32 %v557, %v680
    %v682 = vpop.f32.mrb[0].mxu0
    %v683 = vadd.f32 %v561, %v682
    %684 = vdwg.mxu0
    %685 = vmatprep.subr.mxu0 %v169
    %686 = vmatpush1.msra.mxu0 %v168
    %687 = vmatprep.subr.mxu0 %v181
    %688 = vmatpush1.msra.mxu0 %v180
    %689 = vmatprep.subr.mxu0 %v193
    %690 = vmatpush1.msra.mxu0 %v192
    %691 = vmatprep.subr.mxu0 %v205
    %692 = vmatpush1.msra.mxu0 %v204
    %693 = vmatprep.subr.mxu0 %v217
    %694 = vmatpush1.msra.mxu0 %v216
    %695 = vmatprep.subr.mxu0 %v229
    %696 = vmatpush1.msra.mxu0 %v228
    %697 = vmatprep.subr.mxu0 %v241
    %698 = vmatpush1.msra.mxu0 %v240
    %699 = vmatprep.subr.mxu0 %v253
    %700 = vmatpush1.msra.mxu0 %v252
    %701 = vmatprep.subr.mxu0 %v265
    %702 = vmatpush1.msra.mxu0 %v264
    %703 = vmatprep.subr.mxu0 %v277
    %704 = vmatpush1.msra.mxu0 %v276
    %705 = vmatprep.subr.mxu0 %v289
    %706 = vmatpush1.msra.mxu0 %v288
    %707 = vmatprep.subr.mxu0 %v301
    %708 = vmatpush1.msra.mxu0 %v300
    %709 = vmatprep.subr.mxu0 %v313
    %710 = vmatpush1.msra.mxu0 %v312
    %711 = vmatprep.subr.mxu0 %v325
    %712 = vmatpush1.msra.mxu0 %v324
    %713 = vmatprep.subr.mxu0 %v337
    %714 = vmatpush1.msra.mxu0 %v336
    %715 = vmatprep.subr.mxu0 %v349
    %716 = vmatpush1.msra.mxu0 %v348
    %717 = vmatprep.subr.mxu0 %v361
    %718 = vmatpush1.msra.mxu0 %v360
    %719 = vmatprep.subr.mxu0 %v373
    %720 = vmatpush1.msra.mxu0 %v372
    %721 = vmatprep.subr.mxu0 %v385
    %722 = vmatpush1.msra.mxu0 %v384
    %723 = vmatprep.subr.mxu0 %v397
    %724 = vmatpush1.msra.mxu0 %v396
    %725 = vmatprep.subr.mxu0 %v409
    %726 = vmatpush1.msra.mxu0 %v408
    %727 = vmatprep.subr.mxu0 %v421
    %728 = vmatpush1.msra.mxu0 %v420
    %729 = vmatprep.subr.mxu0 %v433
    %730 = vmatpush1.msra.mxu0 %v432
    %731 = vmatprep.subr.mxu0 %v445
    %732 = vmatpush1.msra.mxu0 %v444
    %733 = vmatprep.subr.mxu0 %v457
    %734 = vmatpush1.msra.mxu0 %v456
    %735 = vmatprep.subr.mxu0 %v469
    %736 = vmatpush1.msra.mxu0 %v468
    %737 = vmatprep.subr.mxu0 %v481
    %738 = vmatpush1.msra.mxu0 %v480
    %739 = vmatprep.subr.mxu0 %v493
    %740 = vmatpush1.msra.mxu0 %v492
    %741 = vmatprep.subr.mxu0 %v505
    %742 = vmatpush1.msra.mxu0 %v504
    %743 = vmatprep.subr.mxu0 %v517
    %744 = vmatpush1.msra.mxu0 %v516
    %745 = vmatprep.subr.mxu0 %v529
    %746 = vmatpush1.msra.mxu0 %v528
    %747 = vmatprep.subr.mxu0 %v541
    %748 = vmatpush1.msra.mxu0 %v540
    %749 = vmatprep.mubr.f32.mxu0 %v165
    %750 = vmatmul.mubr.f32.gmra.mrb[0].mxu0 %v164
    %v751 = vpop.f32.mrb[0].mxu0
    %v752 = vadd.f32 %v565, %v751
    %v753 = vpop.f32.mrb[0].mxu0
    %v754 = vadd.f32 %v569, %v753
    %755 = vdwg.mxu0
    %756 = vmatprep.subr.mxu0 %v171
    %757 = vmatpush1.msra.mxu0 %v170
    %758 = vmatprep.subr.mxu0 %v183
    %759 = vmatpush1.msra.mxu0 %v182
    %760 = vmatprep.subr.mxu0 %v195
    %761 = vmatpush1.msra.mxu0 %v194
    %762 = vmatprep.subr.mxu0 %v207
    %763 = vmatpush1.msra.mxu0 %v206
    %764 = vmatprep.subr.mxu0 %v219
    %765 = vmatpush1.msra.mxu0 %v218
    %766 = vmatprep.subr.mxu0 %v231
    %767 = vmatpush1.msra.mxu0 %v230
    %768 = vmatprep.subr.mxu0 %v243
    %769 = vmatpush1.msra.mxu0 %v242
    %770 = vmatprep.subr.mxu0 %v255
    %771 = vmatpush1.msra.mxu0 %v254
    %772 = vmatprep.subr.mxu0 %v267
    %773 = vmatpush1.msra.mxu0 %v266
    %774 = vmatprep.subr.mxu0 %v279
    %775 = vmatpush1.msra.mxu0 %v278
    %776 = vmatprep.subr.mxu0 %v291
    %777 = vmatpush1.msra.mxu0 %v290
    %778 = vmatprep.subr.mxu0 %v303
    %779 = vmatpush1.msra.mxu0 %v302
    %780 = vmatprep.subr.mxu0 %v315
    %781 = vmatpush1.msra.mxu0 %v314
    %782 = vmatprep.subr.mxu0 %v327
    %783 = vmatpush1.msra.mxu0 %v326
    %784 = vmatprep.subr.mxu0 %v339
    %785 = vmatpush1.msra.mxu0 %v338
    %786 = vmatprep.subr.mxu0 %v351
    %787 = vmatpush1.msra.mxu0 %v350
    %788 = vmatprep.subr.mxu0 %v363
    %789 = vmatpush1.msra.mxu0 %v362
    %790 = vmatprep.subr.mxu0 %v375
    %791 = vmatpush1.msra.mxu0 %v374
    %792 = vmatprep.subr.mxu0 %v387
    %793 = vmatpush1.msra.mxu0 %v386
    %794 = vmatprep.subr.mxu0 %v399
    %795 = vmatpush1.msra.mxu0 %v398
    %796 = vmatprep.subr.mxu0 %v411
    %797 = vmatpush1.msra.mxu0 %v410
    %798 = vmatprep.subr.mxu0 %v423
    %799 = vmatpush1.msra.mxu0 %v422
    %800 = vmatprep.subr.mxu0 %v435
    %801 = vmatpush1.msra.mxu0 %v434
    %802 = vmatprep.subr.mxu0 %v447
    %803 = vmatpush1.msra.mxu0 %v446
    %804 = vmatprep.subr.mxu0 %v459
    %805 = vmatpush1.msra.mxu0 %v458
    %806 = vmatprep.subr.mxu0 %v471
    %807 = vmatpush1.msra.mxu0 %v470
    %808 = vmatprep.subr.mxu0 %v483
    %809 = vmatpush1.msra.mxu0 %v482
    %810 = vmatprep.subr.mxu0 %v495
    %811 = vmatpush1.msra.mxu0 %v494
    %812 = vmatprep.subr.mxu0 %v507
    %813 = vmatpush1.msra.mxu0 %v506
    %814 = vmatprep.subr.mxu0 %v519
    %815 = vmatpush1.msra.mxu0 %v518
    %816 = vmatprep.subr.mxu0 %v531
    %817 = vmatpush1.msra.mxu0 %v530
    %818 = vmatprep.subr.mxu0 %v543
    %819 = vmatpush1.msra.mxu0 %v542
    %820 = vmatprep.mubr.f32.mxu0 %v165
    %821 = vmatmul.mubr.f32.gmra.mrb[0].mxu0 %v164
    %v822 = vpop.f32.mrb[0].mxu0
    %v823 = vadd.f32 %v573, %v822
    %v824 = vpop.f32.mrb[0].mxu0
    %v825 = vadd.f32 %v577, %v824
    %826 = vdwg.mxu0
    %827 = vmatprep.subr.mxu0 %v173
    %828 = vmatpush1.msra.mxu0 %v172
    %829 = vmatprep.subr.mxu0 %v185
    %830 = vmatpush1.msra.mxu0 %v184
    %831 = vmatprep.subr.mxu0 %v197
    %832 = vmatpush1.msra.mxu0 %v196
    %833 = vmatprep.subr.mxu0 %v209
    %834 = vmatpush1.msra.mxu0 %v208
    %835 = vmatprep.subr.mxu0 %v221
    %836 = vmatpush1.msra.mxu0 %v220
    %837 = vmatprep.subr.mxu0 %v233
    %838 = vmatpush1.msra.mxu0 %v232
    %839 = vmatprep.subr.mxu0 %v245
    %840 = vmatpush1.msra.mxu0 %v244
    %841 = vmatprep.subr.mxu0 %v257
    %842 = vmatpush1.msra.mxu0 %v256
    %843 = vmatprep.subr.mxu0 %v269
    %844 = vmatpush1.msra.mxu0 %v268
    %845 = vmatprep.subr.mxu0 %v281
    %846 = vmatpush1.msra.mxu0 %v280
    %847 = vmatprep.subr.mxu0 %v293
    %848 = vmatpush1.msra.mxu0 %v292
    %849 = vmatprep.subr.mxu0 %v305
    %850 = vmatpush1.msra.mxu0 %v304
    %851 = vmatprep.subr.mxu0 %v317
    %852 = vmatpush1.msra.mxu0 %v316
    %853 = vmatprep.subr.mxu0 %v329
    %854 = vmatpush1.msra.mxu0 %v328
    %855 = vmatprep.subr.mxu0 %v341
    %856 = vmatpush1.msra.mxu0 %v340
    %857 = vmatprep.subr.mxu0 %v353
    %858 = vmatpush1.msra.mxu0 %v352
    %859 = vmatprep.subr.mxu0 %v365
    %860 = vmatpush1.msra.mxu0 %v364
    %861 = vmatprep.subr.mxu0 %v377
    %862 = vmatpush1.msra.mxu0 %v376
    %863 = vmatprep.subr.mxu0 %v389
    %864 = vmatpush1.msra.mxu0 %v388
    %865 = vmatprep.subr.mxu0 %v401
    %866 = vmatpush1.msra.mxu0 %v400
    %867 = vmatprep.subr.mxu0 %v413
    %868 = vmatpush1.msra.mxu0 %v412
    %869 = vmatprep.subr.mxu0 %v425
    %870 = vmatpush1.msra.mxu0 %v424
    %871 = vmatprep.subr.mxu0 %v437
    %872 = vmatpush1.msra.mxu0 %v436
    %873 = vmatprep.subr.mxu0 %v449
    %874 = vmatpush1.msra.mxu0 %v448
    %875 = vmatprep.subr.mxu0 %v461
    %876 = vmatpush1.msra.mxu0 %v460
    %877 = vmatprep.subr.mxu0 %v473
    %878 = vmatpush1.msra.mxu0 %v472
    %879 = vmatprep.subr.mxu0 %v485
    %880 = vmatpush1.msra.mxu0 %v484
    %881 = vmatprep.subr.mxu0 %v497
    %882 = vmatpush1.msra.mxu0 %v496
    %883 = vmatprep.subr.mxu0 %v509
    %884 = vmatpush1.msra.mxu0 %v508
    %885 = vmatprep.subr.mxu0 %v521
    %886 = vmatpush1.msra.mxu0 %v520
    %887 = vmatprep.subr.mxu0 %v533
    %888 = vmatpush1.msra.mxu0 %v532
    %889 = vmatprep.subr.mxu0 %v545
    %890 = vmatpush1.msra.mxu0 %v544
    %891 = vmatprep.mubr.f32.mxu0 %v165
    %892 = vmatmul.mubr.f32.gmra.mrb[0].mxu0 %v164
    %v893 = vpop.f32.mrb[0].mxu0
    %v894 = vadd.f32 %v581, %v893
    %v895 = vpop.f32.mrb[0].mxu0
    %v896 = vadd.f32 %v585, %v895
    %897 = vdwg.mxu0
    %898 = vmatprep.subr.mxu0 %v175
    %899 = vmatpush1.msra.mxu0 %v174
    %900 = vmatprep.subr.mxu0 %v187
    %901 = vmatpush1.msra.mxu0 %v186
    %902 = vmatprep.subr.mxu0 %v199
    %903 = vmatpush1.msra.mxu0 %v198
    %904 = vmatprep.subr.mxu0 %v211
    %905 = vmatpush1.msra.mxu0 %v210
    %906 = vmatprep.subr.mxu0 %v223
    %907 = vmatpush1.msra.mxu0 %v222
    %908 = vmatprep.subr.mxu0 %v235
    %909 = vmatpush1.msra.mxu0 %v234
    %910 = vmatprep.subr.mxu0 %v247
    %911 = vmatpush1.msra.mxu0 %v246
    %912 = vmatprep.subr.mxu0 %v259
    %913 = vmatpush1.msra.mxu0 %v258
    %914 = vmatprep.subr.mxu0 %v271
    %915 = vmatpush1.msra.mxu0 %v270
    %916 = vmatprep.subr.mxu0 %v283
    %917 = vmatpush1.msra.mxu0 %v282
    %918 = vmatprep.subr.mxu0 %v295
    %919 = vmatpush1.msra.mxu0 %v294
    %920 = vmatprep.subr.mxu0 %v307
    %921 = vmatpush1.msra.mxu0 %v306
    %922 = vmatprep.subr.mxu0 %v319
    %923 = vmatpush1.msra.mxu0 %v318
    %924 = vmatprep.subr.mxu0 %v331
    %925 = vmatpush1.msra.mxu0 %v330
    %926 = vmatprep.subr.mxu0 %v343
    %927 = vmatpush1.msra.mxu0 %v342
    %928 = vmatprep.subr.mxu0 %v355
    %929 = vmatpush1.msra.mxu0 %v354
    %930 = vmatprep.subr.mxu0 %v367
    %931 = vmatpush1.msra.mxu0 %v366
    %932 = vmatprep.subr.mxu0 %v379
    %933 = vmatpush1.msra.mxu0 %v378
    %934 = vmatprep.subr.mxu0 %v391
    %935 = vmatpush1.msra.mxu0 %v390
    %936 = vmatprep.subr.mxu0 %v403
    %937 = vmatpush1.msra.mxu0 %v402
    %938 = vmatprep.subr.mxu0 %v415
    %939 = vmatpush1.msra.mxu0 %v414
    %940 = vmatprep.subr.mxu0 %v427
    %941 = vmatpush1.msra.mxu0 %v426
    %942 = vmatprep.subr.mxu0 %v439
    %943 = vmatpush1.msra.mxu0 %v438
    %944 = vmatprep.subr.mxu0 %v451
    %945 = vmatpush1.msra.mxu0 %v450
    %946 = vmatprep.subr.mxu0 %v463
    %947 = vmatpush1.msra.mxu0 %v462
    %948 = vmatprep.subr.mxu0 %v475
    %949 = vmatpush1.msra.mxu0 %v474
    %950 = vmatprep.subr.mxu0 %v487
    %951 = vmatpush1.msra.mxu0 %v486
    %952 = vmatprep.subr.mxu0 %v499
    %953 = vmatpush1.msra.mxu0 %v498
    %954 = vmatprep.subr.mxu0 %v511
    %955 = vmatpush1.msra.mxu0 %v510
    %956 = vmatprep.subr.mxu0 %v523
    %957 = vmatpush1.msra.mxu0 %v522
    %958 = vmatprep.subr.mxu0 %v535
    %959 = vmatpush1.msra.mxu0 %v534
    %960 = vmatprep.subr.mxu0 %v547
    %961 = vmatpush1.msra.mxu0 %v546
    %962 = vmatprep.mubr.f32.mxu0 %v165
    %963 = vmatmul.mubr.f32.gmra.mrb[0].mxu0 %v164
    %v964 = vpop.f32.mrb[0].mxu0
    %v965 = vadd.f32 %v589, %v964
    %v966 = vpop.f32.mrb[0].mxu0
    %v967 = vadd.f32 %v593, %v966
    %968 = vdwg.mxu0
    %969 = vmatprep.subr.mxu0 %v177
    %970 = vmatpush1.msra.mxu0 %v176
    %971 = vmatprep.subr.mxu0 %v189
    %972 = vmatpush1.msra.mxu0 %v188
    %973 = vmatprep.subr.mxu0 %v201
    %974 = vmatpush1.msra.mxu0 %v200
    %975 = vmatprep.subr.mxu0 %v213
    %976 = vmatpush1.msra.mxu0 %v212
    %977 = vmatprep.subr.mxu0 %v225
    %978 = vmatpush1.msra.mxu0 %v224
    %979 = vmatprep.subr.mxu0 %v237
    %980 = vmatpush1.msra.mxu0 %v236
    %981 = vmatprep.subr.mxu0 %v249
    %982 = vmatpush1.msra.mxu0 %v248
    %983 = vmatprep.subr.mxu0 %v261
    %984 = vmatpush1.msra.mxu0 %v260
    %985 = vmatprep.subr.mxu0 %v273
    %986 = vmatpush1.msra.mxu0 %v272
    %987 = vmatprep.subr.mxu0 %v285
    %988 = vmatpush1.msra.mxu0 %v284
    %989 = vmatprep.subr.mxu0 %v297
    %990 = vmatpush1.msra.mxu0 %v296
    %991 = vmatprep.subr.mxu0 %v309
    %992 = vmatpush1.msra.mxu0 %v308
    %993 = vmatprep.subr.mxu0 %v321
    %994 = vmatpush1.msra.mxu0 %v320
    %995 = vmatprep.subr.mxu0 %v333
    %996 = vmatpush1.msra.mxu0 %v332
    %997 = vmatprep.subr.mxu0 %v345
    %998 = vmatpush1.msra.mxu0 %v344
    %999 = vmatprep.subr.mxu0 %v357
    %1000 = vmatpush1.msra.mxu0 %v356
    %1001 = vmatprep.subr.mxu0 %v369
    %1002 = vmatpush1.msra.mxu0 %v368
    %1003 = vmatprep.subr.mxu0 %v381
    %1004 = vmatpush1.msra.mxu0 %v380
    %1005 = vmatprep.subr.mxu0 %v393
    %1006 = vmatpush1.msra.mxu0 %v392
    %1007 = vmatprep.subr.mxu0 %v405
    %1008 = vmatpush1.msra.mxu0 %v404
    %1009 = vmatprep.subr.mxu0 %v417
    %1010 = vmatpush1.msra.mxu0 %v416
    %1011 = vmatprep.subr.mxu0 %v429
    %1012 = vmatpush1.msra.mxu0 %v428
    %1013 = vmatprep.subr.mxu0 %v441
    %1014 = vmatpush1.msra.mxu0 %v440
    %1015 = vmatprep.subr.mxu0 %v453
    %1016 = vmatpush1.msra.mxu0 %v452
    %1017 = vmatprep.subr.mxu0 %v465
    %1018 = vmatpush1.msra.mxu0 %v464
    %1019 = vmatprep.subr.mxu0 %v477
    %1020 = vmatpush1.msra.mxu0 %v476
    %1021 = vmatprep.subr.mxu0 %v489
    %1022 = vmatpush1.msra.mxu0 %v488
    %1023 = vmatprep.subr.mxu0 %v501
    %1024 = vmatpush1.msra.mxu0 %v500
    %1025 = vmatprep.subr.mxu0 %v513
    %1026 = vmatpush1.msra.mxu0 %v512
    %1027 = vmatprep.subr.mxu0 %v525
    %1028 = vmatpush1.msra.mxu0 %v524
    %1029 = vmatprep.subr.mxu0 %v537
    %1030 = vmatpush1.msra.mxu0 %v536
    %1031 = vmatprep.subr.mxu0 %v549
    %1032 = vmatpush1.msra.mxu0 %v548
    %1033 = vmatprep.mubr.f32.mxu0 %v165
    %1034 = vmatmul.mubr.f32.gmra.mrb[0].mxu0 %v164
    %v1035 = vpop.f32.mrb[0].mxu0
    %v1036 = vadd.f32 %v597, %v1035
    %v1037 = vpop.f32.mrb[0].mxu0
    %v1038 = vadd.f32 %v601, %v1037
    %1039 = vdwg.mxu0
    %v1040 = vmax.f32 %v681, 0.0
    %v1041 = vmax.f32 %v683, 0.0
    %v1042 = vmax.f32 %v752, 0.0
    %v1043 = vmax.f32 %v754, 0.0
    %v1044 = vmax.f32 %v823, 0.0
    %v1045 = vmax.f32 %v825, 0.0
    %v1046 = vmax.f32 %v894, 0.0
    %v1047 = vmax.f32 %v896, 0.0
    %v1048 = vmax.f32 %v965, 0.0
    %v1049 = vmax.f32 %v967, 0.0
    %v1050 = vmax.f32 %v1036, 0.0
    %v1051 = vmax.f32 %v1038, 0.0
    %v1052 = vld [vmem:[#allocation6] sm:$0xff]
    %v1053 = vld [vmem:[#allocation6 + $0x8] sm:$0xff]
    %v1054 = vld [vmem:[#allocation6 + $0x10] sm:$0xff]
    %v1055 = vld [vmem:[#allocation6 + $0x18] sm:$0xff]
    %v1056 = vld [vmem:[#allocation6 + $0x20] sm:$0xff]
    %v1057 = vld [vmem:[#allocation6 + $0x28] sm:$0xff]
    %v1058 = vld [vmem:[#allocation6 + $0x30] sm:$0xff]
    %v1059 = vld [vmem:[#allocation6 + $0x38] sm:$0xff]
    %v1060 = vld [vmem:[#allocation6 + $0x40] sm:$0xff]
    %v1061 = vld [vmem:[#allocation6 + $0x48] sm:$0xff]
    %v1062 = vld [vmem:[#allocation6 + $0x50] sm:$0xff]
    %v1063 = vld [vmem:[#allocation6 + $0x58] sm:$0xff]
    %v1064 = vld [vmem:[#allocation6 + $0x60] sm:$0xff]
    %v1065 = vld [vmem:[#allocation6 + $0x68] sm:$0xff]
    %v1066 = vld [vmem:[#allocation6 + $0x70] sm:$0xff]
    %v1067 = vld [vmem:[#allocation6 + $0x78] sm:$0xff]
    %v1068 = vld [vmem:[#allocation6 + $0x80] sm:$0xff]
    %v1069 = vld [vmem:[#allocation6 + $0x88] sm:$0xff]
    %v1070 = vld [vmem:[#allocation6 + $0x90] sm:$0xff]
    %v1071 = vld [vmem:[#allocation6 + $0x98] sm:$0xff]
    %v1072 = vld [vmem:[#allocation6 + $0xa0] sm:$0xff]
    %v1073 = vld [vmem:[#allocation6 + $0xa8] sm:$0xff]
    %v1074 = vld [vmem:[#allocation6 + $0xb0] sm:$0xff]
    %v1075 = vld [vmem:[#allocation6 + $0xb8] sm:$0xff]
    %v1076 = vld [vmem:[#allocation6 + $0xc0] sm:$0xff]
    %v1077 = vld [vmem:[#allocation6 + $0xc8] sm:$0xff]
    %v1078 = vld [vmem:[#allocation6 + $0xd0] sm:$0xff]
    %v1079 = vld [vmem:[#allocation6 + $0xd8] sm:$0xff]
    %v1080 = vld [vmem:[#allocation6 + $0xe0] sm:$0xff]
    %v1081 = vld [vmem:[#allocation6 + $0xe8] sm:$0xff]
    %v1082 = vld [vmem:[#allocation6 + $0xf0] sm:$0xff]
    %v1083 = vld [vmem:[#allocation6 + $0xf8] sm:$0xff]
    %v1084 = vld [vmem:[#allocation6 + $0x100] sm:$0xff]
    %v1085 = vld [vmem:[#allocation6 + $0x108] sm:$0xff]
    %v1086 = vld [vmem:[#allocation6 + $0x110] sm:$0xff]
    %v1087 = vld [vmem:[#allocation6 + $0x118] sm:$0xff]
    %v1088 = vld [vmem:[#allocation6 + $0x120] sm:$0xff]
    %v1089 = vld [vmem:[#allocation6 + $0x128] sm:$0xff]
    %v1090 = vld [vmem:[#allocation6 + $0x130] sm:$0xff]
    %v1091 = vld [vmem:[#allocation6 + $0x138] sm:$0xff]
    %v1092 = vld [vmem:[#allocation6 + $0x140] sm:$0xff]
    %v1093 = vld [vmem:[#allocation6 + $0x148] sm:$0xff]
    %v1094 = vld [vmem:[#allocation6 + $0x150] sm:$0xff]
    %v1095 = vld [vmem:[#allocation6 + $0x158] sm:$0xff]
    %v1096 = vld [vmem:[#allocation6 + $0x160] sm:$0xff]
    %v1097 = vld [vmem:[#allocation6 + $0x168] sm:$0xff]
    %v1098 = vld [vmem:[#allocation6 + $0x170] sm:$0xff]
    %v1099 = vld [vmem:[#allocation6 + $0x178] sm:$0xff]
    %v1100 = vld [vmem:[#allocation6 + $0x180] sm:$0xff]
    %v1101 = vld [vmem:[#allocation6 + $0x188] sm:$0xff]
    %v1102 = vld [vmem:[#allocation6 + $0x190] sm:$0xff]
    %v1103 = vld [vmem:[#allocation6 + $0x198] sm:$0xff]
    %v1104 = vld [vmem:[#allocation6 + $0x1a0] sm:$0xff]
    %v1105 = vld [vmem:[#allocation6 + $0x1a8] sm:$0xff]
    %v1106 = vld [vmem:[#allocation6 + $0x1b0] sm:$0xff]
    %v1107 = vld [vmem:[#allocation6 + $0x1b8] sm:$0xff]
    %v1108 = vld [vmem:[#allocation6 + $0x1c0] sm:$0xff]
    %v1109 = vld [vmem:[#allocation6 + $0x1c8] sm:$0xff]
    %v1110 = vld [vmem:[#allocation6 + $0x1d0] sm:$0xff]
    %v1111 = vld [vmem:[#allocation6 + $0x1d8] sm:$0xff]
    %v1112 = vld [vmem:[#allocation6 + $0x1e0] sm:$0xff]
    %v1113 = vld [vmem:[#allocation6 + $0x1e8] sm:$0xff]
    %v1114 = vld [vmem:[#allocation6 + $0x1f0] sm:$0xff]
    %v1115 = vld [vmem:[#allocation6 + $0x1f8] sm:$0xff]
    %v1116 = vld [vmem:[#allocation6 + $0x200] sm:$0xff]
    %v1117 = vld [vmem:[#allocation6 + $0x208] sm:$0xff]
    %v1118 = vld [vmem:[#allocation6 + $0x210] sm:$0xff]
    %v1119 = vld [vmem:[#allocation6 + $0x218] sm:$0xff]
    %v1120 = vld [vmem:[#allocation6 + $0x220] sm:$0xff]
    %v1121 = vld [vmem:[#allocation6 + $0x228] sm:$0xff]
    %v1122 = vld [vmem:[#allocation6 + $0x230] sm:$0xff]
    %v1123 = vld [vmem:[#allocation6 + $0x238] sm:$0xff]
    %v1124 = vld [vmem:[#allocation6 + $0x240] sm:$0xff]
    %v1125 = vld [vmem:[#allocation6 + $0x248] sm:$0xff]
    %v1126 = vld [vmem:[#allocation6 + $0x250] sm:$0xff]
    %v1127 = vld [vmem:[#allocation6 + $0x258] sm:$0xff]
    %v1128 = vld [vmem:[#allocation6 + $0x260] sm:$0xff]
    %v1129 = vld [vmem:[#allocation6 + $0x268] sm:$0xff]
    %v1130 = vld [vmem:[#allocation6 + $0x270] sm:$0xff]
    %v1131 = vld [vmem:[#allocation6 + $0x278] sm:$0xff]
    %v1132 = vld [vmem:[#allocation6 + $0x280] sm:$0xff]
    %v1133 = vld [vmem:[#allocation6 + $0x288] sm:$0xff]
    %v1134 = vld [vmem:[#allocation6 + $0x290] sm:$0xff]
    %v1135 = vld [vmem:[#allocation6 + $0x298] sm:$0xff]
    %v1136 = vld [vmem:[#allocation6 + $0x2a0] sm:$0xff]
    %v1137 = vld [vmem:[#allocation6 + $0x2a8] sm:$0xff]
    %v1138 = vld [vmem:[#allocation6 + $0x2b0] sm:$0xff]
    %v1139 = vld [vmem:[#allocation6 + $0x2b8] sm:$0xff]
    %v1140 = vld [vmem:[#allocation6 + $0x2c0] sm:$0xff]
    %v1141 = vld [vmem:[#allocation6 + $0x2c8] sm:$0xff]
    %v1142 = vld [vmem:[#allocation6 + $0x2d0] sm:$0xff]
    %v1143 = vld [vmem:[#allocation6 + $0x2d8] sm:$0xff]
    %v1144 = vld [vmem:[#allocation6 + $0x2e0] sm:$0xff]
    %v1145 = vld [vmem:[#allocation6 + $0x2e8] sm:$0xff]
    %v1146 = vld [vmem:[#allocation6 + $0x2f0] sm:$0xff]
    %v1147 = vld [vmem:[#allocation6 + $0x2f8] sm:$0xff]
    %v1148 = vld [vmem:[#allocation6 + $0x300] sm:$0xff]
    %v1149 = vld [vmem:[#allocation6 + $0x308] sm:$0xff]
    %v1150 = vld [vmem:[#allocation6 + $0x310] sm:$0xff]
    %v1151 = vld [vmem:[#allocation6 + $0x318] sm:$0xff]
    %v1152 = vld [vmem:[#allocation6 + $0x320] sm:$0xff]
    %v1153 = vld [vmem:[#allocation6 + $0x328] sm:$0xff]
    %v1154 = vld [vmem:[#allocation6 + $0x330] sm:$0xff]
    %v1155 = vld [vmem:[#allocation6 + $0x338] sm:$0xff]
    %v1156 = vld [vmem:[#allocation6 + $0x340] sm:$0xff]
    %v1157 = vld [vmem:[#allocation6 + $0x348] sm:$0xff]
    %v1158 = vld [vmem:[#allocation6 + $0x350] sm:$0xff]
    %v1159 = vld [vmem:[#allocation6 + $0x358] sm:$0xff]
    %v1160 = vld [vmem:[#allocation6 + $0x360] sm:$0xff]
    %v1161 = vld [vmem:[#allocation6 + $0x368] sm:$0xff]
    %v1162 = vld [vmem:[#allocation6 + $0x370] sm:$0xff]
    %v1163 = vld [vmem:[#allocation6 + $0x378] sm:$0xff]
    %v1164 = vld [vmem:[#allocation6 + $0x380] sm:$0xff]
    %v1165 = vld [vmem:[#allocation6 + $0x388] sm:$0xff]
    %v1166 = vld [vmem:[#allocation6 + $0x390] sm:$0xff]
    %v1167 = vld [vmem:[#allocation6 + $0x398] sm:$0xff]
    %v1168 = vld [vmem:[#allocation6 + $0x3a0] sm:$0xff]
    %v1169 = vld [vmem:[#allocation6 + $0x3a8] sm:$0xff]
    %v1170 = vld [vmem:[#allocation6 + $0x3b0] sm:$0xff]
    %v1171 = vld [vmem:[#allocation6 + $0x3b8] sm:$0xff]
    %v1172 = vld [vmem:[#allocation6 + $0x3c0] sm:$0xff]
    %v1173 = vld [vmem:[#allocation6 + $0x3c8] sm:$0xff]
    %v1174 = vld [vmem:[#allocation6 + $0x3d0] sm:$0xff]
    %v1175 = vld [vmem:[#allocation6 + $0x3d8] sm:$0xff]
    %v1176 = vld [vmem:[#allocation6 + $0x3e0] sm:$0xff]
    %v1177 = vld [vmem:[#allocation6 + $0x3e8] sm:$0xff]
    %v1178 = vld [vmem:[#allocation6 + $0x3f0] sm:$0xff]
    %v1179 = vld [vmem:[#allocation6 + $0x3f8] sm:$0xff]
    %v1180 = vld [vmem:[#allocation6 + $0x400] sm:$0xff]
    %v1181 = vld [vmem:[#allocation6 + $0x408] sm:$0xff]
    %v1182 = vld [vmem:[#allocation6 + $0x410] sm:$0xff]
    %v1183 = vld [vmem:[#allocation6 + $0x418] sm:$0xff]
    %v1184 = vld [vmem:[#allocation6 + $0x420] sm:$0xff]
    %v1185 = vld [vmem:[#allocation6 + $0x428] sm:$0xff]
    %v1186 = vld [vmem:[#allocation6 + $0x430] sm:$0xff]
    %v1187 = vld [vmem:[#allocation6 + $0x438] sm:$0xff]
    %v1188 = vld [vmem:[#allocation6 + $0x440] sm:$0xff]
    %v1189 = vld [vmem:[#allocation6 + $0x448] sm:$0xff]
    %v1190 = vld [vmem:[#allocation6 + $0x450] sm:$0xff]
    %v1191 = vld [vmem:[#allocation6 + $0x458] sm:$0xff]
    %v1192 = vld [vmem:[#allocation6 + $0x460] sm:$0xff]
    %v1193 = vld [vmem:[#allocation6 + $0x468] sm:$0xff]
    %v1194 = vld [vmem:[#allocation6 + $0x470] sm:$0xff]
    %v1195 = vld [vmem:[#allocation6 + $0x478] sm:$0xff]
    %v1196 = vld [vmem:[#allocation6 + $0x480] sm:$0xff]
    %v1197 = vld [vmem:[#allocation6 + $0x488] sm:$0xff]
    %v1198 = vld [vmem:[#allocation6 + $0x490] sm:$0xff]
    %v1199 = vld [vmem:[#allocation6 + $0x498] sm:$0xff]
    %v1200 = vld [vmem:[#allocation6 + $0x4a0] sm:$0xff]
    %v1201 = vld [vmem:[#allocation6 + $0x4a8] sm:$0xff]
    %v1202 = vld [vmem:[#allocation6 + $0x4b0] sm:$0xff]
    %v1203 = vld [vmem:[#allocation6 + $0x4b8] sm:$0xff]
    %v1204 = vld [vmem:[#allocation6 + $0x4c0] sm:$0xff]
    %v1205 = vld [vmem:[#allocation6 + $0x4c8] sm:$0xff]
    %v1206 = vld [vmem:[#allocation6 + $0x4d0] sm:$0xff]
    %v1207 = vld [vmem:[#allocation6 + $0x4d8] sm:$0xff]
    %v1208 = vld [vmem:[#allocation6 + $0x4e0] sm:$0xff]
    %v1209 = vld [vmem:[#allocation6 + $0x4e8] sm:$0xff]
    %v1210 = vld [vmem:[#allocation6 + $0x4f0] sm:$0xff]
    %v1211 = vld [vmem:[#allocation6 + $0x4f8] sm:$0xff]
    %v1212 = vld [vmem:[#allocation6 + $0x500] sm:$0xff]
    %v1213 = vld [vmem:[#allocation6 + $0x508] sm:$0xff]
    %v1214 = vld [vmem:[#allocation6 + $0x510] sm:$0xff]
    %v1215 = vld [vmem:[#allocation6 + $0x518] sm:$0xff]
    %v1216 = vld [vmem:[#allocation6 + $0x520] sm:$0xff]
    %v1217 = vld [vmem:[#allocation6 + $0x528] sm:$0xff]
    %v1218 = vld [vmem:[#allocation6 + $0x530] sm:$0xff]
    %v1219 = vld [vmem:[#allocation6 + $0x538] sm:$0xff]
    %v1220 = vld [vmem:[#allocation6 + $0x540] sm:$0xff]
    %v1221 = vld [vmem:[#allocation6 + $0x548] sm:$0xff]
    %v1222 = vld [vmem:[#allocation6 + $0x550] sm:$0xff]
    %v1223 = vld [vmem:[#allocation6 + $0x558] sm:$0xff]
    %v1224 = vld [vmem:[#allocation6 + $0x560] sm:$0xff]
    %v1225 = vld [vmem:[#allocation6 + $0x568] sm:$0xff]
    %v1226 = vld [vmem:[#allocation6 + $0x570] sm:$0xff]
    %v1227 = vld [vmem:[#allocation6 + $0x578] sm:$0xff]
    %v1228 = vld [vmem:[#allocation6 + $0x580] sm:$0xff]
    %v1229 = vld [vmem:[#allocation6 + $0x588] sm:$0xff]
    %v1230 = vld [vmem:[#allocation6 + $0x590] sm:$0xff]
    %v1231 = vld [vmem:[#allocation6 + $0x598] sm:$0xff]
    %v1232 = vld [vmem:[#allocation6 + $0x5a0] sm:$0xff]
    %v1233 = vld [vmem:[#allocation6 + $0x5a8] sm:$0xff]
    %v1234 = vld [vmem:[#allocation6 + $0x5b0] sm:$0xff]
    %v1235 = vld [vmem:[#allocation6 + $0x5b8] sm:$0xff]
    %v1236 = vld [vmem:[#allocation6 + $0x5c0] sm:$0xff]
    %v1237 = vld [vmem:[#allocation6 + $0x5c8] sm:$0xff]
    %v1238 = vld [vmem:[#allocation6 + $0x5d0] sm:$0xff]
    %v1239 = vld [vmem:[#allocation6 + $0x5d8] sm:$0xff]
    %v1240 = vld [vmem:[#allocation6 + $0x5e0] sm:$0xff]
    %v1241 = vld [vmem:[#allocation6 + $0x5e8] sm:$0xff]
    %v1242 = vld [vmem:[#allocation6 + $0x5f0] sm:$0xff]
    %v1243 = vld [vmem:[#allocation6 + $0x5f8] sm:$0xff]
    %v1244 = vld [vmem:[#allocation6 + $0x600] sm:$0xff]
    %v1245 = vld [vmem:[#allocation6 + $0x608] sm:$0xff]
    %v1246 = vld [vmem:[#allocation6 + $0x610] sm:$0xff]
    %v1247 = vld [vmem:[#allocation6 + $0x618] sm:$0xff]
    %v1248 = vld [vmem:[#allocation6 + $0x620] sm:$0xff]
    %v1249 = vld [vmem:[#allocation6 + $0x628] sm:$0xff]
    %v1250 = vld [vmem:[#allocation6 + $0x630] sm:$0xff]
    %v1251 = vld [vmem:[#allocation6 + $0x638] sm:$0xff]
    %v1252 = vld [vmem:[#allocation6 + $0x640] sm:$0xff]
    %v1253 = vld [vmem:[#allocation6 + $0x648] sm:$0xff]
    %v1254 = vld [vmem:[#allocation6 + $0x650] sm:$0xff]
    %v1255 = vld [vmem:[#allocation6 + $0x658] sm:$0xff]
    %v1256 = vld [vmem:[#allocation6 + $0x660] sm:$0xff]
    %v1257 = vld [vmem:[#allocation6 + $0x668] sm:$0xff]
    %v1258 = vld [vmem:[#allocation6 + $0x670] sm:$0xff]
    %v1259 = vld [vmem:[#allocation6 + $0x678] sm:$0xff]
    %v1260 = vld [vmem:[#allocation6 + $0x680] sm:$0xff]
    %v1261 = vld [vmem:[#allocation6 + $0x688] sm:$0xff]
    %v1262 = vld [vmem:[#allocation6 + $0x690] sm:$0xff]
    %v1263 = vld [vmem:[#allocation6 + $0x698] sm:$0xff]
    %v1264 = vld [vmem:[#allocation6 + $0x6a0] sm:$0xff]
    %v1265 = vld [vmem:[#allocation6 + $0x6a8] sm:$0xff]
    %v1266 = vld [vmem:[#allocation6 + $0x6b0] sm:$0xff]
    %v1267 = vld [vmem:[#allocation6 + $0x6b8] sm:$0xff]
    %v1268 = vld [vmem:[#allocation6 + $0x6c0] sm:$0xff]
    %v1269 = vld [vmem:[#allocation6 + $0x6c8] sm:$0xff]
    %v1270 = vld [vmem:[#allocation6 + $0x6d0] sm:$0xff]
    %v1271 = vld [vmem:[#allocation6 + $0x6d8] sm:$0xff]
    %v1272 = vld [vmem:[#allocation6 + $0x6e0] sm:$0xff]
    %v1273 = vld [vmem:[#allocation6 + $0x6e8] sm:$0xff]
    %v1274 = vld [vmem:[#allocation6 + $0x6f0] sm:$0xff]
    %v1275 = vld [vmem:[#allocation6 + $0x6f8] sm:$0xff]
    %v1276 = vld [vmem:[#allocation6 + $0x700] sm:$0xff]
    %v1277 = vld [vmem:[#allocation6 + $0x708] sm:$0xff]
    %v1278 = vld [vmem:[#allocation6 + $0x710] sm:$0xff]
    %v1279 = vld [vmem:[#allocation6 + $0x718] sm:$0xff]
    %v1280 = vld [vmem:[#allocation6 + $0x720] sm:$0xff]
    %v1281 = vld [vmem:[#allocation6 + $0x728] sm:$0xff]
    %v1282 = vld [vmem:[#allocation6 + $0x730] sm:$0xff]
    %v1283 = vld [vmem:[#allocation6 + $0x738] sm:$0xff]
    %v1284 = vld [vmem:[#allocation6 + $0x740] sm:$0xff]
    %v1285 = vld [vmem:[#allocation6 + $0x748] sm:$0xff]
    %v1286 = vld [vmem:[#allocation6 + $0x750] sm:$0xff]
    %v1287 = vld [vmem:[#allocation6 + $0x758] sm:$0xff]
    %v1288 = vld [vmem:[#allocation6 + $0x760] sm:$0xff]
    %v1289 = vld [vmem:[#allocation6 + $0x768] sm:$0xff]
    %v1290 = vld [vmem:[#allocation6 + $0x770] sm:$0xff]
    %v1291 = vld [vmem:[#allocation6 + $0x778] sm:$0xff]
    %v1292 = vld [vmem:[#allocation6 + $0x780] sm:$0xff]
    %v1293 = vld [vmem:[#allocation6 + $0x788] sm:$0xff]
    %v1294 = vld [vmem:[#allocation6 + $0x790] sm:$0xff]
    %v1295 = vld [vmem:[#allocation6 + $0x798] sm:$0xff]
    %v1296 = vld [vmem:[#allocation6 + $0x7a0] sm:$0xff]
    %v1297 = vld [vmem:[#allocation6 + $0x7a8] sm:$0xff]
    %v1298 = vld [vmem:[#allocation6 + $0x7b0] sm:$0xff]
    %v1299 = vld [vmem:[#allocation6 + $0x7b8] sm:$0xff]
    %v1300 = vld [vmem:[#allocation6 + $0x7c0] sm:$0xff]
    %v1301 = vld [vmem:[#allocation6 + $0x7c8] sm:$0xff]
    %v1302 = vld [vmem:[#allocation6 + $0x7d0] sm:$0xff]
    %v1303 = vld [vmem:[#allocation6 + $0x7d8] sm:$0xff]
    %v1304 = vld [vmem:[#allocation6 + $0x7e0] sm:$0xff]
    %v1305 = vld [vmem:[#allocation6 + $0x7e8] sm:$0xff]
    %v1306 = vld [vmem:[#allocation6 + $0x7f0] sm:$0xff]
    %v1307 = vld [vmem:[#allocation6 + $0x7f8] sm:$0xff]
    %v1308 = vld [vmem:[#allocation6 + $0x800] sm:$0xff]
    %v1309 = vld [vmem:[#allocation6 + $0x808] sm:$0xff]
    %v1310 = vld [vmem:[#allocation6 + $0x810] sm:$0xff]
    %v1311 = vld [vmem:[#allocation6 + $0x818] sm:$0xff]
    %v1312 = vld [vmem:[#allocation6 + $0x820] sm:$0xff]
    %v1313 = vld [vmem:[#allocation6 + $0x828] sm:$0xff]
    %v1314 = vld [vmem:[#allocation6 + $0x830] sm:$0xff]
    %v1315 = vld [vmem:[#allocation6 + $0x838] sm:$0xff]
    %v1316 = vld [vmem:[#allocation6 + $0x840] sm:$0xff]
    %v1317 = vld [vmem:[#allocation6 + $0x848] sm:$0xff]
    %v1318 = vld [vmem:[#allocation6 + $0x850] sm:$0xff]
    %v1319 = vld [vmem:[#allocation6 + $0x858] sm:$0xff]
    %v1320 = vld [vmem:[#allocation6 + $0x860] sm:$0xff]
    %v1321 = vld [vmem:[#allocation6 + $0x868] sm:$0xff]
    %v1322 = vld [vmem:[#allocation6 + $0x870] sm:$0xff]
    %v1323 = vld [vmem:[#allocation6 + $0x878] sm:$0xff]
    %v1324 = vld [vmem:[#allocation6 + $0x880] sm:$0xff]
    %v1325 = vld [vmem:[#allocation6 + $0x888] sm:$0xff]
    %v1326 = vld [vmem:[#allocation6 + $0x890] sm:$0xff]
    %v1327 = vld [vmem:[#allocation6 + $0x898] sm:$0xff]
    %v1328 = vld [vmem:[#allocation6 + $0x8a0] sm:$0xff]
    %v1329 = vld [vmem:[#allocation6 + $0x8a8] sm:$0xff]
    %v1330 = vld [vmem:[#allocation6 + $0x8b0] sm:$0xff]
    %v1331 = vld [vmem:[#allocation6 + $0x8b8] sm:$0xff]
    %v1332 = vld [vmem:[#allocation6 + $0x8c0] sm:$0xff]
    %v1333 = vld [vmem:[#allocation6 + $0x8c8] sm:$0xff]
    %v1334 = vld [vmem:[#allocation6 + $0x8d0] sm:$0xff]
    %v1335 = vld [vmem:[#allocation6 + $0x8d8] sm:$0xff]
    %v1336 = vld [vmem:[#allocation6 + $0x8e0] sm:$0xff]
    %v1337 = vld [vmem:[#allocation6 + $0x8e8] sm:$0xff]
    %v1338 = vld [vmem:[#allocation6 + $0x8f0] sm:$0xff]
    %v1339 = vld [vmem:[#allocation6 + $0x8f8] sm:$0xff]
    %v1340 = vld [vmem:[#allocation6 + $0x900] sm:$0xff]
    %v1341 = vld [vmem:[#allocation6 + $0x908] sm:$0xff]
    %v1342 = vld [vmem:[#allocation6 + $0x910] sm:$0xff]
    %v1343 = vld [vmem:[#allocation6 + $0x918] sm:$0xff]
    %v1344 = vld [vmem:[#allocation6 + $0x920] sm:$0xff]
    %v1345 = vld [vmem:[#allocation6 + $0x928] sm:$0xff]
    %v1346 = vld [vmem:[#allocation6 + $0x930] sm:$0xff]
    %v1347 = vld [vmem:[#allocation6 + $0x938] sm:$0xff]
    %v1348 = vld [vmem:[#allocation6 + $0x940] sm:$0xff]
    %v1349 = vld [vmem:[#allocation6 + $0x948] sm:$0xff]
    %v1350 = vld [vmem:[#allocation6 + $0x950] sm:$0xff]
    %v1351 = vld [vmem:[#allocation6 + $0x958] sm:$0xff]
    %v1352 = vld [vmem:[#allocation6 + $0x960] sm:$0xff]
    %v1353 = vld [vmem:[#allocation6 + $0x968] sm:$0xff]
    %v1354 = vld [vmem:[#allocation6 + $0x970] sm:$0xff]
    %v1355 = vld [vmem:[#allocation6 + $0x978] sm:$0xff]
    %v1356 = vld [vmem:[#allocation6 + $0x980] sm:$0xff]
    %v1357 = vld [vmem:[#allocation6 + $0x988] sm:$0xff]
    %v1358 = vld [vmem:[#allocation6 + $0x990] sm:$0xff]
    %v1359 = vld [vmem:[#allocation6 + $0x998] sm:$0xff]
    %v1360 = vld [vmem:[#allocation6 + $0x9a0] sm:$0xff]
    %v1361 = vld [vmem:[#allocation6 + $0x9a8] sm:$0xff]
    %v1362 = vld [vmem:[#allocation6 + $0x9b0] sm:$0xff]
    %v1363 = vld [vmem:[#allocation6 + $0x9b8] sm:$0xff]
    %v1364 = vld [vmem:[#allocation6 + $0x9c0] sm:$0xff]
    %v1365 = vld [vmem:[#allocation6 + $0x9c8] sm:$0xff]
    %v1366 = vld [vmem:[#allocation6 + $0x9d0] sm:$0xff]
    %v1367 = vld [vmem:[#allocation6 + $0x9d8] sm:$0xff]
    %v1368 = vld [vmem:[#allocation6 + $0x9e0] sm:$0xff]
    %v1369 = vld [vmem:[#allocation6 + $0x9e8] sm:$0xff]
    %v1370 = vld [vmem:[#allocation6 + $0x9f0] sm:$0xff]
    %v1371 = vld [vmem:[#allocation6 + $0x9f8] sm:$0xff]
    %v1372 = vld [vmem:[#allocation6 + $0xa00] sm:$0xff]
    %v1373 = vld [vmem:[#allocation6 + $0xa08] sm:$0xff]
    %v1374 = vld [vmem:[#allocation6 + $0xa10] sm:$0xff]
    %v1375 = vld [vmem:[#allocation6 + $0xa18] sm:$0xff]
    %v1376 = vld [vmem:[#allocation6 + $0xa20] sm:$0xff]
    %v1377 = vld [vmem:[#allocation6 + $0xa28] sm:$0xff]
    %v1378 = vld [vmem:[#allocation6 + $0xa30] sm:$0xff]
    %v1379 = vld [vmem:[#allocation6 + $0xa38] sm:$0xff]
    %v1380 = vld [vmem:[#allocation6 + $0xa40] sm:$0xff]
    %v1381 = vld [vmem:[#allocation6 + $0xa48] sm:$0xff]
    %v1382 = vld [vmem:[#allocation6 + $0xa50] sm:$0xff]
    %v1383 = vld [vmem:[#allocation6 + $0xa58] sm:$0xff]
    %v1384 = vld [vmem:[#allocation6 + $0xa60] sm:$0xff]
    %v1385 = vld [vmem:[#allocation6 + $0xa68] sm:$0xff]
    %v1386 = vld [vmem:[#allocation6 + $0xa70] sm:$0xff]
    %v1387 = vld [vmem:[#allocation6 + $0xa78] sm:$0xff]
    %v1388 = vld [vmem:[#allocation6 + $0xa80] sm:$0xff]
    %v1389 = vld [vmem:[#allocation6 + $0xa88] sm:$0xff]
    %v1390 = vld [vmem:[#allocation6 + $0xa90] sm:$0xff]
    %v1391 = vld [vmem:[#allocation6 + $0xa98] sm:$0xff]
    %v1392 = vld [vmem:[#allocation6 + $0xaa0] sm:$0xff]
    %v1393 = vld [vmem:[#allocation6 + $0xaa8] sm:$0xff]
    %v1394 = vld [vmem:[#allocation6 + $0xab0] sm:$0xff]
    %v1395 = vld [vmem:[#allocation6 + $0xab8] sm:$0xff]
    %v1396 = vld [vmem:[#allocation6 + $0xac0] sm:$0xff]
    %v1397 = vld [vmem:[#allocation6 + $0xac8] sm:$0xff]
    %v1398 = vld [vmem:[#allocation6 + $0xad0] sm:$0xff]
    %v1399 = vld [vmem:[#allocation6 + $0xad8] sm:$0xff]
    %v1400 = vld [vmem:[#allocation6 + $0xae0] sm:$0xff]
    %v1401 = vld [vmem:[#allocation6 + $0xae8] sm:$0xff]
    %v1402 = vld [vmem:[#allocation6 + $0xaf0] sm:$0xff]
    %v1403 = vld [vmem:[#allocation6 + $0xaf8] sm:$0xff]
    %v1404 = vld [vmem:[#allocation6 + $0xb00] sm:$0xff]
    %v1405 = vld [vmem:[#allocation6 + $0xb08] sm:$0xff]
    %v1406 = vld [vmem:[#allocation6 + $0xb10] sm:$0xff]
    %v1407 = vld [vmem:[#allocation6 + $0xb18] sm:$0xff]
    %v1408 = vld [vmem:[#allocation6 + $0xb20] sm:$0xff]
    %v1409 = vld [vmem:[#allocation6 + $0xb28] sm:$0xff]
    %v1410 = vld [vmem:[#allocation6 + $0xb30] sm:$0xff]
    %v1411 = vld [vmem:[#allocation6 + $0xb38] sm:$0xff]
    %v1412 = vld [vmem:[#allocation6 + $0xb40] sm:$0xff]
    %v1413 = vld [vmem:[#allocation6 + $0xb48] sm:$0xff]
    %v1414 = vld [vmem:[#allocation6 + $0xb50] sm:$0xff]
    %v1415 = vld [vmem:[#allocation6 + $0xb58] sm:$0xff]
    %v1416 = vld [vmem:[#allocation6 + $0xb60] sm:$0xff]
    %v1417 = vld [vmem:[#allocation6 + $0xb68] sm:$0xff]
    %v1418 = vld [vmem:[#allocation6 + $0xb70] sm:$0xff]
    %v1419 = vld [vmem:[#allocation6 + $0xb78] sm:$0xff]
    %v1420 = vld [vmem:[#allocation6 + $0xb80] sm:$0xff]
    %v1421 = vld [vmem:[#allocation6 + $0xb88] sm:$0xff]
    %v1422 = vld [vmem:[#allocation6 + $0xb90] sm:$0xff]
    %v1423 = vld [vmem:[#allocation6 + $0xb98] sm:$0xff]
    %v1424 = vld [vmem:[#allocation6 + $0xba0] sm:$0xff]
    %v1425 = vld [vmem:[#allocation6 + $0xba8] sm:$0xff]
    %v1426 = vld [vmem:[#allocation6 + $0xbb0] sm:$0xff]
    %v1427 = vld [vmem:[#allocation6 + $0xbb8] sm:$0xff]
    %v1428 = vld [vmem:[#allocation6 + $0xbc0] sm:$0xff]
    %v1429 = vld [vmem:[#allocation6 + $0xbc8] sm:$0xff]
    %v1430 = vld [vmem:[#allocation6 + $0xbd0] sm:$0xff]
    %v1431 = vld [vmem:[#allocation6 + $0xbd8] sm:$0xff]
    %v1432 = vld [vmem:[#allocation6 + $0xbe0] sm:$0xff]
    %v1433 = vld [vmem:[#allocation6 + $0xbe8] sm:$0xff]
    %v1434 = vld [vmem:[#allocation6 + $0xbf0] sm:$0xff]
    %v1435 = vld [vmem:[#allocation6 + $0xbf8] sm:$0xff]
    %v1436 = vld [vmem:[#allocation6 + $0xc00] sm:$0xff]
    %v1437 = vld [vmem:[#allocation6 + $0xc08] sm:$0xff]
    %v1438 = vld [vmem:[#allocation6 + $0xc10] sm:$0xff]
    %v1439 = vld [vmem:[#allocation6 + $0xc18] sm:$0xff]
    %v1440 = vld [vmem:[#allocation6 + $0xc20] sm:$0xff]
    %v1441 = vld [vmem:[#allocation6 + $0xc28] sm:$0xff]
    %v1442 = vld [vmem:[#allocation6 + $0xc30] sm:$0xff]
    %v1443 = vld [vmem:[#allocation6 + $0xc38] sm:$0xff]
    %v1444 = vld [vmem:[#allocation6 + $0xc40] sm:$0xff]
    %v1445 = vld [vmem:[#allocation6 + $0xc48] sm:$0xff]
    %v1446 = vld [vmem:[#allocation6 + $0xc50] sm:$0xff]
    %v1447 = vld [vmem:[#allocation6 + $0xc58] sm:$0xff]
    %v1448 = vld [vmem:[#allocation6 + $0xc60] sm:$0xff]
    %v1449 = vld [vmem:[#allocation6 + $0xc68] sm:$0xff]
    %v1450 = vld [vmem:[#allocation6 + $0xc70] sm:$0xff]
    %v1451 = vld [vmem:[#allocation6 + $0xc78] sm:$0xff]
    %v1452 = vld [vmem:[#allocation6 + $0xc80] sm:$0xff]
    %v1453 = vld [vmem:[#allocation6 + $0xc88] sm:$0xff]
    %v1454 = vld [vmem:[#allocation6 + $0xc90] sm:$0xff]
    %v1455 = vld [vmem:[#allocation6 + $0xc98] sm:$0xff]
    %v1456 = vld [vmem:[#allocation6 + $0xca0] sm:$0xff]
    %v1457 = vld [vmem:[#allocation6 + $0xca8] sm:$0xff]
    %v1458 = vld [vmem:[#allocation6 + $0xcb0] sm:$0xff]
    %v1459 = vld [vmem:[#allocation6 + $0xcb8] sm:$0xff]
    %v1460 = vld [vmem:[#allocation6 + $0xcc0] sm:$0xff]
    %v1461 = vld [vmem:[#allocation6 + $0xcc8] sm:$0xff]
    %v1462 = vld [vmem:[#allocation6 + $0xcd0] sm:$0xff]
    %v1463 = vld [vmem:[#allocation6 + $0xcd8] sm:$0xff]
    %v1464 = vld [vmem:[#allocation6 + $0xce0] sm:$0xff]
    %v1465 = vld [vmem:[#allocation6 + $0xce8] sm:$0xff]
    %v1466 = vld [vmem:[#allocation6 + $0xcf0] sm:$0xff]
    %v1467 = vld [vmem:[#allocation6 + $0xcf8] sm:$0xff]
    %v1468 = vld [vmem:[#allocation6 + $0xd00] sm:$0xff]
    %v1469 = vld [vmem:[#allocation6 + $0xd08] sm:$0xff]
    %v1470 = vld [vmem:[#allocation6 + $0xd10] sm:$0xff]
    %v1471 = vld [vmem:[#allocation6 + $0xd18] sm:$0xff]
    %v1472 = vld [vmem:[#allocation6 + $0xd20] sm:$0xff]
    %v1473 = vld [vmem:[#allocation6 + $0xd28] sm:$0xff]
    %v1474 = vld [vmem:[#allocation6 + $0xd30] sm:$0xff]
    %v1475 = vld [vmem:[#allocation6 + $0xd38] sm:$0xff]
    %v1476 = vld [vmem:[#allocation6 + $0xd40] sm:$0xff]
    %v1477 = vld [vmem:[#allocation6 + $0xd48] sm:$0xff]
    %v1478 = vld [vmem:[#allocation6 + $0xd50] sm:$0xff]
    %v1479 = vld [vmem:[#allocation6 + $0xd58] sm:$0xff]
    %v1480 = vld [vmem:[#allocation6 + $0xd60] sm:$0xff]
    %v1481 = vld [vmem:[#allocation6 + $0xd68] sm:$0xff]
    %v1482 = vld [vmem:[#allocation6 + $0xd70] sm:$0xff]
    %v1483 = vld [vmem:[#allocation6 + $0xd78] sm:$0xff]
    %v1484 = vld [vmem:[#allocation6 + $0xd80] sm:$0xff]
    %v1485 = vld [vmem:[#allocation6 + $0xd88] sm:$0xff]
    %v1486 = vld [vmem:[#allocation6 + $0xd90] sm:$0xff]
    %v1487 = vld [vmem:[#allocation6 + $0xd98] sm:$0xff]
    %v1488 = vld [vmem:[#allocation6 + $0xda0] sm:$0xff]
    %v1489 = vld [vmem:[#allocation6 + $0xda8] sm:$0xff]
    %v1490 = vld [vmem:[#allocation6 + $0xdb0] sm:$0xff]
    %v1491 = vld [vmem:[#allocation6 + $0xdb8] sm:$0xff]
    %v1492 = vld [vmem:[#allocation6 + $0xdc0] sm:$0xff]
    %v1493 = vld [vmem:[#allocation6 + $0xdc8] sm:$0xff]
    %v1494 = vld [vmem:[#allocation6 + $0xdd0] sm:$0xff]
    %v1495 = vld [vmem:[#allocation6 + $0xdd8] sm:$0xff]
    %v1496 = vld [vmem:[#allocation6 + $0xde0] sm:$0xff]
    %v1497 = vld [vmem:[#allocation6 + $0xde8] sm:$0xff]
    %v1498 = vld [vmem:[#allocation6 + $0xdf0] sm:$0xff]
    %v1499 = vld [vmem:[#allocation6 + $0xdf8] sm:$0xff]
    %v1500 = vld [vmem:[#allocation6 + $0xe00] sm:$0xff]
    %v1501 = vld [vmem:[#allocation6 + $0xe08] sm:$0xff]
    %v1502 = vld [vmem:[#allocation6 + $0xe10] sm:$0xff]
    %v1503 = vld [vmem:[#allocation6 + $0xe18] sm:$0xff]
    %v1504 = vld [vmem:[#allocation6 + $0xe20] sm:$0xff]
    %v1505 = vld [vmem:[#allocation6 + $0xe28] sm:$0xff]
    %v1506 = vld [vmem:[#allocation6 + $0xe30] sm:$0xff]
    %v1507 = vld [vmem:[#allocation6 + $0xe38] sm:$0xff]
    %v1508 = vld [vmem:[#allocation6 + $0xe40] sm:$0xff]
    %v1509 = vld [vmem:[#allocation6 + $0xe48] sm:$0xff]
    %v1510 = vld [vmem:[#allocation6 + $0xe50] sm:$0xff]
    %v1511 = vld [vmem:[#allocation6 + $0xe58] sm:$0xff]
    %v1512 = vld [vmem:[#allocation6 + $0xe60] sm:$0xff]
    %v1513 = vld [vmem:[#allocation6 + $0xe68] sm:$0xff]
    %v1514 = vld [vmem:[#allocation6 + $0xe70] sm:$0xff]
    %v1515 = vld [vmem:[#allocation6 + $0xe78] sm:$0xff]
    %v1516 = vld [vmem:[#allocation6 + $0xe80] sm:$0xff]
    %v1517 = vld [vmem:[#allocation6 + $0xe88] sm:$0xff]
    %v1518 = vld [vmem:[#allocation6 + $0xe90] sm:$0xff]
    %v1519 = vld [vmem:[#allocation6 + $0xe98] sm:$0xff]
    %v1520 = vld [vmem:[#allocation6 + $0xea0] sm:$0xff]
    %v1521 = vld [vmem:[#allocation6 + $0xea8] sm:$0xff]
    %v1522 = vld [vmem:[#allocation6 + $0xeb0] sm:$0xff]
    %v1523 = vld [vmem:[#allocation6 + $0xeb8] sm:$0xff]
    %v1524 = vld [vmem:[#allocation6 + $0xec0] sm:$0xff]
    %v1525 = vld [vmem:[#allocation6 + $0xec8] sm:$0xff]
    %v1526 = vld [vmem:[#allocation6 + $0xed0] sm:$0xff]
    %v1527 = vld [vmem:[#allocation6 + $0xed8] sm:$0xff]
    %v1528 = vld [vmem:[#allocation6 + $0xee0] sm:$0xff]
    %v1529 = vld [vmem:[#allocation6 + $0xee8] sm:$0xff]
    %v1530 = vld [vmem:[#allocation6 + $0xef0] sm:$0xff]
    %v1531 = vld [vmem:[#allocation6 + $0xef8] sm:$0xff]
    %v1532 = vld [vmem:[#allocation6 + $0xf00] sm:$0xff]
    %v1533 = vld [vmem:[#allocation6 + $0xf08] sm:$0xff]
    %v1534 = vld [vmem:[#allocation6 + $0xf10] sm:$0xff]
    %v1535 = vld [vmem:[#allocation6 + $0xf18] sm:$0xff]
    %v1536 = vld [vmem:[#allocation6 + $0xf20] sm:$0xff]
    %v1537 = vld [vmem:[#allocation6 + $0xf28] sm:$0xff]
    %v1538 = vld [vmem:[#allocation6 + $0xf30] sm:$0xff]
    %v1539 = vld [vmem:[#allocation6 + $0xf38] sm:$0xff]
    %v1540 = vld [vmem:[#allocation6 + $0xf40] sm:$0xff]
    %v1541 = vld [vmem:[#allocation6 + $0xf48] sm:$0xff]
    %v1542 = vld [vmem:[#allocation6 + $0xf50] sm:$0xff]
    %v1543 = vld [vmem:[#allocation6 + $0xf58] sm:$0xff]
    %v1544 = vld [vmem:[#allocation6 + $0xf60] sm:$0xff]
    %v1545 = vld [vmem:[#allocation6 + $0xf68] sm:$0xff]
    %v1546 = vld [vmem:[#allocation6 + $0xf70] sm:$0xff]
    %v1547 = vld [vmem:[#allocation6 + $0xf78] sm:$0xff]
    %v1548 = vld [vmem:[#allocation6 + $0xf80] sm:$0xff]
    %v1549 = vld [vmem:[#allocation6 + $0xf88] sm:$0xff]
    %v1550 = vld [vmem:[#allocation6 + $0xf90] sm:$0xff]
    %v1551 = vld [vmem:[#allocation6 + $0xf98] sm:$0xff]
    %v1552 = vld [vmem:[#allocation6 + $0xfa0] sm:$0xff]
    %v1553 = vld [vmem:[#allocation6 + $0xfa8] sm:$0xff]
    %v1554 = vld [vmem:[#allocation6 + $0xfb0] sm:$0xff]
    %v1555 = vld [vmem:[#allocation6 + $0xfb8] sm:$0xff]
    %v1556 = vld [vmem:[#allocation6 + $0xfc0] sm:$0xff]
    %v1557 = vld [vmem:[#allocation6 + $0xfc8] sm:$0xff]
    %v1558 = vld [vmem:[#allocation6 + $0xfd0] sm:$0xff]
    %v1559 = vld [vmem:[#allocation6 + $0xfd8] sm:$0xff]
    %v1560 = vld [vmem:[#allocation6 + $0xfe0] sm:$0xff]
    %v1561 = vld [vmem:[#allocation6 + $0xfe8] sm:$0xff]
    %v1562 = vld [vmem:[#allocation6 + $0xff0] sm:$0xff]
    %v1563 = vld [vmem:[#allocation6 + $0xff8] sm:$0xff]
    %v1564 = vld [vmem:[#allocation6 + $0x1000] sm:$0xff]
    %v1565 = vld [vmem:[#allocation6 + $0x1008] sm:$0xff]
    %v1566 = vld [vmem:[#allocation6 + $0x1010] sm:$0xff]
    %v1567 = vld [vmem:[#allocation6 + $0x1018] sm:$0xff]
    %v1568 = vld [vmem:[#allocation6 + $0x1020] sm:$0xff]
    %v1569 = vld [vmem:[#allocation6 + $0x1028] sm:$0xff]
    %v1570 = vld [vmem:[#allocation6 + $0x1030] sm:$0xff]
    %v1571 = vld [vmem:[#allocation6 + $0x1038] sm:$0xff]
    %v1572 = vld [vmem:[#allocation6 + $0x1040] sm:$0xff]
    %v1573 = vld [vmem:[#allocation6 + $0x1048] sm:$0xff]
    %v1574 = vld [vmem:[#allocation6 + $0x1050] sm:$0xff]
    %v1575 = vld [vmem:[#allocation6 + $0x1058] sm:$0xff]
    %v1576 = vld [vmem:[#allocation6 + $0x1060] sm:$0xff]
    %v1577 = vld [vmem:[#allocation6 + $0x1068] sm:$0xff]
    %v1578 = vld [vmem:[#allocation6 + $0x1070] sm:$0xff]
    %v1579 = vld [vmem:[#allocation6 + $0x1078] sm:$0xff]
    %v1580 = vld [vmem:[#allocation6 + $0x1080] sm:$0xff]
    %v1581 = vld [vmem:[#allocation6 + $0x1088] sm:$0xff]
    %v1582 = vld [vmem:[#allocation6 + $0x1090] sm:$0xff]
    %v1583 = vld [vmem:[#allocation6 + $0x1098] sm:$0xff]
    %v1584 = vld [vmem:[#allocation6 + $0x10a0] sm:$0xff]
    %v1585 = vld [vmem:[#allocation6 + $0x10a8] sm:$0xff]
    %v1586 = vld [vmem:[#allocation6 + $0x10b0] sm:$0xff]
    %v1587 = vld [vmem:[#allocation6 + $0x10b8] sm:$0xff]
    %v1588 = vld [vmem:[#allocation6 + $0x10c0] sm:$0xff]
    %v1589 = vld [vmem:[#allocation6 + $0x10c8] sm:$0xff]
    %v1590 = vld [vmem:[#allocation6 + $0x10d0] sm:$0xff]
    %v1591 = vld [vmem:[#allocation6 + $0x10d8] sm:$0xff]
    %v1592 = vld [vmem:[#allocation6 + $0x10e0] sm:$0xff]
    %v1593 = vld [vmem:[#allocation6 + $0x10e8] sm:$0xff]
    %v1594 = vld [vmem:[#allocation6 + $0x10f0] sm:$0xff]
    %v1595 = vld [vmem:[#allocation6 + $0x10f8] sm:$0xff]
    %v1596 = vld [vmem:[#allocation6 + $0x1100] sm:$0xff]
    %v1597 = vld [vmem:[#allocation6 + $0x1108] sm:$0xff]
    %v1598 = vld [vmem:[#allocation6 + $0x1110] sm:$0xff]
    %v1599 = vld [vmem:[#allocation6 + $0x1118] sm:$0xff]
    %v1600 = vld [vmem:[#allocation6 + $0x1120] sm:$0xff]
    %v1601 = vld [vmem:[#allocation6 + $0x1128] sm:$0xff]
    %v1602 = vld [vmem:[#allocation6 + $0x1130] sm:$0xff]
    %v1603 = vld [vmem:[#allocation6 + $0x1138] sm:$0xff]
    %v1604 = vld [vmem:[#allocation6 + $0x1140] sm:$0xff]
    %v1605 = vld [vmem:[#allocation6 + $0x1148] sm:$0xff]
    %v1606 = vld [vmem:[#allocation6 + $0x1150] sm:$0xff]
    %v1607 = vld [vmem:[#allocation6 + $0x1158] sm:$0xff]
    %v1608 = vld [vmem:[#allocation6 + $0x1160] sm:$0xff]
    %v1609 = vld [vmem:[#allocation6 + $0x1168] sm:$0xff]
    %v1610 = vld [vmem:[#allocation6 + $0x1170] sm:$0xff]
    %v1611 = vld [vmem:[#allocation6 + $0x1178] sm:$0xff]
    %v1612 = vld [vmem:[#allocation6 + $0x1180] sm:$0xff]
    %v1613 = vld [vmem:[#allocation6 + $0x1188] sm:$0xff]
    %v1614 = vld [vmem:[#allocation6 + $0x1190] sm:$0xff]
    %v1615 = vld [vmem:[#allocation6 + $0x1198] sm:$0xff]
    %v1616 = vld [vmem:[#allocation6 + $0x11a0] sm:$0xff]
    %v1617 = vld [vmem:[#allocation6 + $0x11a8] sm:$0xff]
    %v1618 = vld [vmem:[#allocation6 + $0x11b0] sm:$0xff]
    %v1619 = vld [vmem:[#allocation6 + $0x11b8] sm:$0xff]
    %v1620 = vld [vmem:[#allocation6 + $0x11c0] sm:$0xff]
    %v1621 = vld [vmem:[#allocation6 + $0x11c8] sm:$0xff]
    %v1622 = vld [vmem:[#allocation6 + $0x11d0] sm:$0xff]
    %v1623 = vld [vmem:[#allocation6 + $0x11d8] sm:$0xff]
    %v1624 = vld [vmem:[#allocation6 + $0x11e0] sm:$0xff]
    %v1625 = vld [vmem:[#allocation6 + $0x11e8] sm:$0xff]
    %v1626 = vld [vmem:[#allocation6 + $0x11f0] sm:$0xff]
    %v1627 = vld [vmem:[#allocation6 + $0x11f8] sm:$0xff]
    %v1628 = vld [vmem:[#allocation6 + $0x1200] sm:$0xff]
    %v1629 = vld [vmem:[#allocation6 + $0x1208] sm:$0xff]
    %v1630 = vld [vmem:[#allocation6 + $0x1210] sm:$0xff]
    %v1631 = vld [vmem:[#allocation6 + $0x1218] sm:$0xff]
    %v1632 = vld [vmem:[#allocation6 + $0x1220] sm:$0xff]
    %v1633 = vld [vmem:[#allocation6 + $0x1228] sm:$0xff]
    %v1634 = vld [vmem:[#allocation6 + $0x1230] sm:$0xff]
    %v1635 = vld [vmem:[#allocation6 + $0x1238] sm:$0xff]
    %v1636 = vld [vmem:[#allocation6 + $0x1240] sm:$0xff]
    %v1637 = vld [vmem:[#allocation6 + $0x1248] sm:$0xff]
    %v1638 = vld [vmem:[#allocation6 + $0x1250] sm:$0xff]
    %v1639 = vld [vmem:[#allocation6 + $0x1258] sm:$0xff]
    %v1640 = vld [vmem:[#allocation6 + $0x1260] sm:$0xff]
    %v1641 = vld [vmem:[#allocation6 + $0x1268] sm:$0xff]
    %v1642 = vld [vmem:[#allocation6 + $0x1270] sm:$0xff]
    %v1643 = vld [vmem:[#allocation6 + $0x1278] sm:$0xff]
    %v1644 = vld [vmem:[#allocation6 + $0x1280] sm:$0xff]
    %v1645 = vld [vmem:[#allocation6 + $0x1288] sm:$0xff]
    %v1646 = vld [vmem:[#allocation6 + $0x1290] sm:$0xff]
    %v1647 = vld [vmem:[#allocation6 + $0x1298] sm:$0xff]
    %v1648 = vld [vmem:[#allocation6 + $0x12a0] sm:$0xff]
    %v1649 = vld [vmem:[#allocation6 + $0x12a8] sm:$0xff]
    %v1650 = vld [vmem:[#allocation6 + $0x12b0] sm:$0xff]
    %v1651 = vld [vmem:[#allocation6 + $0x12b8] sm:$0xff]
    %v1652 = vld [vmem:[#allocation6 + $0x12c0] sm:$0xff]
    %v1653 = vld [vmem:[#allocation6 + $0x12c8] sm:$0xff]
    %v1654 = vld [vmem:[#allocation6 + $0x12d0] sm:$0xff]
    %v1655 = vld [vmem:[#allocation6 + $0x12d8] sm:$0xff]
    %v1656 = vld [vmem:[#allocation6 + $0x12e0] sm:$0xff]
    %v1657 = vld [vmem:[#allocation6 + $0x12e8] sm:$0xff]
    %v1658 = vld [vmem:[#allocation6 + $0x12f0] sm:$0xff]
    %v1659 = vld [vmem:[#allocation6 + $0x12f8] sm:$0xff]
    %v1660 = vld [vmem:[#allocation6 + $0x1300] sm:$0xff]
    %v1661 = vld [vmem:[#allocation6 + $0x1308] sm:$0xff]
    %v1662 = vld [vmem:[#allocation6 + $0x1310] sm:$0xff]
    %v1663 = vld [vmem:[#allocation6 + $0x1318] sm:$0xff]
    %v1664 = vld [vmem:[#allocation6 + $0x1320] sm:$0xff]
    %v1665 = vld [vmem:[#allocation6 + $0x1328] sm:$0xff]
    %v1666 = vld [vmem:[#allocation6 + $0x1330] sm:$0xff]
    %v1667 = vld [vmem:[#allocation6 + $0x1338] sm:$0xff]
    %v1668 = vld [vmem:[#allocation6 + $0x1340] sm:$0xff]
    %v1669 = vld [vmem:[#allocation6 + $0x1348] sm:$0xff]
    %v1670 = vld [vmem:[#allocation6 + $0x1350] sm:$0xff]
    %v1671 = vld [vmem:[#allocation6 + $0x1358] sm:$0xff]
    %v1672 = vld [vmem:[#allocation6 + $0x1360] sm:$0xff]
    %v1673 = vld [vmem:[#allocation6 + $0x1368] sm:$0xff]
    %v1674 = vld [vmem:[#allocation6 + $0x1370] sm:$0xff]
    %v1675 = vld [vmem:[#allocation6 + $0x1378] sm:$0xff]
    %v1676 = vld [vmem:[#allocation6 + $0x1380] sm:$0xff]
    %v1677 = vld [vmem:[#allocation6 + $0x1388] sm:$0xff]
    %v1678 = vld [vmem:[#allocation6 + $0x1390] sm:$0xff]
    %v1679 = vld [vmem:[#allocation6 + $0x1398] sm:$0xff]
    %v1680 = vld [vmem:[#allocation6 + $0x13a0] sm:$0xff]
    %v1681 = vld [vmem:[#allocation6 + $0x13a8] sm:$0xff]
    %v1682 = vld [vmem:[#allocation6 + $0x13b0] sm:$0xff]
    %v1683 = vld [vmem:[#allocation6 + $0x13b8] sm:$0xff]
    %v1684 = vld [vmem:[#allocation6 + $0x13c0] sm:$0xff]
    %v1685 = vld [vmem:[#allocation6 + $0x13c8] sm:$0xff]
    %v1686 = vld [vmem:[#allocation6 + $0x13d0] sm:$0xff]
    %v1687 = vld [vmem:[#allocation6 + $0x13d8] sm:$0xff]
    %v1688 = vld [vmem:[#allocation6 + $0x13e0] sm:$0xff]
    %v1689 = vld [vmem:[#allocation6 + $0x13e8] sm:$0xff]
    %v1690 = vld [vmem:[#allocation6 + $0x13f0] sm:$0xff]
    %v1691 = vld [vmem:[#allocation6 + $0x13f8] sm:$0xff]
    %v1692 = vld [vmem:[#allocation6 + $0x1400] sm:$0xff]
    %v1693 = vld [vmem:[#allocation6 + $0x1408] sm:$0xff]
    %v1694 = vld [vmem:[#allocation6 + $0x1410] sm:$0xff]
    %v1695 = vld [vmem:[#allocation6 + $0x1418] sm:$0xff]
    %v1696 = vld [vmem:[#allocation6 + $0x1420] sm:$0xff]
    %v1697 = vld [vmem:[#allocation6 + $0x1428] sm:$0xff]
    %v1698 = vld [vmem:[#allocation6 + $0x1430] sm:$0xff]
    %v1699 = vld [vmem:[#allocation6 + $0x1438] sm:$0xff]
    %v1700 = vld [vmem:[#allocation6 + $0x1440] sm:$0xff]
    %v1701 = vld [vmem:[#allocation6 + $0x1448] sm:$0xff]
    %v1702 = vld [vmem:[#allocation6 + $0x1450] sm:$0xff]
    %v1703 = vld [vmem:[#allocation6 + $0x1458] sm:$0xff]
    %v1704 = vld [vmem:[#allocation6 + $0x1460] sm:$0xff]
    %v1705 = vld [vmem:[#allocation6 + $0x1468] sm:$0xff]
    %v1706 = vld [vmem:[#allocation6 + $0x1470] sm:$0xff]
    %v1707 = vld [vmem:[#allocation6 + $0x1478] sm:$0xff]
    %v1708 = vld [vmem:[#allocation6 + $0x1480] sm:$0xff]
    %v1709 = vld [vmem:[#allocation6 + $0x1488] sm:$0xff]
    %v1710 = vld [vmem:[#allocation6 + $0x1490] sm:$0xff]
    %v1711 = vld [vmem:[#allocation6 + $0x1498] sm:$0xff]
    %v1712 = vld [vmem:[#allocation6 + $0x14a0] sm:$0xff]
    %v1713 = vld [vmem:[#allocation6 + $0x14a8] sm:$0xff]
    %v1714 = vld [vmem:[#allocation6 + $0x14b0] sm:$0xff]
    %v1715 = vld [vmem:[#allocation6 + $0x14b8] sm:$0xff]
    %v1716 = vld [vmem:[#allocation6 + $0x14c0] sm:$0xff]
    %v1717 = vld [vmem:[#allocation6 + $0x14c8] sm:$0xff]
    %v1718 = vld [vmem:[#allocation6 + $0x14d0] sm:$0xff]
    %v1719 = vld [vmem:[#allocation6 + $0x14d8] sm:$0xff]
    %v1720 = vld [vmem:[#allocation6 + $0x14e0] sm:$0xff]
    %v1721 = vld [vmem:[#allocation6 + $0x14e8] sm:$0xff]
    %v1722 = vld [vmem:[#allocation6 + $0x14f0] sm:$0xff]
    %v1723 = vld [vmem:[#allocation6 + $0x14f8] sm:$0xff]
    %v1724 = vld [vmem:[#allocation6 + $0x1500] sm:$0xff]
    %v1725 = vld [vmem:[#allocation6 + $0x1508] sm:$0xff]
    %v1726 = vld [vmem:[#allocation6 + $0x1510] sm:$0xff]
    %v1727 = vld [vmem:[#allocation6 + $0x1518] sm:$0xff]
    %v1728 = vld [vmem:[#allocation6 + $0x1520] sm:$0xff]
    %v1729 = vld [vmem:[#allocation6 + $0x1528] sm:$0xff]
    %v1730 = vld [vmem:[#allocation6 + $0x1530] sm:$0xff]
    %v1731 = vld [vmem:[#allocation6 + $0x1538] sm:$0xff]
    %v1732 = vld [vmem:[#allocation6 + $0x1540] sm:$0xff]
    %v1733 = vld [vmem:[#allocation6 + $0x1548] sm:$0xff]
    %v1734 = vld [vmem:[#allocation6 + $0x1550] sm:$0xff]
    %v1735 = vld [vmem:[#allocation6 + $0x1558] sm:$0xff]
    %v1736 = vld [vmem:[#allocation6 + $0x1560] sm:$0xff]
    %v1737 = vld [vmem:[#allocation6 + $0x1568] sm:$0xff]
    %v1738 = vld [vmem:[#allocation6 + $0x1570] sm:$0xff]
    %v1739 = vld [vmem:[#allocation6 + $0x1578] sm:$0xff]
    %v1740 = vld [vmem:[#allocation6 + $0x1580] sm:$0xff]
    %v1741 = vld [vmem:[#allocation6 + $0x1588] sm:$0xff]
    %v1742 = vld [vmem:[#allocation6 + $0x1590] sm:$0xff]
    %v1743 = vld [vmem:[#allocation6 + $0x1598] sm:$0xff]
    %v1744 = vld [vmem:[#allocation6 + $0x15a0] sm:$0xff]
    %v1745 = vld [vmem:[#allocation6 + $0x15a8] sm:$0xff]
    %v1746 = vld [vmem:[#allocation6 + $0x15b0] sm:$0xff]
    %v1747 = vld [vmem:[#allocation6 + $0x15b8] sm:$0xff]
    %v1748 = vld [vmem:[#allocation6 + $0x15c0] sm:$0xff]
    %v1749 = vld [vmem:[#allocation6 + $0x15c8] sm:$0xff]
    %v1750 = vld [vmem:[#allocation6 + $0x15d0] sm:$0xff]
    %v1751 = vld [vmem:[#allocation6 + $0x15d8] sm:$0xff]
    %v1752 = vld [vmem:[#allocation6 + $0x15e0] sm:$0xff]
    %v1753 = vld [vmem:[#allocation6 + $0x15e8] sm:$0xff]
    %v1754 = vld [vmem:[#allocation6 + $0x15f0] sm:$0xff]
    %v1755 = vld [vmem:[#allocation6 + $0x15f8] sm:$0xff]
    %v1756 = vld [vmem:[#allocation6 + $0x1600] sm:$0xff]
    %v1757 = vld [vmem:[#allocation6 + $0x1608] sm:$0xff]
    %v1758 = vld [vmem:[#allocation6 + $0x1610] sm:$0xff]
    %v1759 = vld [vmem:[#allocation6 + $0x1618] sm:$0xff]
    %v1760 = vld [vmem:[#allocation6 + $0x1620] sm:$0xff]
    %v1761 = vld [vmem:[#allocation6 + $0x1628] sm:$0xff]
    %v1762 = vld [vmem:[#allocation6 + $0x1630] sm:$0xff]
    %v1763 = vld [vmem:[#allocation6 + $0x1638] sm:$0xff]
    %v1764 = vld [vmem:[#allocation6 + $0x1640] sm:$0xff]
    %v1765 = vld [vmem:[#allocation6 + $0x1648] sm:$0xff]
    %v1766 = vld [vmem:[#allocation6 + $0x1650] sm:$0xff]
    %v1767 = vld [vmem:[#allocation6 + $0x1658] sm:$0xff]
    %v1768 = vld [vmem:[#allocation6 + $0x1660] sm:$0xff]
    %v1769 = vld [vmem:[#allocation6 + $0x1668] sm:$0xff]
    %v1770 = vld [vmem:[#allocation6 + $0x1670] sm:$0xff]
    %v1771 = vld [vmem:[#allocation6 + $0x1678] sm:$0xff]
    %v1772 = vld [vmem:[#allocation6 + $0x1680] sm:$0xff]
    %v1773 = vld [vmem:[#allocation6 + $0x1688] sm:$0xff]
    %v1774 = vld [vmem:[#allocation6 + $0x1690] sm:$0xff]
    %v1775 = vld [vmem:[#allocation6 + $0x1698] sm:$0xff]
    %v1776 = vld [vmem:[#allocation6 + $0x16a0] sm:$0xff]
    %v1777 = vld [vmem:[#allocation6 + $0x16a8] sm:$0xff]
    %v1778 = vld [vmem:[#allocation6 + $0x16b0] sm:$0xff]
    %v1779 = vld [vmem:[#allocation6 + $0x16b8] sm:$0xff]
    %v1780 = vld [vmem:[#allocation6 + $0x16c0] sm:$0xff]
    %v1781 = vld [vmem:[#allocation6 + $0x16c8] sm:$0xff]
    %v1782 = vld [vmem:[#allocation6 + $0x16d0] sm:$0xff]
    %v1783 = vld [vmem:[#allocation6 + $0x16d8] sm:$0xff]
    %v1784 = vld [vmem:[#allocation6 + $0x16e0] sm:$0xff]
    %v1785 = vld [vmem:[#allocation6 + $0x16e8] sm:$0xff]
    %v1786 = vld [vmem:[#allocation6 + $0x16f0] sm:$0xff]
    %v1787 = vld [vmem:[#allocation6 + $0x16f8] sm:$0xff]
    %v1788 = vld [vmem:[#allocation6 + $0x1700] sm:$0xff]
    %v1789 = vld [vmem:[#allocation6 + $0x1708] sm:$0xff]
    %v1790 = vld [vmem:[#allocation6 + $0x1710] sm:$0xff]
    %v1791 = vld [vmem:[#allocation6 + $0x1718] sm:$0xff]
    %v1792 = vld [vmem:[#allocation6 + $0x1720] sm:$0xff]
    %v1793 = vld [vmem:[#allocation6 + $0x1728] sm:$0xff]
    %v1794 = vld [vmem:[#allocation6 + $0x1730] sm:$0xff]
    %v1795 = vld [vmem:[#allocation6 + $0x1738] sm:$0xff]
    %v1796 = vld [vmem:[#allocation6 + $0x1740] sm:$0xff]
    %v1797 = vld [vmem:[#allocation6 + $0x1748] sm:$0xff]
    %v1798 = vld [vmem:[#allocation6 + $0x1750] sm:$0xff]
    %v1799 = vld [vmem:[#allocation6 + $0x1758] sm:$0xff]
    %v1800 = vld [vmem:[#allocation6 + $0x1760] sm:$0xff]
    %v1801 = vld [vmem:[#allocation6 + $0x1768] sm:$0xff]
    %v1802 = vld [vmem:[#allocation6 + $0x1770] sm:$0xff]
    %v1803 = vld [vmem:[#allocation6 + $0x1778] sm:$0xff]
    %v1804 = vld [vmem:[#allocation6 + $0x1780] sm:$0xff]
    %v1805 = vld [vmem:[#allocation6 + $0x1788] sm:$0xff]
    %v1806 = vld [vmem:[#allocation6 + $0x1790] sm:$0xff]
    %v1807 = vld [vmem:[#allocation6 + $0x1798] sm:$0xff]
    %v1808 = vld [vmem:[#allocation6 + $0x17a0] sm:$0xff]
    %v1809 = vld [vmem:[#allocation6 + $0x17a8] sm:$0xff]
    %v1810 = vld [vmem:[#allocation6 + $0x17b0] sm:$0xff]
    %v1811 = vld [vmem:[#allocation6 + $0x17b8] sm:$0xff]
    %v1812 = vld [vmem:[#allocation6 + $0x17c0] sm:$0xff]
    %v1813 = vld [vmem:[#allocation6 + $0x17c8] sm:$0xff]
    %v1814 = vld [vmem:[#allocation6 + $0x17d0] sm:$0xff]
    %v1815 = vld [vmem:[#allocation6 + $0x17d8] sm:$0xff]
    %v1816 = vld [vmem:[#allocation6 + $0x17e0] sm:$0xff]
    %v1817 = vld [vmem:[#allocation6 + $0x17e8] sm:$0xff]
    %v1818 = vld [vmem:[#allocation6 + $0x17f0] sm:$0xff]
    %v1819 = vld [vmem:[#allocation6 + $0x17f8] sm:$0xff]
    %v1820 = vld [vmem:[#allocation6 + $0x1800] sm:$0xff]
    %v1821 = vld [vmem:[#allocation6 + $0x1808] sm:$0xff]
    %v1822 = vld [vmem:[#allocation6 + $0x1810] sm:$0xff]
    %v1823 = vld [vmem:[#allocation6 + $0x1818] sm:$0xff]
    %v1824 = vld [vmem:[#allocation6 + $0x1820] sm:$0xff]
    %v1825 = vld [vmem:[#allocation6 + $0x1828] sm:$0xff]
    %v1826 = vld [vmem:[#allocation6 + $0x1830] sm:$0xff]
    %v1827 = vld [vmem:[#allocation6 + $0x1838] sm:$0xff]
    %v1828 = vld [vmem:[#allocation6 + $0x1840] sm:$0xff]
    %v1829 = vld [vmem:[#allocation6 + $0x1848] sm:$0xff]
    %v1830 = vld [vmem:[#allocation6 + $0x1850] sm:$0xff]
    %v1831 = vld [vmem:[#allocation6 + $0x1858] sm:$0xff]
    %v1832 = vld [vmem:[#allocation6 + $0x1860] sm:$0xff]
    %v1833 = vld [vmem:[#allocation6 + $0x1868] sm:$0xff]
    %v1834 = vld [vmem:[#allocation6 + $0x1870] sm:$0xff]
    %v1835 = vld [vmem:[#allocation6 + $0x1878] sm:$0xff]
    %v1836 = vld [vmem:[#allocation6 + $0x1880] sm:$0xff]
    %v1837 = vld [vmem:[#allocation6 + $0x1888] sm:$0xff]
    %v1838 = vld [vmem:[#allocation6 + $0x1890] sm:$0xff]
    %v1839 = vld [vmem:[#allocation6 + $0x1898] sm:$0xff]
    %v1840 = vld [vmem:[#allocation6 + $0x18a0] sm:$0xff]
    %v1841 = vld [vmem:[#allocation6 + $0x18a8] sm:$0xff]
    %v1842 = vld [vmem:[#allocation6 + $0x18b0] sm:$0xff]
    %v1843 = vld [vmem:[#allocation6 + $0x18b8] sm:$0xff]
    %v1844 = vld [vmem:[#allocation6 + $0x18c0] sm:$0xff]
    %v1845 = vld [vmem:[#allocation6 + $0x18c8] sm:$0xff]
    %v1846 = vld [vmem:[#allocation6 + $0x18d0] sm:$0xff]
    %v1847 = vld [vmem:[#allocation6 + $0x18d8] sm:$0xff]
    %v1848 = vld [vmem:[#allocation6 + $0x18e0] sm:$0xff]
    %v1849 = vld [vmem:[#allocation6 + $0x18e8] sm:$0xff]
    %v1850 = vld [vmem:[#allocation6 + $0x18f0] sm:$0xff]
    %v1851 = vld [vmem:[#allocation6 + $0x18f8] sm:$0xff]
    %v1852 = vld [vmem:[#allocation6 + $0x1900] sm:$0xff]
    %v1853 = vld [vmem:[#allocation6 + $0x1908] sm:$0xff]
    %v1854 = vld [vmem:[#allocation6 + $0x1910] sm:$0xff]
    %v1855 = vld [vmem:[#allocation6 + $0x1918] sm:$0xff]
    %v1856 = vld [vmem:[#allocation6 + $0x1920] sm:$0xff]
    %v1857 = vld [vmem:[#allocation6 + $0x1928] sm:$0xff]
    %v1858 = vld [vmem:[#allocation6 + $0x1930] sm:$0xff]
    %v1859 = vld [vmem:[#allocation6 + $0x1938] sm:$0xff]
    %v1860 = vld [vmem:[#allocation6 + $0x1940] sm:$0xff]
    %v1861 = vld [vmem:[#allocation6 + $0x1948] sm:$0xff]
    %v1862 = vld [vmem:[#allocation6 + $0x1950] sm:$0xff]
    %v1863 = vld [vmem:[#allocation6 + $0x1958] sm:$0xff]
    %v1864 = vld [vmem:[#allocation6 + $0x1960] sm:$0xff]
    %v1865 = vld [vmem:[#allocation6 + $0x1968] sm:$0xff]
    %v1866 = vld [vmem:[#allocation6 + $0x1970] sm:$0xff]
    %v1867 = vld [vmem:[#allocation6 + $0x1978] sm:$0xff]
    %v1868 = vld [vmem:[#allocation6 + $0x1980] sm:$0xff]
    %v1869 = vld [vmem:[#allocation6 + $0x1988] sm:$0xff]
    %v1870 = vld [vmem:[#allocation6 + $0x1990] sm:$0xff]
    %v1871 = vld [vmem:[#allocation6 + $0x1998] sm:$0xff]
    %v1872 = vld [vmem:[#allocation6 + $0x19a0] sm:$0xff]
    %v1873 = vld [vmem:[#allocation6 + $0x19a8] sm:$0xff]
    %v1874 = vld [vmem:[#allocation6 + $0x19b0] sm:$0xff]
    %v1875 = vld [vmem:[#allocation6 + $0x19b8] sm:$0xff]
    %v1876 = vld [vmem:[#allocation6 + $0x19c0] sm:$0xff]
    %v1877 = vld [vmem:[#allocation6 + $0x19c8] sm:$0xff]
    %v1878 = vld [vmem:[#allocation6 + $0x19d0] sm:$0xff]
    %v1879 = vld [vmem:[#allocation6 + $0x19d8] sm:$0xff]
    %v1880 = vld [vmem:[#allocation6 + $0x19e0] sm:$0xff]
    %v1881 = vld [vmem:[#allocation6 + $0x19e8] sm:$0xff]
    %v1882 = vld [vmem:[#allocation6 + $0x19f0] sm:$0xff]
    %v1883 = vld [vmem:[#allocation6 + $0x19f8] sm:$0xff]
    %v1884 = vld [vmem:[#allocation6 + $0x1a00] sm:$0xff]
    %v1885 = vld [vmem:[#allocation6 + $0x1a08] sm:$0xff]
    %v1886 = vld [vmem:[#allocation6 + $0x1a10] sm:$0xff]
    %v1887 = vld [vmem:[#allocation6 + $0x1a18] sm:$0xff]
    %v1888 = vld [vmem:[#allocation6 + $0x1a20] sm:$0xff]
    %v1889 = vld [vmem:[#allocation6 + $0x1a28] sm:$0xff]
    %v1890 = vld [vmem:[#allocation6 + $0x1a30] sm:$0xff]
    %v1891 = vld [vmem:[#allocation6 + $0x1a38] sm:$0xff]
    %v1892 = vld [vmem:[#allocation6 + $0x1a40] sm:$0xff]
    %v1893 = vld [vmem:[#allocation6 + $0x1a48] sm:$0xff]
    %v1894 = vld [vmem:[#allocation6 + $0x1a50] sm:$0xff]
    %v1895 = vld [vmem:[#allocation6 + $0x1a58] sm:$0xff]
    %v1896 = vld [vmem:[#allocation6 + $0x1a60] sm:$0xff]
    %v1897 = vld [vmem:[#allocation6 + $0x1a68] sm:$0xff]
    %v1898 = vld [vmem:[#allocation6 + $0x1a70] sm:$0xff]
    %v1899 = vld [vmem:[#allocation6 + $0x1a78] sm:$0xff]
    %v1900 = vld [vmem:[#allocation6 + $0x1a80] sm:$0xff]
    %v1901 = vld [vmem:[#allocation6 + $0x1a88] sm:$0xff]
    %v1902 = vld [vmem:[#allocation6 + $0x1a90] sm:$0xff]
    %v1903 = vld [vmem:[#allocation6 + $0x1a98] sm:$0xff]
    %v1904 = vld [vmem:[#allocation6 + $0x1aa0] sm:$0xff]
    %v1905 = vld [vmem:[#allocation6 + $0x1aa8] sm:$0xff]
    %v1906 = vld [vmem:[#allocation6 + $0x1ab0] sm:$0xff]
    %v1907 = vld [vmem:[#allocation6 + $0x1ab8] sm:$0xff]
    %v1908 = vld [vmem:[#allocation6 + $0x1ac0] sm:$0xff]
    %v1909 = vld [vmem:[#allocation6 + $0x1ac8] sm:$0xff]
    %v1910 = vld [vmem:[#allocation6 + $0x1ad0] sm:$0xff]
    %v1911 = vld [vmem:[#allocation6 + $0x1ad8] sm:$0xff]
    %v1912 = vld [vmem:[#allocation6 + $0x1ae0] sm:$0xff]
    %v1913 = vld [vmem:[#allocation6 + $0x1ae8] sm:$0xff]
    %v1914 = vld [vmem:[#allocation6 + $0x1af0] sm:$0xff]
    %v1915 = vld [vmem:[#allocation6 + $0x1af8] sm:$0xff]
    %v1916 = vld [vmem:[#allocation6 + $0x1b00] sm:$0xff]
    %v1917 = vld [vmem:[#allocation6 + $0x1b08] sm:$0xff]
    %v1918 = vld [vmem:[#allocation6 + $0x1b10] sm:$0xff]
    %v1919 = vld [vmem:[#allocation6 + $0x1b18] sm:$0xff]
    %v1920 = vld [vmem:[#allocation6 + $0x1b20] sm:$0xff]
    %v1921 = vld [vmem:[#allocation6 + $0x1b28] sm:$0xff]
    %v1922 = vld [vmem:[#allocation6 + $0x1b30] sm:$0xff]
    %v1923 = vld [vmem:[#allocation6 + $0x1b38] sm:$0xff]
    %v1924 = vld [vmem:[#allocation6 + $0x1b40] sm:$0xff]
    %v1925 = vld [vmem:[#allocation6 + $0x1b48] sm:$0xff]
    %v1926 = vld [vmem:[#allocation6 + $0x1b50] sm:$0xff]
    %v1927 = vld [vmem:[#allocation6 + $0x1b58] sm:$0xff]
    %v1928 = vld [vmem:[#allocation6 + $0x1b60] sm:$0xff]
    %v1929 = vld [vmem:[#allocation6 + $0x1b68] sm:$0xff]
    %v1930 = vld [vmem:[#allocation6 + $0x1b70] sm:$0xff]
    %v1931 = vld [vmem:[#allocation6 + $0x1b78] sm:$0xff]
    %v1932 = vld [vmem:[#allocation6 + $0x1b80] sm:$0xff]
    %v1933 = vld [vmem:[#allocation6 + $0x1b88] sm:$0xff]
    %v1934 = vld [vmem:[#allocation6 + $0x1b90] sm:$0xff]
    %v1935 = vld [vmem:[#allocation6 + $0x1b98] sm:$0xff]
    %v1936 = vld [vmem:[#allocation6 + $0x1ba0] sm:$0xff]
    %v1937 = vld [vmem:[#allocation6 + $0x1ba8] sm:$0xff]
    %v1938 = vld [vmem:[#allocation6 + $0x1bb0] sm:$0xff]
    %v1939 = vld [vmem:[#allocation6 + $0x1bb8] sm:$0xff]
    %v1940 = vld [vmem:[#allocation6 + $0x1bc0] sm:$0xff]
    %v1941 = vld [vmem:[#allocation6 + $0x1bc8] sm:$0xff]
    %v1942 = vld [vmem:[#allocation6 + $0x1bd0] sm:$0xff]
    %v1943 = vld [vmem:[#allocation6 + $0x1bd8] sm:$0xff]
    %v1944 = vld [vmem:[#allocation6 + $0x1be0] sm:$0xff]
    %v1945 = vld [vmem:[#allocation6 + $0x1be8] sm:$0xff]
    %v1946 = vld [vmem:[#allocation6 + $0x1bf0] sm:$0xff]
    %v1947 = vld [vmem:[#allocation6 + $0x1bf8] sm:$0xff]
    %v1948 = vld [vmem:[#allocation6 + $0x1c00] sm:$0xff]
    %v1949 = vld [vmem:[#allocation6 + $0x1c08] sm:$0xff]
    %v1950 = vld [vmem:[#allocation6 + $0x1c10] sm:$0xff]
    %v1951 = vld [vmem:[#allocation6 + $0x1c18] sm:$0xff]
    %v1952 = vld [vmem:[#allocation6 + $0x1c20] sm:$0xff]
    %v1953 = vld [vmem:[#allocation6 + $0x1c28] sm:$0xff]
    %v1954 = vld [vmem:[#allocation6 + $0x1c30] sm:$0xff]
    %v1955 = vld [vmem:[#allocation6 + $0x1c38] sm:$0xff]
    %v1956 = vld [vmem:[#allocation6 + $0x1c40] sm:$0xff]
    %v1957 = vld [vmem:[#allocation6 + $0x1c48] sm:$0xff]
    %v1958 = vld [vmem:[#allocation6 + $0x1c50] sm:$0xff]
    %v1959 = vld [vmem:[#allocation6 + $0x1c58] sm:$0xff]
    %v1960 = vld [vmem:[#allocation6 + $0x1c60] sm:$0xff]
    %v1961 = vld [vmem:[#allocation6 + $0x1c68] sm:$0xff]
    %v1962 = vld [vmem:[#allocation6 + $0x1c70] sm:$0xff]
    %v1963 = vld [vmem:[#allocation6 + $0x1c78] sm:$0xff]
    %v1964 = vld [vmem:[#allocation6 + $0x1c80] sm:$0xff]
    %v1965 = vld [vmem:[#allocation6 + $0x1c88] sm:$0xff]
    %v1966 = vld [vmem:[#allocation6 + $0x1c90] sm:$0xff]
    %v1967 = vld [vmem:[#allocation6 + $0x1c98] sm:$0xff]
    %v1968 = vld [vmem:[#allocation6 + $0x1ca0] sm:$0xff]
    %v1969 = vld [vmem:[#allocation6 + $0x1ca8] sm:$0xff]
    %v1970 = vld [vmem:[#allocation6 + $0x1cb0] sm:$0xff]
    %v1971 = vld [vmem:[#allocation6 + $0x1cb8] sm:$0xff]
    %v1972 = vld [vmem:[#allocation6 + $0x1cc0] sm:$0xff]
    %v1973 = vld [vmem:[#allocation6 + $0x1cc8] sm:$0xff]
    %v1974 = vld [vmem:[#allocation6 + $0x1cd0] sm:$0xff]
    %v1975 = vld [vmem:[#allocation6 + $0x1cd8] sm:$0xff]
    %v1976 = vld [vmem:[#allocation6 + $0x1ce0] sm:$0xff]
    %v1977 = vld [vmem:[#allocation6 + $0x1ce8] sm:$0xff]
    %v1978 = vld [vmem:[#allocation6 + $0x1cf0] sm:$0xff]
    %v1979 = vld [vmem:[#allocation6 + $0x1cf8] sm:$0xff]
    %v1980 = vld [vmem:[#allocation6 + $0x1d00] sm:$0xff]
    %v1981 = vld [vmem:[#allocation6 + $0x1d08] sm:$0xff]
    %v1982 = vld [vmem:[#allocation6 + $0x1d10] sm:$0xff]
    %v1983 = vld [vmem:[#allocation6 + $0x1d18] sm:$0xff]
    %v1984 = vld [vmem:[#allocation6 + $0x1d20] sm:$0xff]
    %v1985 = vld [vmem:[#allocation6 + $0x1d28] sm:$0xff]
    %v1986 = vld [vmem:[#allocation6 + $0x1d30] sm:$0xff]
    %v1987 = vld [vmem:[#allocation6 + $0x1d38] sm:$0xff]
    %v1988 = vld [vmem:[#allocation6 + $0x1d40] sm:$0xff]
    %v1989 = vld [vmem:[#allocation6 + $0x1d48] sm:$0xff]
    %v1990 = vld [vmem:[#allocation6 + $0x1d50] sm:$0xff]
    %v1991 = vld [vmem:[#allocation6 + $0x1d58] sm:$0xff]
    %v1992 = vld [vmem:[#allocation6 + $0x1d60] sm:$0xff]
    %v1993 = vld [vmem:[#allocation6 + $0x1d68] sm:$0xff]
    %v1994 = vld [vmem:[#allocation6 + $0x1d70] sm:$0xff]
    %v1995 = vld [vmem:[#allocation6 + $0x1d78] sm:$0xff]
    %v1996 = vld [vmem:[#allocation6 + $0x1d80] sm:$0xff]
    %v1997 = vld [vmem:[#allocation6 + $0x1d88] sm:$0xff]
    %v1998 = vld [vmem:[#allocation6 + $0x1d90] sm:$0xff]
    %v1999 = vld [vmem:[#allocation6 + $0x1d98] sm:$0xff]
    %v2000 = vld [vmem:[#allocation6 + $0x1da0] sm:$0xff]
    %v2001 = vld [vmem:[#allocation6 + $0x1da8] sm:$0xff]
    %v2002 = vld [vmem:[#allocation6 + $0x1db0] sm:$0xff]
    %v2003 = vld [vmem:[#allocation6 + $0x1db8] sm:$0xff]
    %v2004 = vld [vmem:[#allocation6 + $0x1dc0] sm:$0xff]
    %v2005 = vld [vmem:[#allocation6 + $0x1dc8] sm:$0xff]
    %v2006 = vld [vmem:[#allocation6 + $0x1dd0] sm:$0xff]
    %v2007 = vld [vmem:[#allocation6 + $0x1dd8] sm:$0xff]
    %v2008 = vld [vmem:[#allocation6 + $0x1de0] sm:$0xff]
    %v2009 = vld [vmem:[#allocation6 + $0x1de8] sm:$0xff]
    %v2010 = vld [vmem:[#allocation6 + $0x1df0] sm:$0xff]
    %v2011 = vld [vmem:[#allocation6 + $0x1df8] sm:$0xff]
    %v2012 = vld [vmem:[#allocation6 + $0x1e00] sm:$0xff]
    %v2013 = vld [vmem:[#allocation6 + $0x1e08] sm:$0xff]
    %v2014 = vld [vmem:[#allocation6 + $0x1e10] sm:$0xff]
    %v2015 = vld [vmem:[#allocation6 + $0x1e18] sm:$0xff]
    %v2016 = vld [vmem:[#allocation6 + $0x1e20] sm:$0xff]
    %v2017 = vld [vmem:[#allocation6 + $0x1e28] sm:$0xff]
    %v2018 = vld [vmem:[#allocation6 + $0x1e30] sm:$0xff]
    %v2019 = vld [vmem:[#allocation6 + $0x1e38] sm:$0xff]
    %v2020 = vld [vmem:[#allocation6 + $0x1e40] sm:$0xff]
    %v2021 = vld [vmem:[#allocation6 + $0x1e48] sm:$0xff]
    %v2022 = vld [vmem:[#allocation6 + $0x1e50] sm:$0xff]
    %v2023 = vld [vmem:[#allocation6 + $0x1e58] sm:$0xff]
    %v2024 = vld [vmem:[#allocation6 + $0x1e60] sm:$0xff]
    %v2025 = vld [vmem:[#allocation6 + $0x1e68] sm:$0xff]
    %v2026 = vld [vmem:[#allocation6 + $0x1e70] sm:$0xff]
    %v2027 = vld [vmem:[#allocation6 + $0x1e78] sm:$0xff]
    %v2028 = vld [vmem:[#allocation6 + $0x1e80] sm:$0xff]
    %v2029 = vld [vmem:[#allocation6 + $0x1e88] sm:$0xff]
    %v2030 = vld [vmem:[#allocation6 + $0x1e90] sm:$0xff]
    %v2031 = vld [vmem:[#allocation6 + $0x1e98] sm:$0xff]
    %v2032 = vld [vmem:[#allocation6 + $0x1ea0] sm:$0xff]
    %v2033 = vld [vmem:[#allocation6 + $0x1ea8] sm:$0xff]
    %v2034 = vld [vmem:[#allocation6 + $0x1eb0] sm:$0xff]
    %v2035 = vld [vmem:[#allocation6 + $0x1eb8] sm:$0xff]
    %v2036 = vld [vmem:[#allocation6 + $0x1ec0] sm:$0xff]
    %v2037 = vld [vmem:[#allocation6 + $0x1ec8] sm:$0xff]
    %v2038 = vld [vmem:[#allocation6 + $0x1ed0] sm:$0xff]
    %v2039 = vld [vmem:[#allocation6 + $0x1ed8] sm:$0xff]
    %v2040 = vld [vmem:[#allocation6 + $0x1ee0] sm:$0xff]
    %v2041 = vld [vmem:[#allocation6 + $0x1ee8] sm:$0xff]
    %v2042 = vld [vmem:[#allocation6 + $0x1ef0] sm:$0xff]
    %v2043 = vld [vmem:[#allocation6 + $0x1ef8] sm:$0xff]
    %v2044 = vld [vmem:[#allocation6 + $0x1f00] sm:$0xff]
    %v2045 = vld [vmem:[#allocation6 + $0x1f08] sm:$0xff]
    %v2046 = vld [vmem:[#allocation6 + $0x1f10] sm:$0xff]
    %v2047 = vld [vmem:[#allocation6 + $0x1f18] sm:$0xff]
    %v2048 = vld [vmem:[#allocation6 + $0x1f20] sm:$0xff]
    %v2049 = vld [vmem:[#allocation6 + $0x1f28] sm:$0xff]
    %v2050 = vld [vmem:[#allocation6 + $0x1f30] sm:$0xff]
    %v2051 = vld [vmem:[#allocation6 + $0x1f38] sm:$0xff]
    %v2052 = vld [vmem:[#allocation6 + $0x1f40] sm:$0xff]
    %v2053 = vld [vmem:[#allocation6 + $0x1f48] sm:$0xff]
    %v2054 = vld [vmem:[#allocation6 + $0x1f50] sm:$0xff]
    %v2055 = vld [vmem:[#allocation6 + $0x1f58] sm:$0xff]
    %v2056 = vld [vmem:[#allocation6 + $0x1f60] sm:$0xff]
    %v2057 = vld [vmem:[#allocation6 + $0x1f68] sm:$0xff]
    %v2058 = vld [vmem:[#allocation6 + $0x1f70] sm:$0xff]
    %v2059 = vld [vmem:[#allocation6 + $0x1f78] sm:$0xff]
    %v2060 = vld [vmem:[#allocation6 + $0x1f80] sm:$0xff]
    %v2061 = vld [vmem:[#allocation6 + $0x1f88] sm:$0xff]
    %v2062 = vld [vmem:[#allocation6 + $0x1f90] sm:$0xff]
    %v2063 = vld [vmem:[#allocation6 + $0x1f98] sm:$0xff]
    %v2064 = vld [vmem:[#allocation6 + $0x1fa0] sm:$0xff]
    %v2065 = vld [vmem:[#allocation6 + $0x1fa8] sm:$0xff]
    %v2066 = vld [vmem:[#allocation6 + $0x1fb0] sm:$0xff]
    %v2067 = vld [vmem:[#allocation6 + $0x1fb8] sm:$0xff]
    %v2068 = vld [vmem:[#allocation6 + $0x1fc0] sm:$0xff]
    %v2069 = vld [vmem:[#allocation6 + $0x1fc8] sm:$0xff]
    %v2070 = vld [vmem:[#allocation6 + $0x1fd0] sm:$0xff]
    %v2071 = vld [vmem:[#allocation6 + $0x1fd8] sm:$0xff]
    %v2072 = vld [vmem:[#allocation6 + $0x1fe0] sm:$0xff]
    %v2073 = vld [vmem:[#allocation6 + $0x1fe8] sm:$0xff]
    %v2074 = vld [vmem:[#allocation6 + $0x1ff0] sm:$0xff]
    %v2075 = vld [vmem:[#allocation6 + $0x1ff8] sm:$0xff]
    %v2076 = vld [vmem:[#allocation6 + $0x2000] sm:$0xff]
    %v2077 = vld [vmem:[#allocation6 + $0x2008] sm:$0xff]
    %v2078 = vld [vmem:[#allocation6 + $0x2010] sm:$0xff]
    %v2079 = vld [vmem:[#allocation6 + $0x2018] sm:$0xff]
    %v2080 = vld [vmem:[#allocation6 + $0x2020] sm:$0xff]
    %v2081 = vld [vmem:[#allocation6 + $0x2028] sm:$0xff]
    %v2082 = vld [vmem:[#allocation6 + $0x2030] sm:$0xff]
    %v2083 = vld [vmem:[#allocation6 + $0x2038] sm:$0xff]
    %v2084 = vld [vmem:[#allocation6 + $0x2040] sm:$0xff]
    %v2085 = vld [vmem:[#allocation6 + $0x2048] sm:$0xff]
    %v2086 = vld [vmem:[#allocation6 + $0x2050] sm:$0xff]
    %v2087 = vld [vmem:[#allocation6 + $0x2058] sm:$0xff]
    %v2088 = vld [vmem:[#allocation6 + $0x2060] sm:$0xff]
    %v2089 = vld [vmem:[#allocation6 + $0x2068] sm:$0xff]
    %v2090 = vld [vmem:[#allocation6 + $0x2070] sm:$0xff]
    %v2091 = vld [vmem:[#allocation6 + $0x2078] sm:$0xff]
    %v2092 = vld [vmem:[#allocation6 + $0x2080] sm:$0xff]
    %v2093 = vld [vmem:[#allocation6 + $0x2088] sm:$0xff]
    %v2094 = vld [vmem:[#allocation6 + $0x2090] sm:$0xff]
    %v2095 = vld [vmem:[#allocation6 + $0x2098] sm:$0xff]
    %v2096 = vld [vmem:[#allocation6 + $0x20a0] sm:$0xff]
    %v2097 = vld [vmem:[#allocation6 + $0x20a8] sm:$0xff]
    %v2098 = vld [vmem:[#allocation6 + $0x20b0] sm:$0xff]
    %v2099 = vld [vmem:[#allocation6 + $0x20b8] sm:$0xff]
    %v2100 = vld [vmem:[#allocation6 + $0x20c0] sm:$0xff]
    %v2101 = vld [vmem:[#allocation6 + $0x20c8] sm:$0xff]
    %v2102 = vld [vmem:[#allocation6 + $0x20d0] sm:$0xff]
    %v2103 = vld [vmem:[#allocation6 + $0x20d8] sm:$0xff]
    %v2104 = vld [vmem:[#allocation6 + $0x20e0] sm:$0xff]
    %v2105 = vld [vmem:[#allocation6 + $0x20e8] sm:$0xff]
    %v2106 = vld [vmem:[#allocation6 + $0x20f0] sm:$0xff]
    %v2107 = vld [vmem:[#allocation6 + $0x20f8] sm:$0xff]
    %v2108 = vld [vmem:[#allocation6 + $0x2100] sm:$0xff]
    %v2109 = vld [vmem:[#allocation6 + $0x2108] sm:$0xff]
    %v2110 = vld [vmem:[#allocation6 + $0x2110] sm:$0xff]
    %v2111 = vld [vmem:[#allocation6 + $0x2118] sm:$0xff]
    %v2112 = vld [vmem:[#allocation6 + $0x2120] sm:$0xff]
    %v2113 = vld [vmem:[#allocation6 + $0x2128] sm:$0xff]
    %v2114 = vld [vmem:[#allocation6 + $0x2130] sm:$0xff]
    %v2115 = vld [vmem:[#allocation6 + $0x2138] sm:$0xff]
    %v2116 = vld [vmem:[#allocation6 + $0x2140] sm:$0xff]
    %v2117 = vld [vmem:[#allocation6 + $0x2148] sm:$0xff]
    %v2118 = vld [vmem:[#allocation6 + $0x2150] sm:$0xff]
    %v2119 = vld [vmem:[#allocation6 + $0x2158] sm:$0xff]
    %v2120 = vld [vmem:[#allocation6 + $0x2160] sm:$0xff]
    %v2121 = vld [vmem:[#allocation6 + $0x2168] sm:$0xff]
    %v2122 = vld [vmem:[#allocation6 + $0x2170] sm:$0xff]
    %v2123 = vld [vmem:[#allocation6 + $0x2178] sm:$0xff]
    %v2124 = vld [vmem:[#allocation6 + $0x2180] sm:$0xff]
    %v2125 = vld [vmem:[#allocation6 + $0x2188] sm:$0xff]
    %v2126 = vld [vmem:[#allocation6 + $0x2190] sm:$0xff]
    %v2127 = vld [vmem:[#allocation6 + $0x2198] sm:$0xff]
    %v2128 = vld [vmem:[#allocation6 + $0x21a0] sm:$0xff]
    %v2129 = vld [vmem:[#allocation6 + $0x21a8] sm:$0xff]
    %v2130 = vld [vmem:[#allocation6 + $0x21b0] sm:$0xff]
    %v2131 = vld [vmem:[#allocation6 + $0x21b8] sm:$0xff]
    %v2132 = vld [vmem:[#allocation6 + $0x21c0] sm:$0xff]
    %v2133 = vld [vmem:[#allocation6 + $0x21c8] sm:$0xff]
    %v2134 = vld [vmem:[#allocation6 + $0x21d0] sm:$0xff]
    %v2135 = vld [vmem:[#allocation6 + $0x21d8] sm:$0xff]
    %v2136 = vld [vmem:[#allocation6 + $0x21e0] sm:$0xff]
    %v2137 = vld [vmem:[#allocation6 + $0x21e8] sm:$0xff]
    %v2138 = vld [vmem:[#allocation6 + $0x21f0] sm:$0xff]
    %v2139 = vld [vmem:[#allocation6 + $0x21f8] sm:$0xff]
    %v2140 = vld [vmem:[#allocation6 + $0x2200] sm:$0xff]
    %v2141 = vld [vmem:[#allocation6 + $0x2208] sm:$0xff]
    %v2142 = vld [vmem:[#allocation6 + $0x2210] sm:$0xff]
    %v2143 = vld [vmem:[#allocation6 + $0x2218] sm:$0xff]
    %v2144 = vld [vmem:[#allocation6 + $0x2220] sm:$0xff]
    %v2145 = vld [vmem:[#allocation6 + $0x2228] sm:$0xff]
    %v2146 = vld [vmem:[#allocation6 + $0x2230] sm:$0xff]
    %v2147 = vld [vmem:[#allocation6 + $0x2238] sm:$0xff]
    %v2148 = vld [vmem:[#allocation6 + $0x2240] sm:$0xff]
    %v2149 = vld [vmem:[#allocation6 + $0x2248] sm:$0xff]
    %v2150 = vld [vmem:[#allocation6 + $0x2250] sm:$0xff]
    %v2151 = vld [vmem:[#allocation6 + $0x2258] sm:$0xff]
    %v2152 = vld [vmem:[#allocation6 + $0x2260] sm:$0xff]
    %v2153 = vld [vmem:[#allocation6 + $0x2268] sm:$0xff]
    %v2154 = vld [vmem:[#allocation6 + $0x2270] sm:$0xff]
    %v2155 = vld [vmem:[#allocation6 + $0x2278] sm:$0xff]
    %v2156 = vld [vmem:[#allocation6 + $0x2280] sm:$0xff]
    %v2157 = vld [vmem:[#allocation6 + $0x2288] sm:$0xff]
    %v2158 = vld [vmem:[#allocation6 + $0x2290] sm:$0xff]
    %v2159 = vld [vmem:[#allocation6 + $0x2298] sm:$0xff]
    %v2160 = vld [vmem:[#allocation6 + $0x22a0] sm:$0xff]
    %v2161 = vld [vmem:[#allocation6 + $0x22a8] sm:$0xff]
    %v2162 = vld [vmem:[#allocation6 + $0x22b0] sm:$0xff]
    %v2163 = vld [vmem:[#allocation6 + $0x22b8] sm:$0xff]
    %v2164 = vld [vmem:[#allocation6 + $0x22c0] sm:$0xff]
    %v2165 = vld [vmem:[#allocation6 + $0x22c8] sm:$0xff]
    %v2166 = vld [vmem:[#allocation6 + $0x22d0] sm:$0xff]
    %v2167 = vld [vmem:[#allocation6 + $0x22d8] sm:$0xff]
    %v2168 = vld [vmem:[#allocation6 + $0x22e0] sm:$0xff]
    %v2169 = vld [vmem:[#allocation6 + $0x22e8] sm:$0xff]
    %v2170 = vld [vmem:[#allocation6 + $0x22f0] sm:$0xff]
    %v2171 = vld [vmem:[#allocation6 + $0x22f8] sm:$0xff]
    %v2172 = vld [vmem:[#allocation6 + $0x2300] sm:$0xff]
    %v2173 = vld [vmem:[#allocation6 + $0x2308] sm:$0xff]
    %v2174 = vld [vmem:[#allocation6 + $0x2310] sm:$0xff]
    %v2175 = vld [vmem:[#allocation6 + $0x2318] sm:$0xff]
    %v2176 = vld [vmem:[#allocation6 + $0x2320] sm:$0xff]
    %v2177 = vld [vmem:[#allocation6 + $0x2328] sm:$0xff]
    %v2178 = vld [vmem:[#allocation6 + $0x2330] sm:$0xff]
    %v2179 = vld [vmem:[#allocation6 + $0x2338] sm:$0xff]
    %v2180 = vld [vmem:[#allocation6 + $0x2340] sm:$0xff]
    %v2181 = vld [vmem:[#allocation6 + $0x2348] sm:$0xff]
    %v2182 = vld [vmem:[#allocation6 + $0x2350] sm:$0xff]
    %v2183 = vld [vmem:[#allocation6 + $0x2358] sm:$0xff]
    %v2184 = vld [vmem:[#allocation6 + $0x2360] sm:$0xff]
    %v2185 = vld [vmem:[#allocation6 + $0x2368] sm:$0xff]
    %v2186 = vld [vmem:[#allocation6 + $0x2370] sm:$0xff]
    %v2187 = vld [vmem:[#allocation6 + $0x2378] sm:$0xff]
    %v2188 = vld [vmem:[#allocation6 + $0x2380] sm:$0xff]
    %v2189 = vld [vmem:[#allocation6 + $0x2388] sm:$0xff]
    %v2190 = vld [vmem:[#allocation6 + $0x2390] sm:$0xff]
    %v2191 = vld [vmem:[#allocation6 + $0x2398] sm:$0xff]
    %v2192 = vld [vmem:[#allocation6 + $0x23a0] sm:$0xff]
    %v2193 = vld [vmem:[#allocation6 + $0x23a8] sm:$0xff]
    %v2194 = vld [vmem:[#allocation6 + $0x23b0] sm:$0xff]
    %v2195 = vld [vmem:[#allocation6 + $0x23b8] sm:$0xff]
    %v2196 = vld [vmem:[#allocation6 + $0x23c0] sm:$0xff]
    %v2197 = vld [vmem:[#allocation6 + $0x23c8] sm:$0xff]
    %v2198 = vld [vmem:[#allocation6 + $0x23d0] sm:$0xff]
    %v2199 = vld [vmem:[#allocation6 + $0x23d8] sm:$0xff]
    %v2200 = vld [vmem:[#allocation6 + $0x23e0] sm:$0xff]
    %v2201 = vld [vmem:[#allocation6 + $0x23e8] sm:$0xff]
    %v2202 = vld [vmem:[#allocation6 + $0x23f0] sm:$0xff]
    %v2203 = vld [vmem:[#allocation6 + $0x23f8] sm:$0xff]
    %v2204 = vld [vmem:[#allocation7] sm:$0x3f]
    %v2206 = vlaneseq
    %v2207 = vshrl.u32 %v2206, 7
    %v2208 = vsub.s32 0, %v2207
    %v2209 = vrot.slane %v2204, %v2208
    %v2210 = vlaneseq
    %v2211 = vshrl.u32 %v2210, 7
    %v2212 = vsub.s32 1, %v2211
    %v2213 = vrot.slane %v2204, %v2212
    %v2214 = vlaneseq
    %v2215 = vshrl.u32 %v2214, 7
    %v2216 = vsub.s32 2, %v2215
    %v2217 = vrot.slane %v2204, %v2216
    %v2218 = vlaneseq
    %v2219 = vshrl.u32 %v2218, 7
    %v2220 = vsub.s32 3, %v2219
    %v2221 = vrot.slane %v2204, %v2220
    %v2222 = vlaneseq
    %v2223 = vshrl.u32 %v2222, 7
    %v2224 = vsub.s32 4, %v2223
    %v2225 = vrot.slane %v2204, %v2224
    %v2226 = vlaneseq
    %v2227 = vshrl.u32 %v2226, 7
    %v2228 = vsub.s32 5, %v2227
    %v2229 = vrot.slane %v2204, %v2228
    %2236 = vmatprep.subr.mxu0 %v1053
    %2237 = vmatpush1.msra.mxu0 %v1052
    %2238 = vmatprep.subr.mxu0 %v1059
    %2239 = vmatpush1.msra.mxu0 %v1058
    %2240 = vmatprep.subr.mxu0 %v1065
    %2241 = vmatpush1.msra.mxu0 %v1064
    %2242 = vmatprep.subr.mxu0 %v1071
    %2243 = vmatpush1.msra.mxu0 %v1070
    %2244 = vmatprep.subr.mxu0 %v1077
    %2245 = vmatpush1.msra.mxu0 %v1076
    %2246 = vmatprep.subr.mxu0 %v1083
    %2247 = vmatpush1.msra.mxu0 %v1082
    %2248 = vmatprep.subr.mxu0 %v1089
    %2249 = vmatpush1.msra.mxu0 %v1088
    %2250 = vmatprep.subr.mxu0 %v1095
    %2251 = vmatpush1.msra.mxu0 %v1094
    %2252 = vmatprep.subr.mxu0 %v1101
    %2253 = vmatpush1.msra.mxu0 %v1100
    %2254 = vmatprep.subr.mxu0 %v1107
    %2255 = vmatpush1.msra.mxu0 %v1106
    %2256 = vmatprep.subr.mxu0 %v1113
    %2257 = vmatpush1.msra.mxu0 %v1112
    %2258 = vmatprep.subr.mxu0 %v1119
    %2259 = vmatpush1.msra.mxu0 %v1118
    %2260 = vmatprep.subr.mxu0 %v1125
    %2261 = vmatpush1.msra.mxu0 %v1124
    %2262 = vmatprep.subr.mxu0 %v1131
    %2263 = vmatpush1.msra.mxu0 %v1130
    %2264 = vmatprep.subr.mxu0 %v1137
    %2265 = vmatpush1.msra.mxu0 %v1136
    %2266 = vmatprep.subr.mxu0 %v1143
    %2267 = vmatpush1.msra.mxu0 %v1142
    %2268 = vmatprep.subr.mxu0 %v1149
    %2269 = vmatpush1.msra.mxu0 %v1148
    %2270 = vmatprep.subr.mxu0 %v1155
    %2271 = vmatpush1.msra.mxu0 %v1154
    %2272 = vmatprep.subr.mxu0 %v1161
    %2273 = vmatpush1.msra.mxu0 %v1160
    %2274 = vmatprep.subr.mxu0 %v1167
    %2275 = vmatpush1.msra.mxu0 %v1166
    %2276 = vmatprep.subr.mxu0 %v1173
    %2277 = vmatpush1.msra.mxu0 %v1172
    %2278 = vmatprep.subr.mxu0 %v1179
    %2279 = vmatpush1.msra.mxu0 %v1178
    %2280 = vmatprep.subr.mxu0 %v1185
    %2281 = vmatpush1.msra.mxu0 %v1184
    %2282 = vmatprep.subr.mxu0 %v1191
    %2283 = vmatpush1.msra.mxu0 %v1190
    %2284 = vmatprep.subr.mxu0 %v1197
    %2285 = vmatpush1.msra.mxu0 %v1196
    %2286 = vmatprep.subr.mxu0 %v1203
    %2287 = vmatpush1.msra.mxu0 %v1202
    %2288 = vmatprep.subr.mxu0 %v1209
    %2289 = vmatpush1.msra.mxu0 %v1208
    %2290 = vmatprep.subr.mxu0 %v1215
    %2291 = vmatpush1.msra.mxu0 %v1214
    %2292 = vmatprep.subr.mxu0 %v1221
    %2293 = vmatpush1.msra.mxu0 %v1220
    %2294 = vmatprep.subr.mxu0 %v1227
    %2295 = vmatpush1.msra.mxu0 %v1226
    %2296 = vmatprep.subr.mxu0 %v1233
    %2297 = vmatpush1.msra.mxu0 %v1232
    %2298 = vmatprep.subr.mxu0 %v1239
    %2299 = vmatpush1.msra.mxu0 %v1238
    %2300 = vmatprep.mubr.f32.mxu0 %v1041
    %2301 = vmatmul.mubr.f32.gmra.mrb[0].mxu0 %v1040
    %v2302 = vpop.f32.mrb[0].mxu0
    %v2303 = vadd.f32 %v2209, %v2302
    %v2304 = vpop.f32.mrb[0].mxu0
    %v2305 = vadd.f32 %v2213, %v2304
    %2306 = vdwg.mxu0
    %2307 = vmatprep.subr.mxu0 %v1245
    %2308 = vmatpush1.msra.mxu0 %v1244
    %2309 = vmatprep.subr.mxu0 %v1251
    %2310 = vmatpush1.msra.mxu0 %v1250
    %2311 = vmatprep.subr.mxu0 %v1257
    %2312 = vmatpush1.msra.mxu0 %v1256
    %2313 = vmatprep.subr.mxu0 %v1263
    %2314 = vmatpush1.msra.mxu0 %v1262
    %2315 = vmatprep.subr.mxu0 %v1269
    %2316 = vmatpush1.msra.mxu0 %v1268
    %2317 = vmatprep.subr.mxu0 %v1275
    %2318 = vmatpush1.msra.mxu0 %v1274
    %2319 = vmatprep.subr.mxu0 %v1281
    %2320 = vmatpush1.msra.mxu0 %v1280
    %2321 = vmatprep.subr.mxu0 %v1287
    %2322 = vmatpush1.msra.mxu0 %v1286
    %2323 = vmatprep.subr.mxu0 %v1293
    %2324 = vmatpush1.msra.mxu0 %v1292
    %2325 = vmatprep.subr.mxu0 %v1299
    %2326 = vmatpush1.msra.mxu0 %v1298
    %2327 = vmatprep.subr.mxu0 %v1305
    %2328 = vmatpush1.msra.mxu0 %v1304
    %2329 = vmatprep.subr.mxu0 %v1311
    %2330 = vmatpush1.msra.mxu0 %v1310
    %2331 = vmatprep.subr.mxu0 %v1317
    %2332 = vmatpush1.msra.mxu0 %v1316
    %2333 = vmatprep.subr.mxu0 %v1323
    %2334 = vmatpush1.msra.mxu0 %v1322
    %2335 = vmatprep.subr.mxu0 %v1329
    %2336 = vmatpush1.msra.mxu0 %v1328
    %2337 = vmatprep.subr.mxu0 %v1335
    %2338 = vmatpush1.msra.mxu0 %v1334
    %2339 = vmatprep.subr.mxu0 %v1341
    %2340 = vmatpush1.msra.mxu0 %v1340
    %2341 = vmatprep.subr.mxu0 %v1347
    %2342 = vmatpush1.msra.mxu0 %v1346
    %2343 = vmatprep.subr.mxu0 %v1353
    %2344 = vmatpush1.msra.mxu0 %v1352
    %2345 = vmatprep.subr.mxu0 %v1359
    %2346 = vmatpush1.msra.mxu0 %v1358
    %2347 = vmatprep.subr.mxu0 %v1365
    %2348 = vmatpush1.msra.mxu0 %v1364
    %2349 = vmatprep.subr.mxu0 %v1371
    %2350 = vmatpush1.msra.mxu0 %v1370
    %2351 = vmatprep.subr.mxu0 %v1377
    %2352 = vmatpush1.msra.mxu0 %v1376
    %2353 = vmatprep.subr.mxu0 %v1383
    %2354 = vmatpush1.msra.mxu0 %v1382
    %2355 = vmatprep.subr.mxu0 %v1389
    %2356 = vmatpush1.msra.mxu0 %v1388
    %2357 = vmatprep.subr.mxu0 %v1395
    %2358 = vmatpush1.msra.mxu0 %v1394
    %2359 = vmatprep.subr.mxu0 %v1401
    %2360 = vmatpush1.msra.mxu0 %v1400
    %2361 = vmatprep.subr.mxu0 %v1407
    %2362 = vmatpush1.msra.mxu0 %v1406
    %2363 = vmatprep.subr.mxu0 %v1413
    %2364 = vmatpush1.msra.mxu0 %v1412
    %2365 = vmatprep.subr.mxu0 %v1419
    %2366 = vmatpush1.msra.mxu0 %v1418
    %2367 = vmatprep.subr.mxu0 %v1425
    %2368 = vmatpush1.msra.mxu0 %v1424
    %2369 = vmatprep.subr.mxu0 %v1431
    %2370 = vmatpush1.msra.mxu0 %v1430
    %2371 = vmatprep.mubr.f32.mxu0 %v1043
    %2372 = vmatmul.mubr.f32.gmra.mrb[0].mxu0 %v1042
    %v2373 = vpop.f32.mrb[0].mxu0
    %v2374 = vadd.f32 %v2303, %v2373
    %v2375 = vpop.f32.mrb[0].mxu0
    %v2376 = vadd.f32 %v2305, %v2375
    %2377 = vdwg.mxu0
    %2378 = vmatprep.subr.mxu0 %v1437
    %2379 = vmatpush1.msra.mxu0 %v1436
    %2380 = vmatprep.subr.mxu0 %v1443
    %2381 = vmatpush1.msra.mxu0 %v1442
    %2382 = vmatprep.subr.mxu0 %v1449
    %2383 = vmatpush1.msra.mxu0 %v1448
    %2384 = vmatprep.subr.mxu0 %v1455
    %2385 = vmatpush1.msra.mxu0 %v1454
    %2386 = vmatprep.subr.mxu0 %v1461
    %2387 = vmatpush1.msra.mxu0 %v1460
    %2388 = vmatprep.subr.mxu0 %v1467
    %2389 = vmatpush1.msra.mxu0 %v1466
    %2390 = vmatprep.subr.mxu0 %v1473
    %2391 = vmatpush1.msra.mxu0 %v1472
    %2392 = vmatprep.subr.mxu0 %v1479
    %2393 = vmatpush1.msra.mxu0 %v1478
    %2394 = vmatprep.subr.mxu0 %v1485
    %2395 = vmatpush1.msra.mxu0 %v1484
    %2396 = vmatprep.subr.mxu0 %v1491
    %2397 = vmatpush1.msra.mxu0 %v1490
    %2398 = vmatprep.subr.mxu0 %v1497
    %2399 = vmatpush1.msra.mxu0 %v1496
    %2400 = vmatprep.subr.mxu0 %v1503
    %2401 = vmatpush1.msra.mxu0 %v1502
    %2402 = vmatprep.subr.mxu0 %v1509
    %2403 = vmatpush1.msra.mxu0 %v1508
    %2404 = vmatprep.subr.mxu0 %v1515
    %2405 = vmatpush1.msra.mxu0 %v1514
    %2406 = vmatprep.subr.mxu0 %v1521
    %2407 = vmatpush1.msra.mxu0 %v1520
    %2408 = vmatprep.subr.mxu0 %v1527
    %2409 = vmatpush1.msra.mxu0 %v1526
    %2410 = vmatprep.subr.mxu0 %v1533
    %2411 = vmatpush1.msra.mxu0 %v1532
    %2412 = vmatprep.subr.mxu0 %v1539
    %2413 = vmatpush1.msra.mxu0 %v1538
    %2414 = vmatprep.subr.mxu0 %v1545
    %2415 = vmatpush1.msra.mxu0 %v1544
    %2416 = vmatprep.subr.mxu0 %v1551
    %2417 = vmatpush1.msra.mxu0 %v1550
    %2418 = vmatprep.subr.mxu0 %v1557
    %2419 = vmatpush1.msra.mxu0 %v1556
    %2420 = vmatprep.subr.mxu0 %v1563
    %2421 = vmatpush1.msra.mxu0 %v1562
    %2422 = vmatprep.subr.mxu0 %v1569
    %2423 = vmatpush1.msra.mxu0 %v1568
    %2424 = vmatprep.subr.mxu0 %v1575
    %2425 = vmatpush1.msra.mxu0 %v1574
    %2426 = vmatprep.subr.mxu0 %v1581
    %2427 = vmatpush1.msra.mxu0 %v1580
    %2428 = vmatprep.subr.mxu0 %v1587
    %2429 = vmatpush1.msra.mxu0 %v1586
    %2430 = vmatprep.subr.mxu0 %v1593
    %2431 = vmatpush1.msra.mxu0 %v1592
    %2432 = vmatprep.subr.mxu0 %v1599
    %2433 = vmatpush1.msra.mxu0 %v1598
    %2434 = vmatprep.subr.mxu0 %v1605
    %2435 = vmatpush1.msra.mxu0 %v1604
    %2436 = vmatprep.subr.mxu0 %v1611
    %2437 = vmatpush1.msra.mxu0 %v1610
    %2438 = vmatprep.subr.mxu0 %v1617
    %2439 = vmatpush1.msra.mxu0 %v1616
    %2440 = vmatprep.subr.mxu0 %v1623
    %2441 = vmatpush1.msra.mxu0 %v1622
    %2442 = vmatprep.mubr.f32.mxu0 %v1045
    %2443 = vmatmul.mubr.f32.gmra.mrb[0].mxu0 %v1044
    %v2444 = vpop.f32.mrb[0].mxu0
    %v2445 = vadd.f32 %v2374, %v2444
    %v2446 = vpop.f32.mrb[0].mxu0
    %v2447 = vadd.f32 %v2376, %v2446
    %2448 = vdwg.mxu0
    %2449 = vmatprep.subr.mxu0 %v1629
    %2450 = vmatpush1.msra.mxu0 %v1628
    %2451 = vmatprep.subr.mxu0 %v1635
    %2452 = vmatpush1.msra.mxu0 %v1634
    %2453 = vmatprep.subr.mxu0 %v1641
    %2454 = vmatpush1.msra.mxu0 %v1640
    %2455 = vmatprep.subr.mxu0 %v1647
    %2456 = vmatpush1.msra.mxu0 %v1646
    %2457 = vmatprep.subr.mxu0 %v1653
    %2458 = vmatpush1.msra.mxu0 %v1652
    %2459 = vmatprep.subr.mxu0 %v1659
    %2460 = vmatpush1.msra.mxu0 %v1658
    %2461 = vmatprep.subr.mxu0 %v1665
    %2462 = vmatpush1.msra.mxu0 %v1664
    %2463 = vmatprep.subr.mxu0 %v1671
    %2464 = vmatpush1.msra.mxu0 %v1670
    %2465 = vmatprep.subr.mxu0 %v1677
    %2466 = vmatpush1.msra.mxu0 %v1676
    %2467 = vmatprep.subr.mxu0 %v1683
    %2468 = vmatpush1.msra.mxu0 %v1682
    %2469 = vmatprep.subr.mxu0 %v1689
    %2470 = vmatpush1.msra.mxu0 %v1688
    %2471 = vmatprep.subr.mxu0 %v1695
    %2472 = vmatpush1.msra.mxu0 %v1694
    %2473 = vmatprep.subr.mxu0 %v1701
    %2474 = vmatpush1.msra.mxu0 %v1700
    %2475 = vmatprep.subr.mxu0 %v1707
    %2476 = vmatpush1.msra.mxu0 %v1706
    %2477 = vmatprep.subr.mxu0 %v1713
    %2478 = vmatpush1.msra.mxu0 %v1712
    %2479 = vmatprep.subr.mxu0 %v1719
    %2480 = vmatpush1.msra.mxu0 %v1718
    %2481 = vmatprep.subr.mxu0 %v1725
    %2482 = vmatpush1.msra.mxu0 %v1724
    %2483 = vmatprep.subr.mxu0 %v1731
    %2484 = vmatpush1.msra.mxu0 %v1730
    %2485 = vmatprep.subr.mxu0 %v1737
    %2486 = vmatpush1.msra.mxu0 %v1736
    %2487 = vmatprep.subr.mxu0 %v1743
    %2488 = vmatpush1.msra.mxu0 %v1742
    %2489 = vmatprep.subr.mxu0 %v1749
    %2490 = vmatpush1.msra.mxu0 %v1748
    %2491 = vmatprep.subr.mxu0 %v1755
    %2492 = vmatpush1.msra.mxu0 %v1754
    %2493 = vmatprep.subr.mxu0 %v1761
    %2494 = vmatpush1.msra.mxu0 %v1760
    %2495 = vmatprep.subr.mxu0 %v1767
    %2496 = vmatpush1.msra.mxu0 %v1766
    %2497 = vmatprep.subr.mxu0 %v1773
    %2498 = vmatpush1.msra.mxu0 %v1772
    %2499 = vmatprep.subr.mxu0 %v1779
    %2500 = vmatpush1.msra.mxu0 %v1778
    %2501 = vmatprep.subr.mxu0 %v1785
    %2502 = vmatpush1.msra.mxu0 %v1784
    %2503 = vmatprep.subr.mxu0 %v1791
    %2504 = vmatpush1.msra.mxu0 %v1790
    %2505 = vmatprep.subr.mxu0 %v1797
    %2506 = vmatpush1.msra.mxu0 %v1796
    %2507 = vmatprep.subr.mxu0 %v1803
    %2508 = vmatpush1.msra.mxu0 %v1802
    %2509 = vmatprep.subr.mxu0 %v1809
    %2510 = vmatpush1.msra.mxu0 %v1808
    %2511 = vmatprep.subr.mxu0 %v1815
    %2512 = vmatpush1.msra.mxu0 %v1814
    %2513 = vmatprep.mubr.f32.mxu0 %v1047
    %2514 = vmatmul.mubr.f32.gmra.mrb[0].mxu0 %v1046
    %v2515 = vpop.f32.mrb[0].mxu0
    %v2516 = vadd.f32 %v2445, %v2515
    %v2517 = vpop.f32.mrb[0].mxu0
    %v2518 = vadd.f32 %v2447, %v2517
    %2519 = vdwg.mxu0
    %2520 = vmatprep.subr.mxu0 %v1821
    %2521 = vmatpush1.msra.mxu0 %v1820
    %2522 = vmatprep.subr.mxu0 %v1827
    %2523 = vmatpush1.msra.mxu0 %v1826
    %2524 = vmatprep.subr.mxu0 %v1833
    %2525 = vmatpush1.msra.mxu0 %v1832
    %2526 = vmatprep.subr.mxu0 %v1839
    %2527 = vmatpush1.msra.mxu0 %v1838
    %2528 = vmatprep.subr.mxu0 %v1845
    %2529 = vmatpush1.msra.mxu0 %v1844
    %2530 = vmatprep.subr.mxu0 %v1851
    %2531 = vmatpush1.msra.mxu0 %v1850
    %2532 = vmatprep.subr.mxu0 %v1857
    %2533 = vmatpush1.msra.mxu0 %v1856
    %2534 = vmatprep.subr.mxu0 %v1863
    %2535 = vmatpush1.msra.mxu0 %v1862
    %2536 = vmatprep.subr.mxu0 %v1869
    %2537 = vmatpush1.msra.mxu0 %v1868
    %2538 = vmatprep.subr.mxu0 %v1875
    %2539 = vmatpush1.msra.mxu0 %v1874
    %2540 = vmatprep.subr.mxu0 %v1881
    %2541 = vmatpush1.msra.mxu0 %v1880
    %2542 = vmatprep.subr.mxu0 %v1887
    %2543 = vmatpush1.msra.mxu0 %v1886
    %2544 = vmatprep.subr.mxu0 %v1893
    %2545 = vmatpush1.msra.mxu0 %v1892
    %2546 = vmatprep.subr.mxu0 %v1899
    %2547 = vmatpush1.msra.mxu0 %v1898
    %2548 = vmatprep.subr.mxu0 %v1905
    %2549 = vmatpush1.msra.mxu0 %v1904
    %2550 = vmatprep.subr.mxu0 %v1911
    %2551 = vmatpush1.msra.mxu0 %v1910
    %2552 = vmatprep.subr.mxu0 %v1917
    %2553 = vmatpush1.msra.mxu0 %v1916
    %2554 = vmatprep.subr.mxu0 %v1923
    %2555 = vmatpush1.msra.mxu0 %v1922
    %2556 = vmatprep.subr.mxu0 %v1929
    %2557 = vmatpush1.msra.mxu0 %v1928
    %2558 = vmatprep.subr.mxu0 %v1935
    %2559 = vmatpush1.msra.mxu0 %v1934
    %2560 = vmatprep.subr.mxu0 %v1941
    %2561 = vmatpush1.msra.mxu0 %v1940
    %2562 = vmatprep.subr.mxu0 %v1947
    %2563 = vmatpush1.msra.mxu0 %v1946
    %2564 = vmatprep.subr.mxu0 %v1953
    %2565 = vmatpush1.msra.mxu0 %v1952
    %2566 = vmatprep.subr.mxu0 %v1959
    %2567 = vmatpush1.msra.mxu0 %v1958
    %2568 = vmatprep.subr.mxu0 %v1965
    %2569 = vmatpush1.msra.mxu0 %v1964
    %2570 = vmatprep.subr.mxu0 %v1971
    %2571 = vmatpush1.msra.mxu0 %v1970
    %2572 = vmatprep.subr.mxu0 %v1977
    %2573 = vmatpush1.msra.mxu0 %v1976
    %2574 = vmatprep.subr.mxu0 %v1983
    %2575 = vmatpush1.msra.mxu0 %v1982
    %2576 = vmatprep.subr.mxu0 %v1989
    %2577 = vmatpush1.msra.mxu0 %v1988
    %2578 = vmatprep.subr.mxu0 %v1995
    %2579 = vmatpush1.msra.mxu0 %v1994
    %2580 = vmatprep.subr.mxu0 %v2001
    %2581 = vmatpush1.msra.mxu0 %v2000
    %2582 = vmatprep.subr.mxu0 %v2007
    %2583 = vmatpush1.msra.mxu0 %v2006
    %2584 = vmatprep.mubr.f32.mxu0 %v1049
    %2585 = vmatmul.mubr.f32.gmra.mrb[0].mxu0 %v1048
    %v2586 = vpop.f32.mrb[0].mxu0
    %v2587 = vadd.f32 %v2516, %v2586
    %v2588 = vpop.f32.mrb[0].mxu0
    %v2589 = vadd.f32 %v2518, %v2588
    %2590 = vdwg.mxu0
    %2591 = vmatprep.subr.mxu0 %v2013
    %2592 = vmatpush1.msra.mxu0 %v2012
    %2593 = vmatprep.subr.mxu0 %v2019
    %2594 = vmatpush1.msra.mxu0 %v2018
    %2595 = vmatprep.subr.mxu0 %v2025
    %2596 = vmatpush1.msra.mxu0 %v2024
    %2597 = vmatprep.subr.mxu0 %v2031
    %2598 = vmatpush1.msra.mxu0 %v2030
    %2599 = vmatprep.subr.mxu0 %v2037
    %2600 = vmatpush1.msra.mxu0 %v2036
    %2601 = vmatprep.subr.mxu0 %v2043
    %2602 = vmatpush1.msra.mxu0 %v2042
    %2603 = vmatprep.subr.mxu0 %v2049
    %2604 = vmatpush1.msra.mxu0 %v2048
    %2605 = vmatprep.subr.mxu0 %v2055
    %2606 = vmatpush1.msra.mxu0 %v2054
    %2607 = vmatprep.subr.mxu0 %v2061
    %2608 = vmatpush1.msra.mxu0 %v2060
    %2609 = vmatprep.subr.mxu0 %v2067
    %2610 = vmatpush1.msra.mxu0 %v2066
    %2611 = vmatprep.subr.mxu0 %v2073
    %2612 = vmatpush1.msra.mxu0 %v2072
    %2613 = vmatprep.subr.mxu0 %v2079
    %2614 = vmatpush1.msra.mxu0 %v2078
    %2615 = vmatprep.subr.mxu0 %v2085
    %2616 = vmatpush1.msra.mxu0 %v2084
    %2617 = vmatprep.subr.mxu0 %v2091
    %2618 = vmatpush1.msra.mxu0 %v2090
    %2619 = vmatprep.subr.mxu0 %v2097
    %2620 = vmatpush1.msra.mxu0 %v2096
    %2621 = vmatprep.subr.mxu0 %v2103
    %2622 = vmatpush1.msra.mxu0 %v2102
    %2623 = vmatprep.subr.mxu0 %v2109
    %2624 = vmatpush1.msra.mxu0 %v2108
    %2625 = vmatprep.subr.mxu0 %v2115
    %2626 = vmatpush1.msra.mxu0 %v2114
    %2627 = vmatprep.subr.mxu0 %v2121
    %2628 = vmatpush1.msra.mxu0 %v2120
    %2629 = vmatprep.subr.mxu0 %v2127
    %2630 = vmatpush1.msra.mxu0 %v2126
    %2631 = vmatprep.subr.mxu0 %v2133
    %2632 = vmatpush1.msra.mxu0 %v2132
    %2633 = vmatprep.subr.mxu0 %v2139
    %2634 = vmatpush1.msra.mxu0 %v2138
    %2635 = vmatprep.subr.mxu0 %v2145
    %2636 = vmatpush1.msra.mxu0 %v2144
    %2637 = vmatprep.subr.mxu0 %v2151
    %2638 = vmatpush1.msra.mxu0 %v2150
    %2639 = vmatprep.subr.mxu0 %v2157
    %2640 = vmatpush1.msra.mxu0 %v2156
    %2641 = vmatprep.subr.mxu0 %v2163
    %2642 = vmatpush1.msra.mxu0 %v2162
    %2643 = vmatprep.subr.mxu0 %v2169
    %2644 = vmatpush1.msra.mxu0 %v2168
    %2645 = vmatprep.subr.mxu0 %v2175
    %2646 = vmatpush1.msra.mxu0 %v2174
    %2647 = vmatprep.subr.mxu0 %v2181
    %2648 = vmatpush1.msra.mxu0 %v2180
    %2649 = vmatprep.subr.mxu0 %v2187
    %2650 = vmatpush1.msra.mxu0 %v2186
    %2651 = vmatprep.subr.mxu0 %v2193
    %2652 = vmatpush1.msra.mxu0 %v2192
    %2653 = vmatprep.subr.mxu0 %v2199
    %2654 = vmatpush1.msra.mxu0 %v2198
    %2655 = vmatprep.mubr.f32.mxu0 %v1051
    %2656 = vmatmul.mubr.f32.gmra.mrb[0].mxu0 %v1050
    %v2657 = vpop.f32.mrb[0].mxu0
    %v2658 = vadd.f32 %v2587, %v2657
    %v2659 = vpop.f32.mrb[0].mxu0
    %v2660 = vadd.f32 %v2589, %v2659
    %2661 = vdwg.mxu0
    %2662 = vmatprep.subr.mxu0 %v1055
    %2663 = vmatpush1.msra.mxu0 %v1054
    %2664 = vmatprep.subr.mxu0 %v1061
    %2665 = vmatpush1.msra.mxu0 %v1060
    %2666 = vmatprep.subr.mxu0 %v1067
    %2667 = vmatpush1.msra.mxu0 %v1066
    %2668 = vmatprep.subr.mxu0 %v1073
    %2669 = vmatpush1.msra.mxu0 %v1072
    %2670 = vmatprep.subr.mxu0 %v1079
    %2671 = vmatpush1.msra.mxu0 %v1078
    %2672 = vmatprep.subr.mxu0 %v1085
    %2673 = vmatpush1.msra.mxu0 %v1084
    %2674 = vmatprep.subr.mxu0 %v1091
    %2675 = vmatpush1.msra.mxu0 %v1090
    %2676 = vmatprep.subr.mxu0 %v1097
    %2677 = vmatpush1.msra.mxu0 %v1096
    %2678 = vmatprep.subr.mxu0 %v1103
    %2679 = vmatpush1.msra.mxu0 %v1102
    %2680 = vmatprep.subr.mxu0 %v1109
    %2681 = vmatpush1.msra.mxu0 %v1108
    %2682 = vmatprep.subr.mxu0 %v1115
    %2683 = vmatpush1.msra.mxu0 %v1114
    %2684 = vmatprep.subr.mxu0 %v1121
    %2685 = vmatpush1.msra.mxu0 %v1120
    %2686 = vmatprep.subr.mxu0 %v1127
    %2687 = vmatpush1.msra.mxu0 %v1126
    %2688 = vmatprep.subr.mxu0 %v1133
    %2689 = vmatpush1.msra.mxu0 %v1132
    %2690 = vmatprep.subr.mxu0 %v1139
    %2691 = vmatpush1.msra.mxu0 %v1138
    %2692 = vmatprep.subr.mxu0 %v1145
    %2693 = vmatpush1.msra.mxu0 %v1144
    %2694 = vmatprep.subr.mxu0 %v1151
    %2695 = vmatpush1.msra.mxu0 %v1150
    %2696 = vmatprep.subr.mxu0 %v1157
    %2697 = vmatpush1.msra.mxu0 %v1156
    %2698 = vmatprep.subr.mxu0 %v1163
    %2699 = vmatpush1.msra.mxu0 %v1162
    %2700 = vmatprep.subr.mxu0 %v1169
    %2701 = vmatpush1.msra.mxu0 %v1168
    %2702 = vmatprep.subr.mxu0 %v1175
    %2703 = vmatpush1.msra.mxu0 %v1174
    %2704 = vmatprep.subr.mxu0 %v1181
    %2705 = vmatpush1.msra.mxu0 %v1180
    %2706 = vmatprep.subr.mxu0 %v1187
    %2707 = vmatpush1.msra.mxu0 %v1186
    %2708 = vmatprep.subr.mxu0 %v1193
    %2709 = vmatpush1.msra.mxu0 %v1192
    %2710 = vmatprep.subr.mxu0 %v1199
    %2711 = vmatpush1.msra.mxu0 %v1198
    %2712 = vmatprep.subr.mxu0 %v1205
    %2713 = vmatpush1.msra.mxu0 %v1204
    %2714 = vmatprep.subr.mxu0 %v1211
    %2715 = vmatpush1.msra.mxu0 %v1210
    %2716 = vmatprep.subr.mxu0 %v1217
    %2717 = vmatpush1.msra.mxu0 %v1216
    %2718 = vmatprep.subr.mxu0 %v1223
    %2719 = vmatpush1.msra.mxu0 %v1222
    %2720 = vmatprep.subr.mxu0 %v1229
    %2721 = vmatpush1.msra.mxu0 %v1228
    %2722 = vmatprep.subr.mxu0 %v1235
    %2723 = vmatpush1.msra.mxu0 %v1234
    %2724 = vmatprep.subr.mxu0 %v1241
    %2725 = vmatpush1.msra.mxu0 %v1240
    %2726 = vmatprep.mubr.f32.mxu0 %v1041
    %2727 = vmatmul.mubr.f32.gmra.mrb[0].mxu0 %v1040
    %v2728 = vpop.f32.mrb[0].mxu0
    %v2729 = vadd.f32 %v2217, %v2728
    %v2730 = vpop.f32.mrb[0].mxu0
    %v2731 = vadd.f32 %v2221, %v2730
    %2732 = vdwg.mxu0
    %2733 = vmatprep.subr.mxu0 %v1247
    %2734 = vmatpush1.msra.mxu0 %v1246
    %2735 = vmatprep.subr.mxu0 %v1253
    %2736 = vmatpush1.msra.mxu0 %v1252
    %2737 = vmatprep.subr.mxu0 %v1259
    %2738 = vmatpush1.msra.mxu0 %v1258
    %2739 = vmatprep.subr.mxu0 %v1265
    %2740 = vmatpush1.msra.mxu0 %v1264
    %2741 = vmatprep.subr.mxu0 %v1271
    %2742 = vmatpush1.msra.mxu0 %v1270
    %2743 = vmatprep.subr.mxu0 %v1277
    %2744 = vmatpush1.msra.mxu0 %v1276
    %2745 = vmatprep.subr.mxu0 %v1283
    %2746 = vmatpush1.msra.mxu0 %v1282
    %2747 = vmatprep.subr.mxu0 %v1289
    %2748 = vmatpush1.msra.mxu0 %v1288
    %2749 = vmatprep.subr.mxu0 %v1295
    %2750 = vmatpush1.msra.mxu0 %v1294
    %2751 = vmatprep.subr.mxu0 %v1301
    %2752 = vmatpush1.msra.mxu0 %v1300
    %2753 = vmatprep.subr.mxu0 %v1307
    %2754 = vmatpush1.msra.mxu0 %v1306
    %2755 = vmatprep.subr.mxu0 %v1313
    %2756 = vmatpush1.msra.mxu0 %v1312
    %2757 = vmatprep.subr.mxu0 %v1319
    %2758 = vmatpush1.msra.mxu0 %v1318
    %2759 = vmatprep.subr.mxu0 %v1325
    %2760 = vmatpush1.msra.mxu0 %v1324
    %2761 = vmatprep.subr.mxu0 %v1331
    %2762 = vmatpush1.msra.mxu0 %v1330
    %2763 = vmatprep.subr.mxu0 %v1337
    %2764 = vmatpush1.msra.mxu0 %v1336
    %2765 = vmatprep.subr.mxu0 %v1343
    %2766 = vmatpush1.msra.mxu0 %v1342
    %2767 = vmatprep.subr.mxu0 %v1349
    %2768 = vmatpush1.msra.mxu0 %v1348
    %2769 = vmatprep.subr.mxu0 %v1355
    %2770 = vmatpush1.msra.mxu0 %v1354
    %2771 = vmatprep.subr.mxu0 %v1361
    %2772 = vmatpush1.msra.mxu0 %v1360
    %2773 = vmatprep.subr.mxu0 %v1367
    %2774 = vmatpush1.msra.mxu0 %v1366
    %2775 = vmatprep.subr.mxu0 %v1373
    %2776 = vmatpush1.msra.mxu0 %v1372
    %2777 = vmatprep.subr.mxu0 %v1379
    %2778 = vmatpush1.msra.mxu0 %v1378
    %2779 = vmatprep.subr.mxu0 %v1385
    %2780 = vmatpush1.msra.mxu0 %v1384
    %2781 = vmatprep.subr.mxu0 %v1391
    %2782 = vmatpush1.msra.mxu0 %v1390
    %2783 = vmatprep.subr.mxu0 %v1397
    %2784 = vmatpush1.msra.mxu0 %v1396
    %2785 = vmatprep.subr.mxu0 %v1403
    %2786 = vmatpush1.msra.mxu0 %v1402
    %2787 = vmatprep.subr.mxu0 %v1409
    %2788 = vmatpush1.msra.mxu0 %v1408
    %2789 = vmatprep.subr.mxu0 %v1415
    %2790 = vmatpush1.msra.mxu0 %v1414
    %2791 = vmatprep.subr.mxu0 %v1421
    %2792 = vmatpush1.msra.mxu0 %v1420
    %2793 = vmatprep.subr.mxu0 %v1427
    %2794 = vmatpush1.msra.mxu0 %v1426
    %2795 = vmatprep.subr.mxu0 %v1433
    %2796 = vmatpush1.msra.mxu0 %v1432
    %2797 = vmatprep.mubr.f32.mxu0 %v1043
    %2798 = vmatmul.mubr.f32.gmra.mrb[0].mxu0 %v1042
    %v2799 = vpop.f32.mrb[0].mxu0
    %v2800 = vadd.f32 %v2729, %v2799
    %v2801 = vpop.f32.mrb[0].mxu0
    %v2802 = vadd.f32 %v2731, %v2801
    %2803 = vdwg.mxu0
    %2804 = vmatprep.subr.mxu0 %v1439
    %2805 = vmatpush1.msra.mxu0 %v1438
    %2806 = vmatprep.subr.mxu0 %v1445
    %2807 = vmatpush1.msra.mxu0 %v1444
    %2808 = vmatprep.subr.mxu0 %v1451
    %2809 = vmatpush1.msra.mxu0 %v1450
    %2810 = vmatprep.subr.mxu0 %v1457
    %2811 = vmatpush1.msra.mxu0 %v1456
    %2812 = vmatprep.subr.mxu0 %v1463
    %2813 = vmatpush1.msra.mxu0 %v1462
    %2814 = vmatprep.subr.mxu0 %v1469
    %2815 = vmatpush1.msra.mxu0 %v1468
    %2816 = vmatprep.subr.mxu0 %v1475
    %2817 = vmatpush1.msra.mxu0 %v1474
    %2818 = vmatprep.subr.mxu0 %v1481
    %2819 = vmatpush1.msra.mxu0 %v1480
    %2820 = vmatprep.subr.mxu0 %v1487
    %2821 = vmatpush1.msra.mxu0 %v1486
    %2822 = vmatprep.subr.mxu0 %v1493
    %2823 = vmatpush1.msra.mxu0 %v1492
    %2824 = vmatprep.subr.mxu0 %v1499
    %2825 = vmatpush1.msra.mxu0 %v1498
    %2826 = vmatprep.subr.mxu0 %v1505
    %2827 = vmatpush1.msra.mxu0 %v1504
    %2828 = vmatprep.subr.mxu0 %v1511
    %2829 = vmatpush1.msra.mxu0 %v1510
    %2830 = vmatprep.subr.mxu0 %v1517
    %2831 = vmatpush1.msra.mxu0 %v1516
    %2832 = vmatprep.subr.mxu0 %v1523
    %2833 = vmatpush1.msra.mxu0 %v1522
    %2834 = vmatprep.subr.mxu0 %v1529
    %2835 = vmatpush1.msra.mxu0 %v1528
    %2836 = vmatprep.subr.mxu0 %v1535
    %2837 = vmatpush1.msra.mxu0 %v1534
    %2838 = vmatprep.subr.mxu0 %v1541
    %2839 = vmatpush1.msra.mxu0 %v1540
    %2840 = vmatprep.subr.mxu0 %v1547
    %2841 = vmatpush1.msra.mxu0 %v1546
    %2842 = vmatprep.subr.mxu0 %v1553
    %2843 = vmatpush1.msra.mxu0 %v1552
    %2844 = vmatprep.subr.mxu0 %v1559
    %2845 = vmatpush1.msra.mxu0 %v1558
    %2846 = vmatprep.subr.mxu0 %v1565
    %2847 = vmatpush1.msra.mxu0 %v1564
    %2848 = vmatprep.subr.mxu0 %v1571
    %2849 = vmatpush1.msra.mxu0 %v1570
    %2850 = vmatprep.subr.mxu0 %v1577
    %2851 = vmatpush1.msra.mxu0 %v1576
    %2852 = vmatprep.subr.mxu0 %v1583
    %2853 = vmatpush1.msra.mxu0 %v1582
    %2854 = vmatprep.subr.mxu0 %v1589
    %2855 = vmatpush1.msra.mxu0 %v1588
    %2856 = vmatprep.subr.mxu0 %v1595
    %2857 = vmatpush1.msra.mxu0 %v1594
    %2858 = vmatprep.subr.mxu0 %v1601
    %2859 = vmatpush1.msra.mxu0 %v1600
    %2860 = vmatprep.subr.mxu0 %v1607
    %2861 = vmatpush1.msra.mxu0 %v1606
    %2862 = vmatprep.subr.mxu0 %v1613
    %2863 = vmatpush1.msra.mxu0 %v1612
    %2864 = vmatprep.subr.mxu0 %v1619
    %2865 = vmatpush1.msra.mxu0 %v1618
    %2866 = vmatprep.subr.mxu0 %v1625
    %2867 = vmatpush1.msra.mxu0 %v1624
    %2868 = vmatprep.mubr.f32.mxu0 %v1045
    %2869 = vmatmul.mubr.f32.gmra.mrb[0].mxu0 %v1044
    %v2870 = vpop.f32.mrb[0].mxu0
    %v2871 = vadd.f32 %v2800, %v2870
    %v2872 = vpop.f32.mrb[0].mxu0
    %v2873 = vadd.f32 %v2802, %v2872
    %2874 = vdwg.mxu0
    %2875 = vmatprep.subr.mxu0 %v1631
    %2876 = vmatpush1.msra.mxu0 %v1630
    %2877 = vmatprep.subr.mxu0 %v1637
    %2878 = vmatpush1.msra.mxu0 %v1636
    %2879 = vmatprep.subr.mxu0 %v1643
    %2880 = vmatpush1.msra.mxu0 %v1642
    %2881 = vmatprep.subr.mxu0 %v1649
    %2882 = vmatpush1.msra.mxu0 %v1648
    %2883 = vmatprep.subr.mxu0 %v1655
    %2884 = vmatpush1.msra.mxu0 %v1654
    %2885 = vmatprep.subr.mxu0 %v1661
    %2886 = vmatpush1.msra.mxu0 %v1660
    %2887 = vmatprep.subr.mxu0 %v1667
    %2888 = vmatpush1.msra.mxu0 %v1666
    %2889 = vmatprep.subr.mxu0 %v1673
    %2890 = vmatpush1.msra.mxu0 %v1672
    %2891 = vmatprep.subr.mxu0 %v1679
    %2892 = vmatpush1.msra.mxu0 %v1678
    %2893 = vmatprep.subr.mxu0 %v1685
    %2894 = vmatpush1.msra.mxu0 %v1684
    %2895 = vmatprep.subr.mxu0 %v1691
    %2896 = vmatpush1.msra.mxu0 %v1690
    %2897 = vmatprep.subr.mxu0 %v1697
    %2898 = vmatpush1.msra.mxu0 %v1696
    %2899 = vmatprep.subr.mxu0 %v1703
    %2900 = vmatpush1.msra.mxu0 %v1702
    %2901 = vmatprep.subr.mxu0 %v1709
    %2902 = vmatpush1.msra.mxu0 %v1708
    %2903 = vmatprep.subr.mxu0 %v1715
    %2904 = vmatpush1.msra.mxu0 %v1714
    %2905 = vmatprep.subr.mxu0 %v1721
    %2906 = vmatpush1.msra.mxu0 %v1720
    %2907 = vmatprep.subr.mxu0 %v1727
    %2908 = vmatpush1.msra.mxu0 %v1726
    %2909 = vmatprep.subr.mxu0 %v1733
    %2910 = vmatpush1.msra.mxu0 %v1732
    %2911 = vmatprep.subr.mxu0 %v1739
    %2912 = vmatpush1.msra.mxu0 %v1738
    %2913 = vmatprep.subr.mxu0 %v1745
    %2914 = vmatpush1.msra.mxu0 %v1744
    %2915 = vmatprep.subr.mxu0 %v1751
    %2916 = vmatpush1.msra.mxu0 %v1750
    %2917 = vmatprep.subr.mxu0 %v1757
    %2918 = vmatpush1.msra.mxu0 %v1756
    %2919 = vmatprep.subr.mxu0 %v1763
    %2920 = vmatpush1.msra.mxu0 %v1762
    %2921 = vmatprep.subr.mxu0 %v1769
    %2922 = vmatpush1.msra.mxu0 %v1768
    %2923 = vmatprep.subr.mxu0 %v1775
    %2924 = vmatpush1.msra.mxu0 %v1774
    %2925 = vmatprep.subr.mxu0 %v1781
    %2926 = vmatpush1.msra.mxu0 %v1780
    %2927 = vmatprep.subr.mxu0 %v1787
    %2928 = vmatpush1.msra.mxu0 %v1786
    %2929 = vmatprep.subr.mxu0 %v1793
    %2930 = vmatpush1.msra.mxu0 %v1792
    %2931 = vmatprep.subr.mxu0 %v1799
    %2932 = vmatpush1.msra.mxu0 %v1798
    %2933 = vmatprep.subr.mxu0 %v1805
    %2934 = vmatpush1.msra.mxu0 %v1804
    %2935 = vmatprep.subr.mxu0 %v1811
    %2936 = vmatpush1.msra.mxu0 %v1810
    %2937 = vmatprep.subr.mxu0 %v1817
    %2938 = vmatpush1.msra.mxu0 %v1816
    %2939 = vmatprep.mubr.f32.mxu0 %v1047
    %2940 = vmatmul.mubr.f32.gmra.mrb[0].mxu0 %v1046
    %v2941 = vpop.f32.mrb[0].mxu0
    %v2942 = vadd.f32 %v2871, %v2941
    %v2943 = vpop.f32.mrb[0].mxu0
    %v2944 = vadd.f32 %v2873, %v2943
    %2945 = vdwg.mxu0
    %2946 = vmatprep.subr.mxu0 %v1823
    %2947 = vmatpush1.msra.mxu0 %v1822
    %2948 = vmatprep.subr.mxu0 %v1829
    %2949 = vmatpush1.msra.mxu0 %v1828
    %2950 = vmatprep.subr.mxu0 %v1835
    %2951 = vmatpush1.msra.mxu0 %v1834
    %2952 = vmatprep.subr.mxu0 %v1841
    %2953 = vmatpush1.msra.mxu0 %v1840
    %2954 = vmatprep.subr.mxu0 %v1847
    %2955 = vmatpush1.msra.mxu0 %v1846
    %2956 = vmatprep.subr.mxu0 %v1853
    %2957 = vmatpush1.msra.mxu0 %v1852
    %2958 = vmatprep.subr.mxu0 %v1859
    %2959 = vmatpush1.msra.mxu0 %v1858
    %2960 = vmatprep.subr.mxu0 %v1865
    %2961 = vmatpush1.msra.mxu0 %v1864
    %2962 = vmatprep.subr.mxu0 %v1871
    %2963 = vmatpush1.msra.mxu0 %v1870
    %2964 = vmatprep.subr.mxu0 %v1877
    %2965 = vmatpush1.msra.mxu0 %v1876
    %2966 = vmatprep.subr.mxu0 %v1883
    %2967 = vmatpush1.msra.mxu0 %v1882
    %2968 = vmatprep.subr.mxu0 %v1889
    %2969 = vmatpush1.msra.mxu0 %v1888
    %2970 = vmatprep.subr.mxu0 %v1895
    %2971 = vmatpush1.msra.mxu0 %v1894
    %2972 = vmatprep.subr.mxu0 %v1901
    %2973 = vmatpush1.msra.mxu0 %v1900
    %2974 = vmatprep.subr.mxu0 %v1907
    %2975 = vmatpush1.msra.mxu0 %v1906
    %2976 = vmatprep.subr.mxu0 %v1913
    %2977 = vmatpush1.msra.mxu0 %v1912
    %2978 = vmatprep.subr.mxu0 %v1919
    %2979 = vmatpush1.msra.mxu0 %v1918
    %2980 = vmatprep.subr.mxu0 %v1925
    %2981 = vmatpush1.msra.mxu0 %v1924
    %2982 = vmatprep.subr.mxu0 %v1931
    %2983 = vmatpush1.msra.mxu0 %v1930
    %2984 = vmatprep.subr.mxu0 %v1937
    %2985 = vmatpush1.msra.mxu0 %v1936
    %2986 = vmatprep.subr.mxu0 %v1943
    %2987 = vmatpush1.msra.mxu0 %v1942
    %2988 = vmatprep.subr.mxu0 %v1949
    %2989 = vmatpush1.msra.mxu0 %v1948
    %2990 = vmatprep.subr.mxu0 %v1955
    %2991 = vmatpush1.msra.mxu0 %v1954
    %2992 = vmatprep.subr.mxu0 %v1961
    %2993 = vmatpush1.msra.mxu0 %v1960
    %2994 = vmatprep.subr.mxu0 %v1967
    %2995 = vmatpush1.msra.mxu0 %v1966
    %2996 = vmatprep.subr.mxu0 %v1973
    %2997 = vmatpush1.msra.mxu0 %v1972
    %2998 = vmatprep.subr.mxu0 %v1979
    %2999 = vmatpush1.msra.mxu0 %v1978
    %3000 = vmatprep.subr.mxu0 %v1985
    %3001 = vmatpush1.msra.mxu0 %v1984
    %3002 = vmatprep.subr.mxu0 %v1991
    %3003 = vmatpush1.msra.mxu0 %v1990
    %3004 = vmatprep.subr.mxu0 %v1997
    %3005 = vmatpush1.msra.mxu0 %v1996
    %3006 = vmatprep.subr.mxu0 %v2003
    %3007 = vmatpush1.msra.mxu0 %v2002
    %3008 = vmatprep.subr.mxu0 %v2009
    %3009 = vmatpush1.msra.mxu0 %v2008
    %3010 = vmatprep.mubr.f32.mxu0 %v1049
    %3011 = vmatmul.mubr.f32.gmra.mrb[0].mxu0 %v1048
    %v3012 = vpop.f32.mrb[0].mxu0
    %v3013 = vadd.f32 %v2942, %v3012
    %v3014 = vpop.f32.mrb[0].mxu0
    %v3015 = vadd.f32 %v2944, %v3014
    %3016 = vdwg.mxu0
    %3017 = vmatprep.subr.mxu0 %v2015
    %3018 = vmatpush1.msra.mxu0 %v2014
    %3019 = vmatprep.subr.mxu0 %v2021
    %3020 = vmatpush1.msra.mxu0 %v2020
    %3021 = vmatprep.subr.mxu0 %v2027
    %3022 = vmatpush1.msra.mxu0 %v2026
    %3023 = vmatprep.subr.mxu0 %v2033
    %3024 = vmatpush1.msra.mxu0 %v2032
    %3025 = vmatprep.subr.mxu0 %v2039
    %3026 = vmatpush1.msra.mxu0 %v2038
    %3027 = vmatprep.subr.mxu0 %v2045
    %3028 = vmatpush1.msra.mxu0 %v2044
    %3029 = vmatprep.subr.mxu0 %v2051
    %3030 = vmatpush1.msra.mxu0 %v2050
    %3031 = vmatprep.subr.mxu0 %v2057
    %3032 = vmatpush1.msra.mxu0 %v2056
    %3033 = vmatprep.subr.mxu0 %v2063
    %3034 = vmatpush1.msra.mxu0 %v2062
    %3035 = vmatprep.subr.mxu0 %v2069
    %3036 = vmatpush1.msra.mxu0 %v2068
    %3037 = vmatprep.subr.mxu0 %v2075
    %3038 = vmatpush1.msra.mxu0 %v2074
    %3039 = vmatprep.subr.mxu0 %v2081
    %3040 = vmatpush1.msra.mxu0 %v2080
    %3041 = vmatprep.subr.mxu0 %v2087
    %3042 = vmatpush1.msra.mxu0 %v2086
    %3043 = vmatprep.subr.mxu0 %v2093
    %3044 = vmatpush1.msra.mxu0 %v2092
    %3045 = vmatprep.subr.mxu0 %v2099
    %3046 = vmatpush1.msra.mxu0 %v2098
    %3047 = vmatprep.subr.mxu0 %v2105
    %3048 = vmatpush1.msra.mxu0 %v2104
    %3049 = vmatprep.subr.mxu0 %v2111
    %3050 = vmatpush1.msra.mxu0 %v2110
    %3051 = vmatprep.subr.mxu0 %v2117
    %3052 = vmatpush1.msra.mxu0 %v2116
    %3053 = vmatprep.subr.mxu0 %v2123
    %3054 = vmatpush1.msra.mxu0 %v2122
    %3055 = vmatprep.subr.mxu0 %v2129
    %3056 = vmatpush1.msra.mxu0 %v2128
    %3057 = vmatprep.subr.mxu0 %v2135
    %3058 = vmatpush1.msra.mxu0 %v2134
    %3059 = vmatprep.subr.mxu0 %v2141
    %3060 = vmatpush1.msra.mxu0 %v2140
    %3061 = vmatprep.subr.mxu0 %v2147
    %3062 = vmatpush1.msra.mxu0 %v2146
    %3063 = vmatprep.subr.mxu0 %v2153
    %3064 = vmatpush1.msra.mxu0 %v2152
    %3065 = vmatprep.subr.mxu0 %v2159
    %3066 = vmatpush1.msra.mxu0 %v2158
    %3067 = vmatprep.subr.mxu0 %v2165
    %3068 = vmatpush1.msra.mxu0 %v2164
    %3069 = vmatprep.subr.mxu0 %v2171
    %3070 = vmatpush1.msra.mxu0 %v2170
    %3071 = vmatprep.subr.mxu0 %v2177
    %3072 = vmatpush1.msra.mxu0 %v2176
    %3073 = vmatprep.subr.mxu0 %v2183
    %3074 = vmatpush1.msra.mxu0 %v2182
    %3075 = vmatprep.subr.mxu0 %v2189
    %3076 = vmatpush1.msra.mxu0 %v2188
    %3077 = vmatprep.subr.mxu0 %v2195
    %3078 = vmatpush1.msra.mxu0 %v2194
    %3079 = vmatprep.subr.mxu0 %v2201
    %3080 = vmatpush1.msra.mxu0 %v2200
    %3081 = vmatprep.mubr.f32.mxu0 %v1051
    %3082 = vmatmul.mubr.f32.gmra.mrb[0].mxu0 %v1050
    %v3083 = vpop.f32.mrb[0].mxu0
    %v3084 = vadd.f32 %v3013, %v3083
    %v3085 = vpop.f32.mrb[0].mxu0
    %v3086 = vadd.f32 %v3015, %v3085
    %3087 = vdwg.mxu0
    %3088 = vmatprep.subr.mxu0 %v1057
    %3089 = vmatpush1.msra.mxu0 %v1056
    %3090 = vmatprep.subr.mxu0 %v1063
    %3091 = vmatpush1.msra.mxu0 %v1062
    %3092 = vmatprep.subr.mxu0 %v1069
    %3093 = vmatpush1.msra.mxu0 %v1068
    %3094 = vmatprep.subr.mxu0 %v1075
    %3095 = vmatpush1.msra.mxu0 %v1074
    %3096 = vmatprep.subr.mxu0 %v1081
    %3097 = vmatpush1.msra.mxu0 %v1080
    %3098 = vmatprep.subr.mxu0 %v1087
    %3099 = vmatpush1.msra.mxu0 %v1086
    %3100 = vmatprep.subr.mxu0 %v1093
    %3101 = vmatpush1.msra.mxu0 %v1092
    %3102 = vmatprep.subr.mxu0 %v1099
    %3103 = vmatpush1.msra.mxu0 %v1098
    %3104 = vmatprep.subr.mxu0 %v1105
    %3105 = vmatpush1.msra.mxu0 %v1104
    %3106 = vmatprep.subr.mxu0 %v1111
    %3107 = vmatpush1.msra.mxu0 %v1110
    %3108 = vmatprep.subr.mxu0 %v1117
    %3109 = vmatpush1.msra.mxu0 %v1116
    %3110 = vmatprep.subr.mxu0 %v1123
    %3111 = vmatpush1.msra.mxu0 %v1122
    %3112 = vmatprep.subr.mxu0 %v1129
    %3113 = vmatpush1.msra.mxu0 %v1128
    %3114 = vmatprep.subr.mxu0 %v1135
    %3115 = vmatpush1.msra.mxu0 %v1134
    %3116 = vmatprep.subr.mxu0 %v1141
    %3117 = vmatpush1.msra.mxu0 %v1140
    %3118 = vmatprep.subr.mxu0 %v1147
    %3119 = vmatpush1.msra.mxu0 %v1146
    %3120 = vmatprep.subr.mxu0 %v1153
    %3121 = vmatpush1.msra.mxu0 %v1152
    %3122 = vmatprep.subr.mxu0 %v1159
    %3123 = vmatpush1.msra.mxu0 %v1158
    %3124 = vmatprep.subr.mxu0 %v1165
    %3125 = vmatpush1.msra.mxu0 %v1164
    %3126 = vmatprep.subr.mxu0 %v1171
    %3127 = vmatpush1.msra.mxu0 %v1170
    %3128 = vmatprep.subr.mxu0 %v1177
    %3129 = vmatpush1.msra.mxu0 %v1176
    %3130 = vmatprep.subr.mxu0 %v1183
    %3131 = vmatpush1.msra.mxu0 %v1182
    %3132 = vmatprep.subr.mxu0 %v1189
    %3133 = vmatpush1.msra.mxu0 %v1188
    %3134 = vmatprep.subr.mxu0 %v1195
    %3135 = vmatpush1.msra.mxu0 %v1194
    %3136 = vmatprep.subr.mxu0 %v1201
    %3137 = vmatpush1.msra.mxu0 %v1200
    %3138 = vmatprep.subr.mxu0 %v1207
    %3139 = vmatpush1.msra.mxu0 %v1206
    %3140 = vmatprep.subr.mxu0 %v1213
    %3141 = vmatpush1.msra.mxu0 %v1212
    %3142 = vmatprep.subr.mxu0 %v1219
    %3143 = vmatpush1.msra.mxu0 %v1218
    %3144 = vmatprep.subr.mxu0 %v1225
    %3145 = vmatpush1.msra.mxu0 %v1224
    %3146 = vmatprep.subr.mxu0 %v1231
    %3147 = vmatpush1.msra.mxu0 %v1230
    %3148 = vmatprep.subr.mxu0 %v1237
    %3149 = vmatpush1.msra.mxu0 %v1236
    %3150 = vmatprep.subr.mxu0 %v1243
    %3151 = vmatpush1.msra.mxu0 %v1242
    %3152 = vmatprep.mubr.f32.mxu0 %v1041
    %3153 = vmatmul.mubr.f32.gmra.mrb[0].mxu0 %v1040
    %v3154 = vpop.f32.mrb[0].mxu0
    %v3155 = vadd.f32 %v2225, %v3154
    %v3156 = vpop.f32.mrb[0].mxu0
    %v3157 = vadd.f32 %v2229, %v3156
    %3158 = vdwg.mxu0
    %3159 = vmatprep.subr.mxu0 %v1249
    %3160 = vmatpush1.msra.mxu0 %v1248
    %3161 = vmatprep.subr.mxu0 %v1255
    %3162 = vmatpush1.msra.mxu0 %v1254
    %3163 = vmatprep.subr.mxu0 %v1261
    %3164 = vmatpush1.msra.mxu0 %v1260
    %3165 = vmatprep.subr.mxu0 %v1267
    %3166 = vmatpush1.msra.mxu0 %v1266
    %3167 = vmatprep.subr.mxu0 %v1273
    %3168 = vmatpush1.msra.mxu0 %v1272
    %3169 = vmatprep.subr.mxu0 %v1279
    %3170 = vmatpush1.msra.mxu0 %v1278
    %3171 = vmatprep.subr.mxu0 %v1285
    %3172 = vmatpush1.msra.mxu0 %v1284
    %3173 = vmatprep.subr.mxu0 %v1291
    %3174 = vmatpush1.msra.mxu0 %v1290
    %3175 = vmatprep.subr.mxu0 %v1297
    %3176 = vmatpush1.msra.mxu0 %v1296
    %3177 = vmatprep.subr.mxu0 %v1303
    %3178 = vmatpush1.msra.mxu0 %v1302
    %3179 = vmatprep.subr.mxu0 %v1309
    %3180 = vmatpush1.msra.mxu0 %v1308
    %3181 = vmatprep.subr.mxu0 %v1315
    %3182 = vmatpush1.msra.mxu0 %v1314
    %3183 = vmatprep.subr.mxu0 %v1321
    %3184 = vmatpush1.msra.mxu0 %v1320
    %3185 = vmatprep.subr.mxu0 %v1327
    %3186 = vmatpush1.msra.mxu0 %v1326
    %3187 = vmatprep.subr.mxu0 %v1333
    %3188 = vmatpush1.msra.mxu0 %v1332
    %3189 = vmatprep.subr.mxu0 %v1339
    %3190 = vmatpush1.msra.mxu0 %v1338
    %3191 = vmatprep.subr.mxu0 %v1345
    %3192 = vmatpush1.msra.mxu0 %v1344
    %3193 = vmatprep.subr.mxu0 %v1351
    %3194 = vmatpush1.msra.mxu0 %v1350
    %3195 = vmatprep.subr.mxu0 %v1357
    %3196 = vmatpush1.msra.mxu0 %v1356
    %3197 = vmatprep.subr.mxu0 %v1363
    %3198 = vmatpush1.msra.mxu0 %v1362
    %3199 = vmatprep.subr.mxu0 %v1369
    %3200 = vmatpush1.msra.mxu0 %v1368
    %3201 = vmatprep.subr.mxu0 %v1375
    %3202 = vmatpush1.msra.mxu0 %v1374
    %3203 = vmatprep.subr.mxu0 %v1381
    %3204 = vmatpush1.msra.mxu0 %v1380
    %3205 = vmatprep.subr.mxu0 %v1387
    %3206 = vmatpush1.msra.mxu0 %v1386
    %3207 = vmatprep.subr.mxu0 %v1393
    %3208 = vmatpush1.msra.mxu0 %v1392
    %3209 = vmatprep.subr.mxu0 %v1399
    %3210 = vmatpush1.msra.mxu0 %v1398
    %3211 = vmatprep.subr.mxu0 %v1405
    %3212 = vmatpush1.msra.mxu0 %v1404
    %3213 = vmatprep.subr.mxu0 %v1411
    %3214 = vmatpush1.msra.mxu0 %v1410
    %3215 = vmatprep.subr.mxu0 %v1417
    %3216 = vmatpush1.msra.mxu0 %v1416
    %3217 = vmatprep.subr.mxu0 %v1423
    %3218 = vmatpush1.msra.mxu0 %v1422
    %3219 = vmatprep.subr.mxu0 %v1429
    %3220 = vmatpush1.msra.mxu0 %v1428
    %3221 = vmatprep.subr.mxu0 %v1435
    %3222 = vmatpush1.msra.mxu0 %v1434
    %3223 = vmatprep.mubr.f32.mxu0 %v1043
    %3224 = vmatmul.mubr.f32.gmra.mrb[0].mxu0 %v1042
    %v3225 = vpop.f32.mrb[0].mxu0
    %v3226 = vadd.f32 %v3155, %v3225
    %v3227 = vpop.f32.mrb[0].mxu0
    %v3228 = vadd.f32 %v3157, %v3227
    %3229 = vdwg.mxu0
    %3230 = vmatprep.subr.mxu0 %v1441
    %3231 = vmatpush1.msra.mxu0 %v1440
    %3232 = vmatprep.subr.mxu0 %v1447
    %3233 = vmatpush1.msra.mxu0 %v1446
    %3234 = vmatprep.subr.mxu0 %v1453
    %3235 = vmatpush1.msra.mxu0 %v1452
    %3236 = vmatprep.subr.mxu0 %v1459
    %3237 = vmatpush1.msra.mxu0 %v1458
    %3238 = vmatprep.subr.mxu0 %v1465
    %3239 = vmatpush1.msra.mxu0 %v1464
    %3240 = vmatprep.subr.mxu0 %v1471
    %3241 = vmatpush1.msra.mxu0 %v1470
    %3242 = vmatprep.subr.mxu0 %v1477
    %3243 = vmatpush1.msra.mxu0 %v1476
    %3244 = vmatprep.subr.mxu0 %v1483
    %3245 = vmatpush1.msra.mxu0 %v1482
    %3246 = vmatprep.subr.mxu0 %v1489
    %3247 = vmatpush1.msra.mxu0 %v1488
    %3248 = vmatprep.subr.mxu0 %v1495
    %3249 = vmatpush1.msra.mxu0 %v1494
    %3250 = vmatprep.subr.mxu0 %v1501
    %3251 = vmatpush1.msra.mxu0 %v1500
    %3252 = vmatprep.subr.mxu0 %v1507
    %3253 = vmatpush1.msra.mxu0 %v1506
    %3254 = vmatprep.subr.mxu0 %v1513
    %3255 = vmatpush1.msra.mxu0 %v1512
    %3256 = vmatprep.subr.mxu0 %v1519
    %3257 = vmatpush1.msra.mxu0 %v1518
    %3258 = vmatprep.subr.mxu0 %v1525
    %3259 = vmatpush1.msra.mxu0 %v1524
    %3260 = vmatprep.subr.mxu0 %v1531
    %3261 = vmatpush1.msra.mxu0 %v1530
    %3262 = vmatprep.subr.mxu0 %v1537
    %3263 = vmatpush1.msra.mxu0 %v1536
    %3264 = vmatprep.subr.mxu0 %v1543
    %3265 = vmatpush1.msra.mxu0 %v1542
    %3266 = vmatprep.subr.mxu0 %v1549
    %3267 = vmatpush1.msra.mxu0 %v1548
    %3268 = vmatprep.subr.mxu0 %v1555
    %3269 = vmatpush1.msra.mxu0 %v1554
    %3270 = vmatprep.subr.mxu0 %v1561
    %3271 = vmatpush1.msra.mxu0 %v1560
    %3272 = vmatprep.subr.mxu0 %v1567
    %3273 = vmatpush1.msra.mxu0 %v1566
    %3274 = vmatprep.subr.mxu0 %v1573
    %3275 = vmatpush1.msra.mxu0 %v1572
    %3276 = vmatprep.subr.mxu0 %v1579
    %3277 = vmatpush1.msra.mxu0 %v1578
    %3278 = vmatprep.subr.mxu0 %v1585
    %3279 = vmatpush1.msra.mxu0 %v1584
    %3280 = vmatprep.subr.mxu0 %v1591
    %3281 = vmatpush1.msra.mxu0 %v1590
    %3282 = vmatprep.subr.mxu0 %v1597
    %3283 = vmatpush1.msra.mxu0 %v1596
    %3284 = vmatprep.subr.mxu0 %v1603
    %3285 = vmatpush1.msra.mxu0 %v1602
    %3286 = vmatprep.subr.mxu0 %v1609
    %3287 = vmatpush1.msra.mxu0 %v1608
    %3288 = vmatprep.subr.mxu0 %v1615
    %3289 = vmatpush1.msra.mxu0 %v1614
    %3290 = vmatprep.subr.mxu0 %v1621
    %3291 = vmatpush1.msra.mxu0 %v1620
    %3292 = vmatprep.subr.mxu0 %v1627
    %3293 = vmatpush1.msra.mxu0 %v1626
    %3294 = vmatprep.mubr.f32.mxu0 %v1045
    %3295 = vmatmul.mubr.f32.gmra.mrb[0].mxu0 %v1044
    %v3296 = vpop.f32.mrb[0].mxu0
    %v3297 = vadd.f32 %v3226, %v3296
    %v3298 = vpop.f32.mrb[0].mxu0
    %v3299 = vadd.f32 %v3228, %v3298
    %3300 = vdwg.mxu0
    %3301 = vmatprep.subr.mxu0 %v1633
    %3302 = vmatpush1.msra.mxu0 %v1632
    %3303 = vmatprep.subr.mxu0 %v1639
    %3304 = vmatpush1.msra.mxu0 %v1638
    %3305 = vmatprep.subr.mxu0 %v1645
    %3306 = vmatpush1.msra.mxu0 %v1644
    %3307 = vmatprep.subr.mxu0 %v1651
    %3308 = vmatpush1.msra.mxu0 %v1650
    %3309 = vmatprep.subr.mxu0 %v1657
    %3310 = vmatpush1.msra.mxu0 %v1656
    %3311 = vmatprep.subr.mxu0 %v1663
    %3312 = vmatpush1.msra.mxu0 %v1662
    %3313 = vmatprep.subr.mxu0 %v1669
    %3314 = vmatpush1.msra.mxu0 %v1668
    %3315 = vmatprep.subr.mxu0 %v1675
    %3316 = vmatpush1.msra.mxu0 %v1674
    %3317 = vmatprep.subr.mxu0 %v1681
    %3318 = vmatpush1.msra.mxu0 %v1680
    %3319 = vmatprep.subr.mxu0 %v1687
    %3320 = vmatpush1.msra.mxu0 %v1686
    %3321 = vmatprep.subr.mxu0 %v1693
    %3322 = vmatpush1.msra.mxu0 %v1692
    %3323 = vmatprep.subr.mxu0 %v1699
    %3324 = vmatpush1.msra.mxu0 %v1698
    %3325 = vmatprep.subr.mxu0 %v1705
    %3326 = vmatpush1.msra.mxu0 %v1704
    %3327 = vmatprep.subr.mxu0 %v1711
    %3328 = vmatpush1.msra.mxu0 %v1710
    %3329 = vmatprep.subr.mxu0 %v1717
    %3330 = vmatpush1.msra.mxu0 %v1716
    %3331 = vmatprep.subr.mxu0 %v1723
    %3332 = vmatpush1.msra.mxu0 %v1722
    %3333 = vmatprep.subr.mxu0 %v1729
    %3334 = vmatpush1.msra.mxu0 %v1728
    %3335 = vmatprep.subr.mxu0 %v1735
    %3336 = vmatpush1.msra.mxu0 %v1734
    %3337 = vmatprep.subr.mxu0 %v1741
    %3338 = vmatpush1.msra.mxu0 %v1740
    %3339 = vmatprep.subr.mxu0 %v1747
    %3340 = vmatpush1.msra.mxu0 %v1746
    %3341 = vmatprep.subr.mxu0 %v1753
    %3342 = vmatpush1.msra.mxu0 %v1752
    %3343 = vmatprep.subr.mxu0 %v1759
    %3344 = vmatpush1.msra.mxu0 %v1758
    %3345 = vmatprep.subr.mxu0 %v1765
    %3346 = vmatpush1.msra.mxu0 %v1764
    %3347 = vmatprep.subr.mxu0 %v1771
    %3348 = vmatpush1.msra.mxu0 %v1770
    %3349 = vmatprep.subr.mxu0 %v1777
    %3350 = vmatpush1.msra.mxu0 %v1776
    %3351 = vmatprep.subr.mxu0 %v1783
    %3352 = vmatpush1.msra.mxu0 %v1782
    %3353 = vmatprep.subr.mxu0 %v1789
    %3354 = vmatpush1.msra.mxu0 %v1788
    %3355 = vmatprep.subr.mxu0 %v1795
    %3356 = vmatpush1.msra.mxu0 %v1794
    %3357 = vmatprep.subr.mxu0 %v1801
    %3358 = vmatpush1.msra.mxu0 %v1800
    %3359 = vmatprep.subr.mxu0 %v1807
    %3360 = vmatpush1.msra.mxu0 %v1806
    %3361 = vmatprep.subr.mxu0 %v1813
    %3362 = vmatpush1.msra.mxu0 %v1812
    %3363 = vmatprep.subr.mxu0 %v1819
    %3364 = vmatpush1.msra.mxu0 %v1818
    %3365 = vmatprep.mubr.f32.mxu0 %v1047
    %3366 = vmatmul.mubr.f32.gmra.mrb[0].mxu0 %v1046
    %v3367 = vpop.f32.mrb[0].mxu0
    %v3368 = vadd.f32 %v3297, %v3367
    %v3369 = vpop.f32.mrb[0].mxu0
    %v3370 = vadd.f32 %v3299, %v3369
    %3371 = vdwg.mxu0
    %3372 = vmatprep.subr.mxu0 %v1825
    %3373 = vmatpush1.msra.mxu0 %v1824
    %3374 = vmatprep.subr.mxu0 %v1831
    %3375 = vmatpush1.msra.mxu0 %v1830
    %3376 = vmatprep.subr.mxu0 %v1837
    %3377 = vmatpush1.msra.mxu0 %v1836
    %3378 = vmatprep.subr.mxu0 %v1843
    %3379 = vmatpush1.msra.mxu0 %v1842
    %3380 = vmatprep.subr.mxu0 %v1849
    %3381 = vmatpush1.msra.mxu0 %v1848
    %3382 = vmatprep.subr.mxu0 %v1855
    %3383 = vmatpush1.msra.mxu0 %v1854
    %3384 = vmatprep.subr.mxu0 %v1861
    %3385 = vmatpush1.msra.mxu0 %v1860
    %3386 = vmatprep.subr.mxu0 %v1867
    %3387 = vmatpush1.msra.mxu0 %v1866
    %3388 = vmatprep.subr.mxu0 %v1873
    %3389 = vmatpush1.msra.mxu0 %v1872
    %3390 = vmatprep.subr.mxu0 %v1879
    %3391 = vmatpush1.msra.mxu0 %v1878
    %3392 = vmatprep.subr.mxu0 %v1885
    %3393 = vmatpush1.msra.mxu0 %v1884
    %3394 = vmatprep.subr.mxu0 %v1891
    %3395 = vmatpush1.msra.mxu0 %v1890
    %3396 = vmatprep.subr.mxu0 %v1897
    %3397 = vmatpush1.msra.mxu0 %v1896
    %3398 = vmatprep.subr.mxu0 %v1903
    %3399 = vmatpush1.msra.mxu0 %v1902
    %3400 = vmatprep.subr.mxu0 %v1909
    %3401 = vmatpush1.msra.mxu0 %v1908
    %3402 = vmatprep.subr.mxu0 %v1915
    %3403 = vmatpush1.msra.mxu0 %v1914
    %3404 = vmatprep.subr.mxu0 %v1921
    %3405 = vmatpush1.msra.mxu0 %v1920
    %3406 = vmatprep.subr.mxu0 %v1927
    %3407 = vmatpush1.msra.mxu0 %v1926
    %3408 = vmatprep.subr.mxu0 %v1933
    %3409 = vmatpush1.msra.mxu0 %v1932
    %3410 = vmatprep.subr.mxu0 %v1939
    %3411 = vmatpush1.msra.mxu0 %v1938
    %3412 = vmatprep.subr.mxu0 %v1945
    %3413 = vmatpush1.msra.mxu0 %v1944
    %3414 = vmatprep.subr.mxu0 %v1951
    %3415 = vmatpush1.msra.mxu0 %v1950
    %3416 = vmatprep.subr.mxu0 %v1957
    %3417 = vmatpush1.msra.mxu0 %v1956
    %3418 = vmatprep.subr.mxu0 %v1963
    %3419 = vmatpush1.msra.mxu0 %v1962
    %3420 = vmatprep.subr.mxu0 %v1969
    %3421 = vmatpush1.msra.mxu0 %v1968
    %3422 = vmatprep.subr.mxu0 %v1975
    %3423 = vmatpush1.msra.mxu0 %v1974
    %3424 = vmatprep.subr.mxu0 %v1981
    %3425 = vmatpush1.msra.mxu0 %v1980
    %3426 = vmatprep.subr.mxu0 %v1987
    %3427 = vmatpush1.msra.mxu0 %v1986
    %3428 = vmatprep.subr.mxu0 %v1993
    %3429 = vmatpush1.msra.mxu0 %v1992
    %3430 = vmatprep.subr.mxu0 %v1999
    %3431 = vmatpush1.msra.mxu0 %v1998
    %3432 = vmatprep.subr.mxu0 %v2005
    %3433 = vmatpush1.msra.mxu0 %v2004
    %3434 = vmatprep.subr.mxu0 %v2011
    %3435 = vmatpush1.msra.mxu0 %v2010
    %3436 = vmatprep.mubr.f32.mxu0 %v1049
    %3437 = vmatmul.mubr.f32.gmra.mrb[0].mxu0 %v1048
    %v3438 = vpop.f32.mrb[0].mxu0
    %v3439 = vadd.f32 %v3368, %v3438
    %v3440 = vpop.f32.mrb[0].mxu0
    %v3441 = vadd.f32 %v3370, %v3440
    %3442 = vdwg.mxu0
    %3443 = vmatprep.subr.mxu0 %v2017
    %3444 = vmatpush1.msra.mxu0 %v2016
    %3445 = vmatprep.subr.mxu0 %v2023
    %3446 = vmatpush1.msra.mxu0 %v2022
    %3447 = vmatprep.subr.mxu0 %v2029
    %3448 = vmatpush1.msra.mxu0 %v2028
    %3449 = vmatprep.subr.mxu0 %v2035
    %3450 = vmatpush1.msra.mxu0 %v2034
    %3451 = vmatprep.subr.mxu0 %v2041
    %3452 = vmatpush1.msra.mxu0 %v2040
    %3453 = vmatprep.subr.mxu0 %v2047
    %3454 = vmatpush1.msra.mxu0 %v2046
    %3455 = vmatprep.subr.mxu0 %v2053
    %3456 = vmatpush1.msra.mxu0 %v2052
    %3457 = vmatprep.subr.mxu0 %v2059
    %3458 = vmatpush1.msra.mxu0 %v2058
    %3459 = vmatprep.subr.mxu0 %v2065
    %3460 = vmatpush1.msra.mxu0 %v2064
    %3461 = vmatprep.subr.mxu0 %v2071
    %3462 = vmatpush1.msra.mxu0 %v2070
    %3463 = vmatprep.subr.mxu0 %v2077
    %3464 = vmatpush1.msra.mxu0 %v2076
    %3465 = vmatprep.subr.mxu0 %v2083
    %3466 = vmatpush1.msra.mxu0 %v2082
    %3467 = vmatprep.subr.mxu0 %v2089
    %3468 = vmatpush1.msra.mxu0 %v2088
    %3469 = vmatprep.subr.mxu0 %v2095
    %3470 = vmatpush1.msra.mxu0 %v2094
    %3471 = vmatprep.subr.mxu0 %v2101
    %3472 = vmatpush1.msra.mxu0 %v2100
    %3473 = vmatprep.subr.mxu0 %v2107
    %3474 = vmatpush1.msra.mxu0 %v2106
    %3475 = vmatprep.subr.mxu0 %v2113
    %3476 = vmatpush1.msra.mxu0 %v2112
    %3477 = vmatprep.subr.mxu0 %v2119
    %3478 = vmatpush1.msra.mxu0 %v2118
    %3479 = vmatprep.subr.mxu0 %v2125
    %3480 = vmatpush1.msra.mxu0 %v2124
    %3481 = vmatprep.subr.mxu0 %v2131
    %3482 = vmatpush1.msra.mxu0 %v2130
    %3483 = vmatprep.subr.mxu0 %v2137
    %3484 = vmatpush1.msra.mxu0 %v2136
    %3485 = vmatprep.subr.mxu0 %v2143
    %3486 = vmatpush1.msra.mxu0 %v2142
    %3487 = vmatprep.subr.mxu0 %v2149
    %3488 = vmatpush1.msra.mxu0 %v2148
    %3489 = vmatprep.subr.mxu0 %v2155
    %3490 = vmatpush1.msra.mxu0 %v2154
    %3491 = vmatprep.subr.mxu0 %v2161
    %3492 = vmatpush1.msra.mxu0 %v2160
    %3493 = vmatprep.subr.mxu0 %v2167
    %3494 = vmatpush1.msra.mxu0 %v2166
    %3495 = vmatprep.subr.mxu0 %v2173
    %3496 = vmatpush1.msra.mxu0 %v2172
    %3497 = vmatprep.subr.mxu0 %v2179
    %3498 = vmatpush1.msra.mxu0 %v2178
    %3499 = vmatprep.subr.mxu0 %v2185
    %3500 = vmatpush1.msra.mxu0 %v2184
    %3501 = vmatprep.subr.mxu0 %v2191
    %3502 = vmatpush1.msra.mxu0 %v2190
    %3503 = vmatprep.subr.mxu0 %v2197
    %3504 = vmatpush1.msra.mxu0 %v2196
    %3505 = vmatprep.subr.mxu0 %v2203
    %3506 = vmatpush1.msra.mxu0 %v2202
    %3507 = vmatprep.mubr.f32.mxu0 %v1051
    %3508 = vmatmul.mubr.f32.gmra.mrb[0].mxu0 %v1050
    %v3509 = vpop.f32.mrb[0].mxu0
    %v3510 = vadd.f32 %v3439, %v3509
    %v3511 = vpop.f32.mrb[0].mxu0
    %v3512 = vadd.f32 %v3441, %v3511
    %3513 = vdwg.mxu0
    %v3514 = vld [vmem:[#allocation9] sm:$0xff]
    %v3515 = vld [vmem:[#allocation9 + $0x8] sm:$0xff]
    %v3516 = vld [vmem:[#allocation9 + $0x10] sm:$0xff]
    %v3517 = vld [vmem:[#allocation9 + $0x18] sm:$0xff]
    %v3518 = vld [vmem:[#allocation9 + $0x20] sm:$0xff]
    %v3519 = vld [vmem:[#allocation9 + $0x28] sm:$0xff]
    %v3520 = vld [vmem:[#allocation9 + $0x30] sm:$0xff]
    %v3521 = vld [vmem:[#allocation9 + $0x38] sm:$0xff]
    %v3522 = vld [vmem:[#allocation9 + $0x40] sm:$0xff]
    %v3523 = vld [vmem:[#allocation9 + $0x48] sm:$0xff]
    %v3524 = vld [vmem:[#allocation9 + $0x50] sm:$0xff]
    %v3525 = vld [vmem:[#allocation9 + $0x58] sm:$0xff]
    %v3526 = vld [vmem:[#allocation9 + $0x60] sm:$0xff]
    %v3527 = vld [vmem:[#allocation9 + $0x68] sm:$0xff]
    %v3528 = vld [vmem:[#allocation9 + $0x70] sm:$0xff]
    %v3529 = vld [vmem:[#allocation9 + $0x78] sm:$0xff]
    %v3530 = vld [vmem:[#allocation9 + $0x80] sm:$0xff]
    %v3531 = vld [vmem:[#allocation9 + $0x88] sm:$0xff]
    %v3532 = vld [vmem:[#allocation9 + $0x90] sm:$0xff]
    %v3533 = vld [vmem:[#allocation9 + $0x98] sm:$0xff]
    %v3534 = vld [vmem:[#allocation9 + $0xa0] sm:$0xff]
    %v3535 = vld [vmem:[#allocation9 + $0xa8] sm:$0xff]
    %v3536 = vld [vmem:[#allocation9 + $0xb0] sm:$0xff]
    %v3537 = vld [vmem:[#allocation9 + $0xb8] sm:$0xff]
    %v3538 = vld [vmem:[#allocation9 + $0xc0] sm:$0xff]
    %v3539 = vld [vmem:[#allocation9 + $0xc8] sm:$0xff]
    %v3540 = vld [vmem:[#allocation9 + $0xd0] sm:$0xff]
    %v3541 = vld [vmem:[#allocation9 + $0xd8] sm:$0xff]
    %v3542 = vld [vmem:[#allocation9 + $0xe0] sm:$0xff]
    %v3543 = vld [vmem:[#allocation9 + $0xe8] sm:$0xff]
    %v3544 = vld [vmem:[#allocation9 + $0xf0] sm:$0xff]
    %v3545 = vld [vmem:[#allocation9 + $0xf8] sm:$0xff]
    %v3546 = vld [vmem:[#allocation9 + $0x100] sm:$0xff]
    %v3547 = vld [vmem:[#allocation9 + $0x108] sm:$0xff]
    %v3548 = vld [vmem:[#allocation9 + $0x110] sm:$0xff]
    %v3549 = vld [vmem:[#allocation9 + $0x118] sm:$0xff]
    %v3550 = vld [vmem:[#allocation9 + $0x120] sm:$0xff]
    %v3551 = vld [vmem:[#allocation9 + $0x128] sm:$0xff]
    %v3552 = vld [vmem:[#allocation9 + $0x130] sm:$0xff]
    %v3553 = vld [vmem:[#allocation9 + $0x138] sm:$0xff]
    %v3554 = vld [vmem:[#allocation9 + $0x140] sm:$0xff]
    %v3555 = vld [vmem:[#allocation9 + $0x148] sm:$0xff]
    %v3556 = vld [vmem:[#allocation9 + $0x150] sm:$0xff]
    %v3557 = vld [vmem:[#allocation9 + $0x158] sm:$0xff]
    %v3558 = vld [vmem:[#allocation9 + $0x160] sm:$0xff]
    %v3559 = vld [vmem:[#allocation9 + $0x168] sm:$0xff]
    %v3560 = vld [vmem:[#allocation9 + $0x170] sm:$0xff]
    %v3561 = vld [vmem:[#allocation9 + $0x178] sm:$0xff]
    %v3562 = vld [vmem:[#allocation9 + $0x180] sm:$0xff]
    %v3563 = vld [vmem:[#allocation9 + $0x188] sm:$0xff]
    %v3564 = vld [vmem:[#allocation9 + $0x190] sm:$0xff]
    %v3565 = vld [vmem:[#allocation9 + $0x198] sm:$0xff]
    %v3566 = vld [vmem:[#allocation9 + $0x1a0] sm:$0xff]
    %v3567 = vld [vmem:[#allocation9 + $0x1a8] sm:$0xff]
    %v3568 = vld [vmem:[#allocation9 + $0x1b0] sm:$0xff]
    %v3569 = vld [vmem:[#allocation9 + $0x1b8] sm:$0xff]
    %v3570 = vld [vmem:[#allocation9 + $0x1c0] sm:$0xff]
    %v3571 = vld [vmem:[#allocation9 + $0x1c8] sm:$0xff]
    %v3572 = vld [vmem:[#allocation9 + $0x1d0] sm:$0xff]
    %v3573 = vld [vmem:[#allocation9 + $0x1d8] sm:$0xff]
    %v3574 = vld [vmem:[#allocation9 + $0x1e0] sm:$0xff]
    %v3575 = vld [vmem:[#allocation9 + $0x1e8] sm:$0xff]
    %v3576 = vld [vmem:[#allocation9 + $0x1f0] sm:$0xff]
    %v3577 = vld [vmem:[#allocation9 + $0x1f8] sm:$0xff]
    %v3578 = vld [vmem:[#allocation9 + $0x200] sm:$0xff]
    %v3579 = vld [vmem:[#allocation9 + $0x208] sm:$0xff]
    %v3580 = vld [vmem:[#allocation9 + $0x210] sm:$0xff]
    %v3581 = vld [vmem:[#allocation9 + $0x218] sm:$0xff]
    %v3582 = vld [vmem:[#allocation9 + $0x220] sm:$0xff]
    %v3583 = vld [vmem:[#allocation9 + $0x228] sm:$0xff]
    %v3584 = vld [vmem:[#allocation9 + $0x230] sm:$0xff]
    %v3585 = vld [vmem:[#allocation9 + $0x238] sm:$0xff]
    %v3586 = vld [vmem:[#allocation9 + $0x240] sm:$0xff]
    %v3587 = vld [vmem:[#allocation9 + $0x248] sm:$0xff]
    %v3588 = vld [vmem:[#allocation9 + $0x250] sm:$0xff]
    %v3589 = vld [vmem:[#allocation9 + $0x258] sm:$0xff]
    %v3590 = vld [vmem:[#allocation9 + $0x260] sm:$0xff]
    %v3591 = vld [vmem:[#allocation9 + $0x268] sm:$0xff]
    %v3592 = vld [vmem:[#allocation9 + $0x270] sm:$0xff]
    %v3593 = vld [vmem:[#allocation9 + $0x278] sm:$0xff]
    %v3594 = vld [vmem:[#allocation9 + $0x280] sm:$0xff]
    %v3595 = vld [vmem:[#allocation9 + $0x288] sm:$0xff]
    %v3596 = vld [vmem:[#allocation9 + $0x290] sm:$0xff]
    %v3597 = vld [vmem:[#allocation9 + $0x298] sm:$0xff]
    %v3598 = vld [vmem:[#allocation9 + $0x2a0] sm:$0xff]
    %v3599 = vld [vmem:[#allocation9 + $0x2a8] sm:$0xff]
    %v3600 = vld [vmem:[#allocation9 + $0x2b0] sm:$0xff]
    %v3601 = vld [vmem:[#allocation9 + $0x2b8] sm:$0xff]
    %v3602 = vld [vmem:[#allocation9 + $0x2c0] sm:$0xff]
    %v3603 = vld [vmem:[#allocation9 + $0x2c8] sm:$0xff]
    %v3604 = vld [vmem:[#allocation9 + $0x2d0] sm:$0xff]
    %v3605 = vld [vmem:[#allocation9 + $0x2d8] sm:$0xff]
    %v3606 = vld [vmem:[#allocation9 + $0x2e0] sm:$0xff]
    %v3607 = vld [vmem:[#allocation9 + $0x2e8] sm:$0xff]
    %v3608 = vld [vmem:[#allocation9 + $0x2f0] sm:$0xff]
    %v3609 = vld [vmem:[#allocation9 + $0x2f8] sm:$0xff]
    %v3610 = vld [vmem:[#allocation9 + $0x300] sm:$0xff]
    %v3611 = vld [vmem:[#allocation9 + $0x308] sm:$0xff]
    %v3612 = vld [vmem:[#allocation9 + $0x310] sm:$0xff]
    %v3613 = vld [vmem:[#allocation9 + $0x318] sm:$0xff]
    %v3614 = vld [vmem:[#allocation9 + $0x320] sm:$0xff]
    %v3615 = vld [vmem:[#allocation9 + $0x328] sm:$0xff]
    %v3616 = vld [vmem:[#allocation9 + $0x330] sm:$0xff]
    %v3617 = vld [vmem:[#allocation9 + $0x338] sm:$0xff]
    %v3618 = vld [vmem:[#allocation9 + $0x340] sm:$0xff]
    %v3619 = vld [vmem:[#allocation9 + $0x348] sm:$0xff]
    %v3620 = vld [vmem:[#allocation9 + $0x350] sm:$0xff]
    %v3621 = vld [vmem:[#allocation9 + $0x358] sm:$0xff]
    %v3622 = vld [vmem:[#allocation9 + $0x360] sm:$0xff]
    %v3623 = vld [vmem:[#allocation9 + $0x368] sm:$0xff]
    %v3624 = vld [vmem:[#allocation9 + $0x370] sm:$0xff]
    %v3625 = vld [vmem:[#allocation9 + $0x378] sm:$0xff]
    %v3626 = vld [vmem:[#allocation9 + $0x380] sm:$0xff]
    %v3627 = vld [vmem:[#allocation9 + $0x388] sm:$0xff]
    %v3628 = vld [vmem:[#allocation9 + $0x390] sm:$0xff]
    %v3629 = vld [vmem:[#allocation9 + $0x398] sm:$0xff]
    %v3630 = vld [vmem:[#allocation9 + $0x3a0] sm:$0xff]
    %v3631 = vld [vmem:[#allocation9 + $0x3a8] sm:$0xff]
    %v3632 = vld [vmem:[#allocation9 + $0x3b0] sm:$0xff]
    %v3633 = vld [vmem:[#allocation9 + $0x3b8] sm:$0xff]
    %v3634 = vld [vmem:[#allocation9 + $0x3c0] sm:$0xff]
    %v3635 = vld [vmem:[#allocation9 + $0x3c8] sm:$0xff]
    %v3636 = vld [vmem:[#allocation9 + $0x3d0] sm:$0xff]
    %v3637 = vld [vmem:[#allocation9 + $0x3d8] sm:$0xff]
    %v3638 = vld [vmem:[#allocation9 + $0x3e0] sm:$0xff]
    %v3639 = vld [vmem:[#allocation9 + $0x3e8] sm:$0xff]
    %v3640 = vld [vmem:[#allocation9 + $0x3f0] sm:$0xff]
    %v3641 = vld [vmem:[#allocation9 + $0x3f8] sm:$0xff]
    %v3642 = vld [vmem:[#allocation9 + $0x400] sm:$0xff]
    %v3643 = vld [vmem:[#allocation9 + $0x408] sm:$0xff]
    %v3644 = vld [vmem:[#allocation9 + $0x410] sm:$0xff]
    %v3645 = vld [vmem:[#allocation9 + $0x418] sm:$0xff]
    %v3646 = vld [vmem:[#allocation9 + $0x420] sm:$0xff]
    %v3647 = vld [vmem:[#allocation9 + $0x428] sm:$0xff]
    %v3648 = vld [vmem:[#allocation9 + $0x430] sm:$0xff]
    %v3649 = vld [vmem:[#allocation9 + $0x438] sm:$0xff]
    %v3650 = vld [vmem:[#allocation9 + $0x440] sm:$0xff]
    %v3651 = vld [vmem:[#allocation9 + $0x448] sm:$0xff]
    %v3652 = vld [vmem:[#allocation9 + $0x450] sm:$0xff]
    %v3653 = vld [vmem:[#allocation9 + $0x458] sm:$0xff]
    %v3654 = vld [vmem:[#allocation9 + $0x460] sm:$0xff]
    %v3655 = vld [vmem:[#allocation9 + $0x468] sm:$0xff]
    %v3656 = vld [vmem:[#allocation9 + $0x470] sm:$0xff]
    %v3657 = vld [vmem:[#allocation9 + $0x478] sm:$0xff]
    %v3658 = vld [vmem:[#allocation9 + $0x480] sm:$0xff]
    %v3659 = vld [vmem:[#allocation9 + $0x488] sm:$0xff]
    %v3660 = vld [vmem:[#allocation9 + $0x490] sm:$0xff]
    %v3661 = vld [vmem:[#allocation9 + $0x498] sm:$0xff]
    %v3662 = vld [vmem:[#allocation9 + $0x4a0] sm:$0xff]
    %v3663 = vld [vmem:[#allocation9 + $0x4a8] sm:$0xff]
    %v3664 = vld [vmem:[#allocation9 + $0x4b0] sm:$0xff]
    %v3665 = vld [vmem:[#allocation9 + $0x4b8] sm:$0xff]
    %v3666 = vld [vmem:[#allocation9 + $0x4c0] sm:$0xff]
    %v3667 = vld [vmem:[#allocation9 + $0x4c8] sm:$0xff]
    %v3668 = vld [vmem:[#allocation9 + $0x4d0] sm:$0xff]
    %v3669 = vld [vmem:[#allocation9 + $0x4d8] sm:$0xff]
    %v3670 = vld [vmem:[#allocation9 + $0x4e0] sm:$0xff]
    %v3671 = vld [vmem:[#allocation9 + $0x4e8] sm:$0xff]
    %v3672 = vld [vmem:[#allocation9 + $0x4f0] sm:$0xff]
    %v3673 = vld [vmem:[#allocation9 + $0x4f8] sm:$0xff]
    %v3674 = vld [vmem:[#allocation9 + $0x500] sm:$0xff]
    %v3675 = vld [vmem:[#allocation9 + $0x508] sm:$0xff]
    %v3676 = vld [vmem:[#allocation9 + $0x510] sm:$0xff]
    %v3677 = vld [vmem:[#allocation9 + $0x518] sm:$0xff]
    %v3678 = vld [vmem:[#allocation9 + $0x520] sm:$0xff]
    %v3679 = vld [vmem:[#allocation9 + $0x528] sm:$0xff]
    %v3680 = vld [vmem:[#allocation9 + $0x530] sm:$0xff]
    %v3681 = vld [vmem:[#allocation9 + $0x538] sm:$0xff]
    %v3682 = vld [vmem:[#allocation9 + $0x540] sm:$0xff]
    %v3683 = vld [vmem:[#allocation9 + $0x548] sm:$0xff]
    %v3684 = vld [vmem:[#allocation9 + $0x550] sm:$0xff]
    %v3685 = vld [vmem:[#allocation9 + $0x558] sm:$0xff]
    %v3686 = vld [vmem:[#allocation9 + $0x560] sm:$0xff]
    %v3687 = vld [vmem:[#allocation9 + $0x568] sm:$0xff]
    %v3688 = vld [vmem:[#allocation9 + $0x570] sm:$0xff]
    %v3689 = vld [vmem:[#allocation9 + $0x578] sm:$0xff]
    %v3690 = vld [vmem:[#allocation9 + $0x580] sm:$0xff]
    %v3691 = vld [vmem:[#allocation9 + $0x588] sm:$0xff]
    %v3692 = vld [vmem:[#allocation9 + $0x590] sm:$0xff]
    %v3693 = vld [vmem:[#allocation9 + $0x598] sm:$0xff]
    %v3694 = vld [vmem:[#allocation9 + $0x5a0] sm:$0xff]
    %v3695 = vld [vmem:[#allocation9 + $0x5a8] sm:$0xff]
    %v3696 = vld [vmem:[#allocation9 + $0x5b0] sm:$0xff]
    %v3697 = vld [vmem:[#allocation9 + $0x5b8] sm:$0xff]
    %v3698 = vld [vmem:[#allocation9 + $0x5c0] sm:$0xff]
    %v3699 = vld [vmem:[#allocation9 + $0x5c8] sm:$0xff]
    %v3700 = vld [vmem:[#allocation9 + $0x5d0] sm:$0xff]
    %v3701 = vld [vmem:[#allocation9 + $0x5d8] sm:$0xff]
    %v3702 = vld [vmem:[#allocation9 + $0x5e0] sm:$0xff]
    %v3703 = vld [vmem:[#allocation9 + $0x5e8] sm:$0xff]
    %v3704 = vld [vmem:[#allocation9 + $0x5f0] sm:$0xff]
    %v3705 = vld [vmem:[#allocation9 + $0x5f8] sm:$0xff]
    %v3706 = vld [vmem:[#allocation10] sm:$0x3]
    %v3708 = vlaneseq
    %v3709 = vshrl.u32 %v3708, 7
    %v3710 = vsub.s32 0, %v3709
    %v3711 = vrot.slane %v3706, %v3710
    %v3712 = vlaneseq
    %v3713 = vshrl.u32 %v3712, 7
    %v3714 = vsub.s32 1, %v3713
    %v3715 = vrot.slane %v3706, %v3714
    %3718 = vmatprep.subr.mxu0 %v3515
    %3719 = vmatpush1.msra.mxu0 %v3514
    %3720 = vmatprep.subr.mxu0 %v3517
    %3721 = vmatpush1.msra.mxu0 %v3516
    %3722 = vmatprep.subr.mxu0 %v3519
    %3723 = vmatpush1.msra.mxu0 %v3518
    %3724 = vmatprep.subr.mxu0 %v3521
    %3725 = vmatpush1.msra.mxu0 %v3520
    %3726 = vmatprep.subr.mxu0 %v3523
    %3727 = vmatpush1.msra.mxu0 %v3522
    %3728 = vmatprep.subr.mxu0 %v3525
    %3729 = vmatpush1.msra.mxu0 %v3524
    %3730 = vmatprep.subr.mxu0 %v3527
    %3731 = vmatpush1.msra.mxu0 %v3526
    %3732 = vmatprep.subr.mxu0 %v3529
    %3733 = vmatpush1.msra.mxu0 %v3528
    %3734 = vmatprep.subr.mxu0 %v3531
    %3735 = vmatpush1.msra.mxu0 %v3530
    %3736 = vmatprep.subr.mxu0 %v3533
    %3737 = vmatpush1.msra.mxu0 %v3532
    %3738 = vmatprep.subr.mxu0 %v3535
    %3739 = vmatpush1.msra.mxu0 %v3534
    %3740 = vmatprep.subr.mxu0 %v3537
    %3741 = vmatpush1.msra.mxu0 %v3536
    %3742 = vmatprep.subr.mxu0 %v3539
    %3743 = vmatpush1.msra.mxu0 %v3538
    %3744 = vmatprep.subr.mxu0 %v3541
    %3745 = vmatpush1.msra.mxu0 %v3540
    %3746 = vmatprep.subr.mxu0 %v3543
    %3747 = vmatpush1.msra.mxu0 %v3542
    %3748 = vmatprep.subr.mxu0 %v3545
    %3749 = vmatpush1.msra.mxu0 %v3544
    %3750 = vmatprep.subr.mxu0 %v3547
    %3751 = vmatpush1.msra.mxu0 %v3546
    %3752 = vmatprep.subr.mxu0 %v3549
    %3753 = vmatpush1.msra.mxu0 %v3548
    %3754 = vmatprep.subr.mxu0 %v3551
    %3755 = vmatpush1.msra.mxu0 %v3550
    %3756 = vmatprep.subr.mxu0 %v3553
    %3757 = vmatpush1.msra.mxu0 %v3552
    %3758 = vmatprep.subr.mxu0 %v3555
    %3759 = vmatpush1.msra.mxu0 %v3554
    %3760 = vmatprep.subr.mxu0 %v3557
    %3761 = vmatpush1.msra.mxu0 %v3556
    %3762 = vmatprep.subr.mxu0 %v3559
    %3763 = vmatpush1.msra.mxu0 %v3558
    %3764 = vmatprep.subr.mxu0 %v3561
    %3765 = vmatpush1.msra.mxu0 %v3560
    %3766 = vmatprep.subr.mxu0 %v3563
    %3767 = vmatpush1.msra.mxu0 %v3562
    %3768 = vmatprep.subr.mxu0 %v3565
    %3769 = vmatpush1.msra.mxu0 %v3564
    %3770 = vmatprep.subr.mxu0 %v3567
    %3771 = vmatpush1.msra.mxu0 %v3566
    %3772 = vmatprep.subr.mxu0 %v3569
    %3773 = vmatpush1.msra.mxu0 %v3568
    %3774 = vmatprep.subr.mxu0 %v3571
    %3775 = vmatpush1.msra.mxu0 %v3570
    %3776 = vmatprep.subr.mxu0 %v3573
    %3777 = vmatpush1.msra.mxu0 %v3572
    %3778 = vmatprep.subr.mxu0 %v3575
    %3779 = vmatpush1.msra.mxu0 %v3574
    %3780 = vmatprep.subr.mxu0 %v3577
    %3781 = vmatpush1.msra.mxu0 %v3576
    %3782 = vmatprep.mubr.f32.mxu0 %v2660
    %3783 = vmatmul.mubr.f32.gmra.mrb[0].mxu0 %v2658
    %v3784 = vpop.f32.mrb[0].mxu0
    %v3785 = vadd.f32 %v3711, %v3784
    %v3786 = vpop.f32.mrb[0].mxu0
    %v3787 = vadd.f32 %v3715, %v3786
    %3788 = vdwg.mxu0
    %3789 = vmatprep.subr.mxu0 %v3579
    %3790 = vmatpush1.msra.mxu0 %v3578
    %3791 = vmatprep.subr.mxu0 %v3581
    %3792 = vmatpush1.msra.mxu0 %v3580
    %3793 = vmatprep.subr.mxu0 %v3583
    %3794 = vmatpush1.msra.mxu0 %v3582
    %3795 = vmatprep.subr.mxu0 %v3585
    %3796 = vmatpush1.msra.mxu0 %v3584
    %3797 = vmatprep.subr.mxu0 %v3587
    %3798 = vmatpush1.msra.mxu0 %v3586
    %3799 = vmatprep.subr.mxu0 %v3589
    %3800 = vmatpush1.msra.mxu0 %v3588
    %3801 = vmatprep.subr.mxu0 %v3591
    %3802 = vmatpush1.msra.mxu0 %v3590
    %3803 = vmatprep.subr.mxu0 %v3593
    %3804 = vmatpush1.msra.mxu0 %v3592
    %3805 = vmatprep.subr.mxu0 %v3595
    %3806 = vmatpush1.msra.mxu0 %v3594
    %3807 = vmatprep.subr.mxu0 %v3597
    %3808 = vmatpush1.msra.mxu0 %v3596
    %3809 = vmatprep.subr.mxu0 %v3599
    %3810 = vmatpush1.msra.mxu0 %v3598
    %3811 = vmatprep.subr.mxu0 %v3601
    %3812 = vmatpush1.msra.mxu0 %v3600
    %3813 = vmatprep.subr.mxu0 %v3603
    %3814 = vmatpush1.msra.mxu0 %v3602
    %3815 = vmatprep.subr.mxu0 %v3605
    %3816 = vmatpush1.msra.mxu0 %v3604
    %3817 = vmatprep.subr.mxu0 %v3607
    %3818 = vmatpush1.msra.mxu0 %v3606
    %3819 = vmatprep.subr.mxu0 %v3609
    %3820 = vmatpush1.msra.mxu0 %v3608
    %3821 = vmatprep.subr.mxu0 %v3611
    %3822 = vmatpush1.msra.mxu0 %v3610
    %3823 = vmatprep.subr.mxu0 %v3613
    %3824 = vmatpush1.msra.mxu0 %v3612
    %3825 = vmatprep.subr.mxu0 %v3615
    %3826 = vmatpush1.msra.mxu0 %v3614
    %3827 = vmatprep.subr.mxu0 %v3617
    %3828 = vmatpush1.msra.mxu0 %v3616
    %3829 = vmatprep.subr.mxu0 %v3619
    %3830 = vmatpush1.msra.mxu0 %v3618
    %3831 = vmatprep.subr.mxu0 %v3621
    %3832 = vmatpush1.msra.mxu0 %v3620
    %3833 = vmatprep.subr.mxu0 %v3623
    %3834 = vmatpush1.msra.mxu0 %v3622
    %3835 = vmatprep.subr.mxu0 %v3625
    %3836 = vmatpush1.msra.mxu0 %v3624
    %3837 = vmatprep.subr.mxu0 %v3627
    %3838 = vmatpush1.msra.mxu0 %v3626
    %3839 = vmatprep.subr.mxu0 %v3629
    %3840 = vmatpush1.msra.mxu0 %v3628
    %3841 = vmatprep.subr.mxu0 %v3631
    %3842 = vmatpush1.msra.mxu0 %v3630
    %3843 = vmatprep.subr.mxu0 %v3633
    %3844 = vmatpush1.msra.mxu0 %v3632
    %3845 = vmatprep.subr.mxu0 %v3635
    %3846 = vmatpush1.msra.mxu0 %v3634
    %3847 = vmatprep.subr.mxu0 %v3637
    %3848 = vmatpush1.msra.mxu0 %v3636
    %3849 = vmatprep.subr.mxu0 %v3639
    %3850 = vmatpush1.msra.mxu0 %v3638
    %3851 = vmatprep.subr.mxu0 %v3641
    %3852 = vmatpush1.msra.mxu0 %v3640
    %3853 = vmatprep.mubr.f32.mxu0 %v3086
    %3854 = vmatmul.mubr.f32.gmra.mrb[0].mxu0 %v3084
    %v3855 = vpop.f32.mrb[0].mxu0
    %v3856 = vadd.f32 %v3785, %v3855
    %v3857 = vpop.f32.mrb[0].mxu0
    %v3858 = vadd.f32 %v3787, %v3857
    %3859 = vdwg.mxu0
    %3860 = vmatprep.subr.mxu0 %v3643
    %3861 = vmatpush1.msra.mxu0 %v3642
    %3862 = vmatprep.subr.mxu0 %v3645
    %3863 = vmatpush1.msra.mxu0 %v3644
    %3864 = vmatprep.subr.mxu0 %v3647
    %3865 = vmatpush1.msra.mxu0 %v3646
    %3866 = vmatprep.subr.mxu0 %v3649
    %3867 = vmatpush1.msra.mxu0 %v3648
    %3868 = vmatprep.subr.mxu0 %v3651
    %3869 = vmatpush1.msra.mxu0 %v3650
    %3870 = vmatprep.subr.mxu0 %v3653
    %3871 = vmatpush1.msra.mxu0 %v3652
    %3872 = vmatprep.subr.mxu0 %v3655
    %3873 = vmatpush1.msra.mxu0 %v3654
    %3874 = vmatprep.subr.mxu0 %v3657
    %3875 = vmatpush1.msra.mxu0 %v3656
    %3876 = vmatprep.subr.mxu0 %v3659
    %3877 = vmatpush1.msra.mxu0 %v3658
    %3878 = vmatprep.subr.mxu0 %v3661
    %3879 = vmatpush1.msra.mxu0 %v3660
    %3880 = vmatprep.subr.mxu0 %v3663
    %3881 = vmatpush1.msra.mxu0 %v3662
    %3882 = vmatprep.subr.mxu0 %v3665
    %3883 = vmatpush1.msra.mxu0 %v3664
    %3884 = vmatprep.subr.mxu0 %v3667
    %3885 = vmatpush1.msra.mxu0 %v3666
    %3886 = vmatprep.subr.mxu0 %v3669
    %3887 = vmatpush1.msra.mxu0 %v3668
    %3888 = vmatprep.subr.mxu0 %v3671
    %3889 = vmatpush1.msra.mxu0 %v3670
    %3890 = vmatprep.subr.mxu0 %v3673
    %3891 = vmatpush1.msra.mxu0 %v3672
    %3892 = vmatprep.subr.mxu0 %v3675
    %3893 = vmatpush1.msra.mxu0 %v3674
    %3894 = vmatprep.subr.mxu0 %v3677
    %3895 = vmatpush1.msra.mxu0 %v3676
    %3896 = vmatprep.subr.mxu0 %v3679
    %3897 = vmatpush1.msra.mxu0 %v3678
    %3898 = vmatprep.subr.mxu0 %v3681
    %3899 = vmatpush1.msra.mxu0 %v3680
    %3900 = vmatprep.subr.mxu0 %v3683
    %3901 = vmatpush1.msra.mxu0 %v3682
    %3902 = vmatprep.subr.mxu0 %v3685
    %3903 = vmatpush1.msra.mxu0 %v3684
    %3904 = vmatprep.subr.mxu0 %v3687
    %3905 = vmatpush1.msra.mxu0 %v3686
    %3906 = vmatprep.subr.mxu0 %v3689
    %3907 = vmatpush1.msra.mxu0 %v3688
    %3908 = vmatprep.subr.mxu0 %v3691
    %3909 = vmatpush1.msra.mxu0 %v3690
    %3910 = vmatprep.subr.mxu0 %v3693
    %3911 = vmatpush1.msra.mxu0 %v3692
    %3912 = vmatprep.subr.mxu0 %v3695
    %3913 = vmatpush1.msra.mxu0 %v3694
    %3914 = vmatprep.subr.mxu0 %v3697
    %3915 = vmatpush1.msra.mxu0 %v3696
    %3916 = vmatprep.subr.mxu0 %v3699
    %3917 = vmatpush1.msra.mxu0 %v3698
    %3918 = vmatprep.subr.mxu0 %v3701
    %3919 = vmatpush1.msra.mxu0 %v3700
    %3920 = vmatprep.subr.mxu0 %v3703
    %3921 = vmatpush1.msra.mxu0 %v3702
    %3922 = vmatprep.subr.mxu0 %v3705
    %3923 = vmatpush1.msra.mxu0 %v3704
    %3924 = vmatprep.mubr.f32.mxu0 %v3512
    %3925 = vmatmul.mubr.f32.gmra.mrb[0].mxu0 %v3510
    %v3926 = vpop.f32.mrb[0].mxu0
    %v3927 = vadd.f32 %v3856, %v3926
    %v3928 = vpop.f32.mrb[0].mxu0
    %v3929 = vadd.f32 %v3858, %v3928
    %3930 = vdwg.mxu0
    %v3931 = vmax.f32 %v3927, 0.0
    %v3932 = vmax.f32 %v3929, 0.0
    %v3933 = vld [vmem:[#allocation12] sm:$0xff]
    %v3934 = vld [vmem:[#allocation12 + $0x8] sm:$0xff]
    %v3935 = vld [vmem:[#allocation12 + $0x10] sm:$0xff]
    %v3936 = vld [vmem:[#allocation12 + $0x18] sm:$0xff]
    %v3937 = vld [vmem:[#allocation12 + $0x20] sm:$0xff]
    %v3938 = vld [vmem:[#allocation12 + $0x28] sm:$0xff]
    %v3939 = vld [vmem:[#allocation12 + $0x30] sm:$0xff]
    %v3940 = vld [vmem:[#allocation12 + $0x38] sm:$0xff]
    %v3941 = vld [vmem:[#allocation12 + $0x40] sm:$0xff]
    %v3942 = vld [vmem:[#allocation12 + $0x48] sm:$0xff]
    %v3943 = vld [vmem:[#allocation12 + $0x50] sm:$0xff]
    %v3944 = vld [vmem:[#allocation12 + $0x58] sm:$0xff]
    %v3945 = vld [vmem:[#allocation12 + $0x60] sm:$0xff]
    %v3946 = vld [vmem:[#allocation12 + $0x68] sm:$0xff]
    %v3947 = vld [vmem:[#allocation12 + $0x70] sm:$0xff]
    %v3948 = vld [vmem:[#allocation12 + $0x78] sm:$0xff]
    %v3949 = vld [vmem:[#allocation12 + $0x80] sm:$0xff]
    %v3950 = vld [vmem:[#allocation12 + $0x88] sm:$0xff]
    %v3951 = vld [vmem:[#allocation12 + $0x90] sm:$0xff]
    %v3952 = vld [vmem:[#allocation12 + $0x98] sm:$0xff]
    %v3953 = vld [vmem:[#allocation12 + $0xa0] sm:$0xff]
    %v3954 = vld [vmem:[#allocation12 + $0xa8] sm:$0xff]
    %v3955 = vld [vmem:[#allocation12 + $0xb0] sm:$0xff]
    %v3956 = vld [vmem:[#allocation12 + $0xb8] sm:$0xff]
    %v3957 = vld [vmem:[#allocation12 + $0xc0] sm:$0xff]
    %v3958 = vld [vmem:[#allocation12 + $0xc8] sm:$0xff]
    %v3959 = vld [vmem:[#allocation12 + $0xd0] sm:$0xff]
    %v3960 = vld [vmem:[#allocation12 + $0xd8] sm:$0xff]
    %v3961 = vld [vmem:[#allocation12 + $0xe0] sm:$0xff]
    %v3962 = vld [vmem:[#allocation12 + $0xe8] sm:$0xff]
    %v3963 = vld [vmem:[#allocation12 + $0xf0] sm:$0xff]
    %v3964 = vld [vmem:[#allocation12 + $0xf8] sm:$0xff]
    %v3965 = vld [vmem:[#allocation12 + $0x100] sm:$0xff]
    %v3966 = vld [vmem:[#allocation12 + $0x108] sm:$0xff]
    %v3967 = vld [vmem:[#allocation12 + $0x110] sm:$0xff]
    %v3968 = vld [vmem:[#allocation12 + $0x118] sm:$0xff]
    %v3969 = vld [vmem:[#allocation12 + $0x120] sm:$0xff]
    %v3970 = vld [vmem:[#allocation12 + $0x128] sm:$0xff]
    %v3971 = vld [vmem:[#allocation12 + $0x130] sm:$0xff]
    %v3972 = vld [vmem:[#allocation12 + $0x138] sm:$0xff]
    %v3973 = vld [vmem:[#allocation12 + $0x140] sm:$0xff]
    %v3974 = vld [vmem:[#allocation12 + $0x148] sm:$0xff]
    %v3975 = vld [vmem:[#allocation12 + $0x150] sm:$0xff]
    %v3976 = vld [vmem:[#allocation12 + $0x158] sm:$0xff]
    %v3977 = vld [vmem:[#allocation12 + $0x160] sm:$0xff]
    %v3978 = vld [vmem:[#allocation12 + $0x168] sm:$0xff]
    %v3979 = vld [vmem:[#allocation12 + $0x170] sm:$0xff]
    %v3980 = vld [vmem:[#allocation12 + $0x178] sm:$0xff]
    %v3981 = vld [vmem:[#allocation12 + $0x180] sm:$0xff]
    %v3982 = vld [vmem:[#allocation12 + $0x188] sm:$0xff]
    %v3983 = vld [vmem:[#allocation12 + $0x190] sm:$0xff]
    %v3984 = vld [vmem:[#allocation12 + $0x198] sm:$0xff]
    %v3985 = vld [vmem:[#allocation12 + $0x1a0] sm:$0xff]
    %v3986 = vld [vmem:[#allocation12 + $0x1a8] sm:$0xff]
    %v3987 = vld [vmem:[#allocation12 + $0x1b0] sm:$0xff]
    %v3988 = vld [vmem:[#allocation12 + $0x1b8] sm:$0xff]
    %v3989 = vld [vmem:[#allocation12 + $0x1c0] sm:$0xff]
    %v3990 = vld [vmem:[#allocation12 + $0x1c8] sm:$0xff]
    %v3991 = vld [vmem:[#allocation12 + $0x1d0] sm:$0xff]
    %v3992 = vld [vmem:[#allocation12 + $0x1d8] sm:$0xff]
    %v3993 = vld [vmem:[#allocation12 + $0x1e0] sm:$0xff]
    %v3994 = vld [vmem:[#allocation12 + $0x1e8] sm:$0xff]
    %v3995 = vld [vmem:[#allocation12 + $0x1f0] sm:$0xff]
    %v3996 = vld [vmem:[#allocation12 + $0x1f8] sm:$0xff]
    %v3997 = vld [vmem:[#allocation13] sm:$0x3]
    %v3999 = vlaneseq
    %v4000 = vshrl.u32 %v3999, 7
    %v4001 = vsub.s32 0, %v4000
    %v4002 = vrot.slane %v3997, %v4001
    %v4003 = vlaneseq
    %v4004 = vshrl.u32 %v4003, 7
    %v4005 = vsub.s32 1, %v4004
    %v4006 = vrot.slane %v3997, %v4005
    %4009 = vmatprep.subr.mxu0 %v3934
    %4010 = vmatpush1.msra.mxu0 %v3933
    %4011 = vmatprep.subr.mxu0 %v3936
    %4012 = vmatpush1.msra.mxu0 %v3935
    %4013 = vmatprep.subr.mxu0 %v3938
    %4014 = vmatpush1.msra.mxu0 %v3937
    %4015 = vmatprep.subr.mxu0 %v3940
    %4016 = vmatpush1.msra.mxu0 %v3939
    %4017 = vmatprep.subr.mxu0 %v3942
    %4018 = vmatpush1.msra.mxu0 %v3941
    %4019 = vmatprep.subr.mxu0 %v3944
    %4020 = vmatpush1.msra.mxu0 %v3943
    %4021 = vmatprep.subr.mxu0 %v3946
    %4022 = vmatpush1.msra.mxu0 %v3945
    %4023 = vmatprep.subr.mxu0 %v3948
    %4024 = vmatpush1.msra.mxu0 %v3947
    %4025 = vmatprep.subr.mxu0 %v3950
    %4026 = vmatpush1.msra.mxu0 %v3949
    %4027 = vmatprep.subr.mxu0 %v3952
    %4028 = vmatpush1.msra.mxu0 %v3951
    %4029 = vmatprep.subr.mxu0 %v3954
    %4030 = vmatpush1.msra.mxu0 %v3953
    %4031 = vmatprep.subr.mxu0 %v3956
    %4032 = vmatpush1.msra.mxu0 %v3955
    %4033 = vmatprep.subr.mxu0 %v3958
    %4034 = vmatpush1.msra.mxu0 %v3957
    %4035 = vmatprep.subr.mxu0 %v3960
    %4036 = vmatpush1.msra.mxu0 %v3959
    %4037 = vmatprep.subr.mxu0 %v3962
    %4038 = vmatpush1.msra.mxu0 %v3961
    %4039 = vmatprep.subr.mxu0 %v3964
    %4040 = vmatpush1.msra.mxu0 %v3963
    %4041 = vmatprep.subr.mxu0 %v3966
    %4042 = vmatpush1.msra.mxu0 %v3965
    %4043 = vmatprep.subr.mxu0 %v3968
    %4044 = vmatpush1.msra.mxu0 %v3967
    %4045 = vmatprep.subr.mxu0 %v3970
    %4046 = vmatpush1.msra.mxu0 %v3969
    %4047 = vmatprep.subr.mxu0 %v3972
    %4048 = vmatpush1.msra.mxu0 %v3971
    %4049 = vmatprep.subr.mxu0 %v3974
    %4050 = vmatpush1.msra.mxu0 %v3973
    %4051 = vmatprep.subr.mxu0 %v3976
    %4052 = vmatpush1.msra.mxu0 %v3975
    %4053 = vmatprep.subr.mxu0 %v3978
    %4054 = vmatpush1.msra.mxu0 %v3977
    %4055 = vmatprep.subr.mxu0 %v3980
    %4056 = vmatpush1.msra.mxu0 %v3979
    %4057 = vmatprep.subr.mxu0 %v3982
    %4058 = vmatpush1.msra.mxu0 %v3981
    %4059 = vmatprep.subr.mxu0 %v3984
    %4060 = vmatpush1.msra.mxu0 %v3983
    %4061 = vmatprep.subr.mxu0 %v3986
    %4062 = vmatpush1.msra.mxu0 %v3985
    %4063 = vmatprep.subr.mxu0 %v3988
    %4064 = vmatpush1.msra.mxu0 %v3987
    %4065 = vmatprep.subr.mxu0 %v3990
    %4066 = vmatpush1.msra.mxu0 %v3989
    %4067 = vmatprep.subr.mxu0 %v3992
    %4068 = vmatpush1.msra.mxu0 %v3991
    %4069 = vmatprep.subr.mxu0 %v3994
    %4070 = vmatpush1.msra.mxu0 %v3993
    %4071 = vmatprep.subr.mxu0 %v3996
    %4072 = vmatpush1.msra.mxu0 %v3995
    %4073 = vmatprep.mubr.f32.mxu0 %v3932
    %4074 = vmatmul.mubr.f32.gmra.mrb[0].mxu0 %v3931
    %v4075 = vpop.f32.mrb[0].mxu0
    %v4076 = vadd.f32 %v4002, %v4075
    %v4077 = vpop.f32.mrb[0].mxu0
    %v4078 = vadd.f32 %v4006, %v4077
    %4079 = vdwg.mxu0
    %v4080 = vmax.f32 %v4076, 0.0
    %v4081 = vmax.f32 %v4078, 0.0
    %v4082 = vld [vmem:[#allocation15] sm:$0xff]
    %v4083 = vld [vmem:[#allocation15 + $0x8] sm:$0xff]
    %v4084 = vld [vmem:[#allocation15 + $0x10] sm:$0xff]
    %v4085 = vld [vmem:[#allocation15 + $0x18] sm:$0xff]
    %v4086 = vld [vmem:[#allocation15 + $0x20] sm:$0xff]
    %v4087 = vld [vmem:[#allocation15 + $0x28] sm:$0xff]
    %v4088 = vld [vmem:[#allocation15 + $0x30] sm:$0xff]
    %v4089 = vld [vmem:[#allocation15 + $0x38] sm:$0xff]
    %v4090 = vld [vmem:[#allocation15 + $0x40] sm:$0xff]
    %v4091 = vld [vmem:[#allocation15 + $0x48] sm:$0xff]
    %v4092 = vld [vmem:[#allocation15 + $0x50] sm:$0xff]
    %v4093 = vld [vmem:[#allocation15 + $0x58] sm:$0xff]
    %v4094 = vld [vmem:[#allocation15 + $0x60] sm:$0xff]
    %v4095 = vld [vmem:[#allocation15 + $0x68] sm:$0xff]
    %v4096 = vld [vmem:[#allocation15 + $0x70] sm:$0xff]
    %v4097 = vld [vmem:[#allocation15 + $0x78] sm:$0xff]
    %v4098 = vld [vmem:[#allocation15 + $0x80] sm:$0xff]
    %v4099 = vld [vmem:[#allocation15 + $0x88] sm:$0xff]
    %v4100 = vld [vmem:[#allocation15 + $0x90] sm:$0xff]
    %v4101 = vld [vmem:[#allocation15 + $0x98] sm:$0xff]
    %v4102 = vld [vmem:[#allocation15 + $0xa0] sm:$0xff]
    %v4103 = vld [vmem:[#allocation15 + $0xa8] sm:$0xff]
    %v4104 = vld [vmem:[#allocation15 + $0xb0] sm:$0xff]
    %v4105 = vld [vmem:[#allocation15 + $0xb8] sm:$0xff]
    %v4106 = vld [vmem:[#allocation15 + $0xc0] sm:$0xff]
    %v4107 = vld [vmem:[#allocation15 + $0xc8] sm:$0xff]
    %v4108 = vld [vmem:[#allocation15 + $0xd0] sm:$0xff]
    %v4109 = vld [vmem:[#allocation15 + $0xd8] sm:$0xff]
    %v4110 = vld [vmem:[#allocation15 + $0xe0] sm:$0xff]
    %v4111 = vld [vmem:[#allocation15 + $0xe8] sm:$0xff]
    %v4112 = vld [vmem:[#allocation15 + $0xf0] sm:$0xff]
    %v4113 = vld [vmem:[#allocation15 + $0xf8] sm:$0xff]
    %v4114 = vld [vmem:[#allocation16] sm:$0x1]
    %v4116 = vlaneseq
    %v4117 = vshrl.u32 %v4116, 7
    %v4118 = vsub.s32 0, %v4117
    %v4119 = vrot.slane %v4114, %v4118
    %4121 = vmatprep.subr.mxu0 0.0
    %4122 = vmatpush1.msra.mxu0 %v4082
    %4123 = vmatprep.subr.mxu0 0.0
    %4124 = vmatpush1.msra.mxu0 %v4083
    %4125 = vmatprep.subr.mxu0 0.0
    %4126 = vmatpush1.msra.mxu0 %v4084
    %4127 = vmatprep.subr.mxu0 0.0
    %4128 = vmatpush1.msra.mxu0 %v4085
    %4129 = vmatprep.subr.mxu0 0.0
    %4130 = vmatpush1.msra.mxu0 %v4086
    %4131 = vmatprep.subr.mxu0 0.0
    %4132 = vmatpush1.msra.mxu0 %v4087
    %4133 = vmatprep.subr.mxu0 0.0
    %4134 = vmatpush1.msra.mxu0 %v4088
    %4135 = vmatprep.subr.mxu0 0.0
    %4136 = vmatpush1.msra.mxu0 %v4089
    %4137 = vmatprep.subr.mxu0 0.0
    %4138 = vmatpush1.msra.mxu0 %v4090
    %4139 = vmatprep.subr.mxu0 0.0
    %4140 = vmatpush1.msra.mxu0 %v4091
    %4141 = vmatprep.subr.mxu0 0.0
    %4142 = vmatpush1.msra.mxu0 %v4092
    %4143 = vmatprep.subr.mxu0 0.0
    %4144 = vmatpush1.msra.mxu0 %v4093
    %4145 = vmatprep.subr.mxu0 0.0
    %4146 = vmatpush1.msra.mxu0 %v4094
    %4147 = vmatprep.subr.mxu0 0.0
    %4148 = vmatpush1.msra.mxu0 %v4095
    %4149 = vmatprep.subr.mxu0 0.0
    %4150 = vmatpush1.msra.mxu0 %v4096
    %4151 = vmatprep.subr.mxu0 0.0
    %4152 = vmatpush1.msra.mxu0 %v4097
    %4153 = vmatprep.subr.mxu0 0.0
    %4154 = vmatpush1.msra.mxu0 %v4098
    %4155 = vmatprep.subr.mxu0 0.0
    %4156 = vmatpush1.msra.mxu0 %v4099
    %4157 = vmatprep.subr.mxu0 0.0
    %4158 = vmatpush1.msra.mxu0 %v4100
    %4159 = vmatprep.subr.mxu0 0.0
    %4160 = vmatpush1.msra.mxu0 %v4101
    %4161 = vmatprep.subr.mxu0 0.0
    %4162 = vmatpush1.msra.mxu0 %v4102
    %4163 = vmatprep.subr.mxu0 0.0
    %4164 = vmatpush1.msra.mxu0 %v4103
    %4165 = vmatprep.subr.mxu0 0.0
    %4166 = vmatpush1.msra.mxu0 %v4104
    %4167 = vmatprep.subr.mxu0 0.0
    %4168 = vmatpush1.msra.mxu0 %v4105
    %4169 = vmatprep.subr.mxu0 0.0
    %4170 = vmatpush1.msra.mxu0 %v4106
    %4171 = vmatprep.subr.mxu0 0.0
    %4172 = vmatpush1.msra.mxu0 %v4107
    %4173 = vmatprep.subr.mxu0 0.0
    %4174 = vmatpush1.msra.mxu0 %v4108
    %4175 = vmatprep.subr.mxu0 0.0
    %4176 = vmatpush1.msra.mxu0 %v4109
    %4177 = vmatprep.subr.mxu0 0.0
    %4178 = vmatpush1.msra.mxu0 %v4110
    %4179 = vmatprep.subr.mxu0 0.0
    %4180 = vmatpush1.msra.mxu0 %v4111
    %4181 = vmatprep.subr.mxu0 0.0
    %4182 = vmatpush1.msra.mxu0 %v4112
    %4183 = vmatprep.subr.mxu0 0.0
    %4184 = vmatpush1.msra.mxu0 %v4113
    %4185 = vmatprep.mubr.f32.mxu0 %v4081
    %4186 = vmatmul.mubr.f32.gmra.mrb[0].mxu0 %v4080
    %v4187 = vpop.f32.mrb[0].mxu0
    %v4188 = vadd.f32 %v4119, %v4187
    %v4189 = vpop.f32.mrb[0].mxu0
    %4190 = vdwg.mxu0
    %4191 = vst [vmem:[%s11] sm:$0xff] %v4188
    // Predicated region
    $region86: #{cnn_forward.1} parent=1 // pred_check
      _
    $region87: #{cnn_forward.1} parent=1 // pred_check_branch
      %4193 = sbr.rel (0) target = $region89
    $region88: #{cnn_forward.1} parent=1 // pred_region
      _
    $region89: #{cnn_forward.1} parent=1 // pred_fallthru
      _
    // Predicated region
    $region90: #{cnn_forward.1} parent=1 // pred_check
      _
    $region91: #{cnn_forward.1} parent=1 // pred_check_branch
      %4195 = sbr.rel (0) target = $region93
    $region92: #{cnn_forward.1} parent=1 // pred_region
      _
    $region93: #{cnn_forward.1} parent=1 // pred_fallthru
      _
    %4196 = vsyncpa [#allocation3], 1
    %4197 = vsyncpa [#allocation5], 1
    %4198 = vsyncpa [#allocation8], 1
    %4199 = vsyncpa [#allocation11], 1
    %4200 = vsyncpa [#allocation14], 1
    %4201 = vsyncpa [#allocation17], 1

</llo_original>
